<compile_context>
chip_gen: v7x
topology: tpu7x:2x2x1
jax: 0.10.0
libtpu: 0.0.40
codegen_flags: <defaults>
</compile_context>

<pallas_src>
import functools

import jax
import jax.numpy as jnp
from jax import lax
from jax.experimental import pallas as pl
from jax.experimental.pallas import tpu as pltpu

# MXU operand dtype (accumulation is always f32).  bf16 halves DMA bytes and doubles MXU rate
# on v6e/v7x; set to jnp.float32 for bit-closer parity with the PyTorch reference.
MXU_DTYPE = jnp.bfloat16
VMEM_LIMIT = 32 * 1024 * 1024  # explicit scoped-VMEM limit, valid on v5e/v6e/v7x


# ----------------------------------------------------------------------------
# Kernel 1/2: tiled GEMM + bias + activation (conv im2col hot path)
# ----------------------------------------------------------------------------
def _gemm_bias_act_kernel(x_ref, w_ref, b_ref, o_ref, *, act, mxu_dt):
    acc = jnp.dot(x_ref[...].astype(mxu_dt), w_ref[...].astype(mxu_dt),
                  preferred_element_type=jnp.float32)
    acc = acc + b_ref[...]
    if act == "relu":
        acc = jnp.maximum(acc, 0.0)
    o_ref[...] = acc.astype(o_ref.dtype)


def _pick_tm(m, target=256):
    if m > target and m % target == 0:
        return target
    return m


def gemm_bias_act(x, w, b, act="none"):
    """(M,K) @ (K,N) + bias (+ReLU).  M-tiled, weights/bias resident across the grid."""
    M, K = x.shape
    K2, N = w.shape
    assert K == K2
    tm = _pick_tm(M)
    grid = (M // tm,)
    return pl.pallas_call(
        functools.partial(_gemm_bias_act_kernel, act=act, mxu_dt=MXU_DTYPE),
        out_shape=jax.ShapeDtypeStruct((M, N), jnp.float32),
        grid=grid,
        in_specs=[
            pl.BlockSpec((tm, K), lambda i: (i, 0)),
            pl.BlockSpec((K, N), lambda i: (0, 0)),
            pl.BlockSpec((1, N), lambda i: (0, 0)),
        ],
        out_specs=pl.BlockSpec((tm, N), lambda i: (i, 0)),
        compiler_params=pltpu.CompilerParams(
            dimension_semantics=("parallel",),
            vmem_limit_bytes=VMEM_LIMIT),
    )(x, w, b.reshape(1, N))


# ----------------------------------------------------------------------------
# Kernel 3: fused [patch-embed (folded conv3/flatten/pre_fc)] + transformer + head
# ----------------------------------------------------------------------------
def _layernorm(x, g, b, eps):
    mu = jnp.mean(x, axis=-1, keepdims=True)
    var = jnp.mean((x - mu) ** 2, axis=-1, keepdims=True)
    return (x - mu) * lax.rsqrt(var + eps) * g + b


def _vit_head_kernel(cols_ref, weff_ref, add_ref, g1_ref, b1_ref, qkvw_ref, qkvb_ref,
                     projw_ref, projb_ref, g2_ref, b2_ref, m1w_ref, m1b_ref,
                     m2w_ref, m2b_ref, hw_ref, hb_ref, o_ref, *,
                     nheads, c_real, eps, mxu_dt):
    T, D = add_ref.shape
    dh = D // nheads
    scale = 1.0 / (dh ** 0.5)

    # Patch embedding: conv3 + NCHW-flatten + pre_fc + patch-linear were folded (exactly,
    # they are consecutive affine maps) into one GEMM; row t=0 of cols is zero (CLS slot)
    # and add_term carries cls + pos (t=0) / bias + pos (t>=1).
    cols = cols_ref[0].astype(mxu_dt)                       # (T, 9*144)
    x = jnp.dot(cols, weff_ref[...].astype(mxu_dt),
                preferred_element_type=jnp.float32) + add_ref[...]   # (T, D)

    # --- pre-LN causal multi-head attention (all heads in this single step) ---
    xn = _layernorm(x, g1_ref[...], b1_ref[...], eps)
    qkv = jnp.dot(xn.astype(mxu_dt), qkvw_ref[...].astype(mxu_dt),
                  preferred_element_type=jnp.float32) + qkvb_ref[...]   # (T, 3D)

    row = lax.broadcasted_iota(jnp.int32, (T, T), 0)
    col = lax.broadcasted_iota(jnp.int32, (T, T), 1)
    causal = col <= row                                      # torch.tril mask

    pw = projw_ref[...]
    attn = jnp.zeros((T, D), jnp.float32)
    for h in range(nheads):
        q = qkv[:, h * dh:(h + 1) * dh].astype(mxu_dt)
        k = qkv[:, D + h * dh:D + (h + 1) * dh].astype(mxu_dt)
        v = qkv[:, 2 * D + h * dh:2 * D + (h + 1) * dh].astype(mxu_dt)
        # q . k^T contracted directly (no pre-transposed K operand).
        s = lax.dot_general(q, k, (((1,), (1,)), ((), ())),
                            preferred_element_type=jnp.float32) * scale
        s = jnp.where(causal, s, -1e30)
        s = s - jnp.max(s, axis=-1, keepdims=True)
        p = jnp.exp(s)
        p = p * pl.reciprocal(jnp.sum(p, axis=-1, keepdims=True), approx=True)
        o = jnp.dot(p.astype(mxu_dt), v, preferred_element_type=jnp.float32)     # (T, dh)
        # Output projection accumulated per-head slice (avoids a lane concat).
        attn = attn + jnp.dot(o.astype(mxu_dt),
                              pw[h * dh:(h + 1) * dh, :].astype(mxu_dt),
                              preferred_element_type=jnp.float32)
    x = x + attn + projb_ref[...]

    # --- pre-LN MLP block ---
    xn2 = _layernorm(x, g2_ref[...], b2_ref[...], eps)
    # TODO(synk): PyTorch nn.GELU defaults to exact erf; tanh approximation kept here.
    hmid = jax.nn.gelu(jnp.dot(xn2.astype(mxu_dt), m1w_ref[...].astype(mxu_dt),
                               preferred_element_type=jnp.float32) + m1b_ref[...])
    x = x + jnp.dot(hmid.astype(mxu_dt), m2w_ref[...].astype(mxu_dt),
                    preferred_element_type=jnp.float32) + m2b_ref[...]

    # --- drop CLS, head projection (lane-dense / 128-padded output) ---
    y = x[1:, :]                                             # (N, D)
    qd = jnp.dot(y.astype(mxu_dt), hw_ref[...].astype(mxu_dt),
                 preferred_element_type=jnp.float32) + hb_ref[...]    # (N, CP)
    o_ref[0] = qd.astype(o_ref.dtype)
    # sigmoid only on the real last column (stp logit) — single-column EUP op + column store.
    o_ref[0, :, pl.ds(c_real - 1, 1)] = jax.nn.sigmoid(
        qd[:, c_real - 1:c_real]).astype(o_ref.dtype)


def vit_head_fused(cols_ext, prep, *, nheads, c_total):
    B, T, KC = cols_ext.shape
    D = prep["qkv_w"].shape[0]
    Dm = prep["mlp1_w"].shape[1]
    CP = prep["head_w_pad"].shape[1]
    Np = T - 1

    const2d = lambda b: (0, 0)
    in_specs = [
        pl.BlockSpec((1, T, KC), lambda b: (b, 0, 0)),      # cols_ext (per batch)
        pl.BlockSpec((KC, D), const2d),                     # w_eff
        pl.BlockSpec((T, D), const2d),                      # add_term (cls/pos/bias)
        pl.BlockSpec((1, D), const2d), pl.BlockSpec((1, D), const2d),       # ln1 g/b
        pl.BlockSpec((D, 3 * D), const2d), pl.BlockSpec((1, 3 * D), const2d),  # qkv
        pl.BlockSpec((D, D), const2d), pl.BlockSpec((1, D), const2d),        # proj
        pl.BlockSpec((1, D), const2d), pl.BlockSpec((1, D), const2d),        # ln2 g/b
        pl.BlockSpec((D, Dm), const2d), pl.BlockSpec((1, Dm), const2d),      # mlp1
        pl.BlockSpec((Dm, D), const2d), pl.BlockSpec((1, D), const2d),       # mlp2
        pl.BlockSpec((D, CP), const2d), pl.BlockSpec((1, CP), const2d),      # head (padded)
    ]
    return pl.pallas_call(
        functools.partial(_vit_head_kernel, nheads=nheads, c_real=c_total,
                          eps=1e-5, mxu_dt=MXU_DTYPE),
        out_shape=jax.ShapeDtypeStruct((B, Np, CP), jnp.float32),
        grid=(B,),
        in_specs=in_specs,
        out_specs=pl.BlockSpec((1, Np, CP), lambda b: (b, 0, 0)),
        compiler_params=pltpu.CompilerParams(
            dimension_semantics=("parallel",),
            vmem_limit_bytes=VMEM_LIMIT),
    )(cols_ext, prep["w_eff"], prep["add_term"],
      prep["ln1_g"], prep["ln1_b"], prep["qkv_w"], prep["qkv_b"],
      prep["proj_w"], prep["proj_b"], prep["ln2_g"], prep["ln2_b"],
      prep["mlp1_w"], prep["mlp1_b"], prep["mlp2_w"], prep["mlp2_b"],
      prep["head_w_pad"], prep["head_b_pad"])


# ----------------------------------------------------------------------------
# im2col glue (plain JAX / XLA, outside the kernels)
# ----------------------------------------------------------------------------
def conv_im2col(x, kh, kw, stride, pad):
    Bn, C, H, W = x.shape
    if pad:
        x = jnp.pad(x, ((0, 0), (0, 0), (pad, pad), (pad, pad)))
    Hp, Wp = x.shape[2], x.shape[3]
    Ho = (Hp - kh) // stride + 1
    Wo = (Wp - kw) // stride + 1
    cols = []
    for i in range(kh):
        for j in range(kw):
            cols.append(x[:, :, i:i + stride * Ho:stride, j:j + stride * Wo:stride])
    cols = jnp.stack(cols, axis=0).reshape(kh, kw, Bn, C, Ho, Wo)
    cols = cols.transpose(2, 4, 5, 3, 0, 1).reshape(Bn * Ho * Wo, C * kh * kw)
    return cols, Ho, Wo


def conv2d_gemm(x, w, b, stride, pad, act):
    """PyTorch-semantics Conv2d via im2col (wrapper) + Pallas GEMM (compute).  NCHW in/out."""
    Bn = x.shape[0]
    O, C, kh, kw = w.shape
    cols, Ho, Wo = conv_im2col(x, kh, kw, stride, pad)
    w_mat = w.reshape(O, C * kh * kw).T
    y = gemm_bias_act(cols, w_mat, b, act=act)
    return y.reshape(Bn, Ho, Wo, O).transpose(0, 3, 1, 2)


# ----------------------------------------------------------------------------
# Parameters (deterministic, synthetic) + one-time preparation / folding
# ----------------------------------------------------------------------------
def init_params(key, *, input_dim, canvas_size, rnn_hid, mlp_dim, head_dims,
                vit_channel, input_csize, nloc):
    ki = iter(jax.random.split(key, 20))

    def conv_w(k, o, i, kh, kw):
        return jax.random.normal(k, (o, i, kh, kw), jnp.float32) / jnp.sqrt(i * kh * kw)

    def dense_w(k, fi, fo):
        return jax.random.normal(k, (fi, fo), jnp.float32) / jnp.sqrt(fi)

    flat_sp = canvas_size // 4 - 1
    C = sum(head_dims)
    return {
        "conv1_w": conv_w(next(ki), 16, input_dim, 3, 3), "conv1_b": jnp.zeros((16,)),
        "conv2_w": conv_w(next(ki), 16, 16, 3, 3),        "conv2_b": jnp.zeros((16,)),
        "conv3_w": conv_w(next(ki), 16, 16, 3, 3),        "conv3_b": jnp.zeros((16,)),
        "pre_fc_w": dense_w(next(ki), 16 * flat_sp ** 2, vit_channel * input_csize ** 2),
        "pre_fc_b": jnp.zeros((vit_channel * input_csize ** 2,)),
        "patch_w": dense_w(next(ki), vit_channel * input_csize ** 2, rnn_hid),
        "patch_b": jnp.zeros((rnn_hid,)),
        "cls": 0.02 * jax.random.normal(next(ki), (1, 1, rnn_hid)),
        "pos": 0.02 * jax.random.normal(next(ki), (1, nloc + 1, rnn_hid)),
        "ln1_g": jnp.ones((rnn_hid,)), "ln1_b": jnp.zeros((rnn_hid,)),
        "qkv_w": dense_w(next(ki), rnn_hid, 3 * rnn_hid), "qkv_b": jnp.zeros((3 * rnn_hid,)),
        "proj_w": dense_w(next(ki), rnn_hid, rnn_hid),    "proj_b": jnp.zeros((rnn_hid,)),
        "ln2_g": jnp.ones((rnn_hid,)), "ln2_b": jnp.zeros((rnn_hid,)),
        "mlp1_w": dense_w(next(ki), rnn_hid, mlp_dim),    "mlp1_b": jnp.zeros((mlp_dim,)),
        "mlp2_w": dense_w(next(ki), mlp_dim, rnn_hid),    "mlp2_b": jnp.zeros((rnn_hid,)),
        "head_w": dense_w(next(ki), rnn_hid, C),          "head_b": jnp.zeros((C,)),
    }


def prepare_params(params, *, nloc):
    """One-time parameter folding: conv3 + NCHW-flatten + pre_fc + patch-embed compose into a
    single affine map (no nonlinearity between them); head weights padded lane-dense (128)."""
    f32 = jnp.float32
    o3 = params["conv3_w"].shape[0]
    w3_mat = params["conv3_w"].reshape(o3, -1).T                      # (C*kh*kw, 16)
    k3 = w3_mat.shape[0]                                              # 144
    n_sp = params["pre_fc_w"].shape[0] // o3                          # 9 spatial positions
    pre = jnp.transpose(params["pre_fc_w"].reshape(o3, n_sp, -1), (1, 0, 2))   # (p, o, E)
    w_mid = jnp.einsum("ko,poe->pke", w3_mat, pre).reshape(n_sp * k3, -1)      # (1296, E)
    b_mid = jnp.einsum("o,poe->e", params["conv3_b"], pre) + params["pre_fc_b"]
    w_eff = w_mid @ params["patch_w"]                                  # (1296, D)
    b_eff = b_mid @ params["patch_w"] + params["patch_b"]              # (D,)

    T = nloc + 1
    pos = params["pos"][0, :T]                                         # (T, D)
    add_term = jnp.concatenate(
        [params["cls"][0] + pos[:1], pos[1:] + b_eff[None, :]], axis=0)        # (T, D)

    D = params["patch_w"].shape[1]
    C = params["head_w"].shape[1]
    CP = ((C + 127) // 128) * 128
    head_w_pad = jnp.zeros((D, CP), f32).at[:, :C].set(params["head_w"])
    head_b_pad = jnp.zeros((1, CP), f32).at[0, :C].set(params["head_b"])

    r1 = lambda a: a.reshape(1, -1)
    return {
        "conv1_w": params["conv1_w"], "conv1_b": params["conv1_b"],
        "conv2_w": params["conv2_w"], "conv2_b": params["conv2_b"],
        "w_eff": w_eff, "add_term": add_term,
        "ln1_g": r1(params["ln1_g"]), "ln1_b": r1(params["ln1_b"]),
        "qkv_w": params["qkv_w"], "qkv_b": r1(params["qkv_b"]),
        "proj_w": params["proj_w"], "proj_b": r1(params["proj_b"]),
        "ln2_g": r1(params["ln2_g"]), "ln2_b": r1(params["ln2_b"]),
        "mlp1_w": params["mlp1_w"], "mlp1_b": r1(params["mlp1_b"]),
        "mlp2_w": params["mlp2_w"], "mlp2_b": r1(params["mlp2_b"]),
        "head_w_pad": head_w_pad, "head_b_pad": head_b_pad,
    }


# ----------------------------------------------------------------------------
# CNNHead.forward (use_cnn_process=True, concat_one_hot=False, input_id_only=False)
# ----------------------------------------------------------------------------
def cnn_head_forward(prep, canvas, one_hot_prev, *, B, N, nheads, c_total):
    BN = canvas.shape[0]
    assert BN == B * N
    # one_hot_prev is accepted but unused in this configuration (as in PyTorch).

    # ---- self.preprocess: Conv(s2,p1)+ReLU -> Conv(s1,p1)+ReLU  (Pallas GEMM hot path)
    h = conv2d_gemm(canvas, prep["conv1_w"], prep["conv1_b"], stride=2, pad=1, act="relu")
    h = conv2d_gemm(h, prep["conv2_w"], prep["conv2_b"], stride=1, pad=1, act="relu")

    # conv3 + flatten + pre_fc + patch-embed are folded into w_eff inside the fused kernel;
    # only the (tiny) im2col + CLS-slot zero row are built here as wrapper glue.
    cols3, _, _ = conv_im2col(h, 3, 3, stride=2, pad=0)            # (B*N*9, 144)
    KC = prep["w_eff"].shape[0]
    cols3 = cols3.reshape(B, N, KC)
    cols_ext = jnp.pad(cols3, ((0, 0), (1, 0), (0, 0)))            # zero row = CLS slot

    # ---- self.enc (ViT w/ tril mask) + self.compute_q_dist + 'sigmoid_last_dim', fused.
    # TODO(synk): exact ViT internals live in an external module; implemented as a single
    #             pre-LN transformer block (CLS token + learned pos-emb, causal mask).
    # TODO(synk): MHeadout internals are external; modeled as one fused Linear(rnn_hid, sum(head_dims)).
    q_pad = vit_head_fused(cols_ext, prep, nheads=nheads, c_total=c_total)   # (B, N, 128)
    q_dist = q_pad[:, :, :c_total]

    # TODO(synk): self.sampler is an external stochastic module; return q_dist as sampled_out.
    sampled_out = q_dist
    return q_dist, sampled_out


# ----------------------------------------------------------------------------
if __name__ == "__main__":
    B, N = 2, 4                       # batch, nloc
    canvas_size = 16
    canvasd = 1
    input_dim = canvasd + 1           # canvas channel + location-map channel
    rnn_hid = 32
    mlp_dim = 32                      # mlp_dim <= 56 -> nheads = 4
    nheads = 4
    head_dims = (5, 16, 1)            # [n_class_sel, n_class_loc, stp]
    vit_channel, input_csize = 1, 13  # use_cnn_process branch (mlp_dim != 2048)

    key = jax.random.PRNGKey(0)
    kp, kx, ko = jax.random.split(key, 3)
    params = init_params(kp, input_dim=input_dim, canvas_size=canvas_size,
                         rnn_hid=rnn_hid, mlp_dim=mlp_dim, head_dims=head_dims,
                         vit_channel=vit_channel, input_csize=input_csize, nloc=N)
    prep = prepare_params(params, nloc=N)

    canvas = jax.random.normal(kx, (B * N, input_dim, canvas_size, canvas_size), jnp.float32)
    one_hot_prev = jax.random.normal(ko, (B * N, sum(head_dims)), jnp.float32)

    fwd = jax.jit(functools.partial(cnn_head_forward, B=B, N=N, nheads=nheads,
                                    c_total=sum(head_dims)))
    q_dist, sampled_out = fwd(prep, canvas, one_hot_prev)
    jax.block_until_ready((q_dist, sampled_out))

    assert q_dist.shape == (B, N, sum(head_dims))
    assert sampled_out.shape == (B, N, sum(head_dims))
    print("KERNEL_OK")
</pallas_src>

<mosaic_0001>
module attributes {stable_mosaic.version = 11 : i64} {
  func.func @_gemm_bias_act_kernel(%arg0: i32, %arg1: memref<256x18xf32, #tpu.memory_space<vmem>>, %arg2: memref<18x16xf32, #tpu.memory_space<vmem>>, %arg3: memref<1x16xf32, #tpu.memory_space<vmem>>, %arg4: memref<256x16xf32, #tpu.memory_space<vmem>>) attributes {dimension_semantics = [#tpu.dimension_semantics<parallel>], iteration_bounds = array<i64: 2>, scalar_prefetch = 0 : i64, scratch_operands = 0 : i64, tpu.core_type = #tpu.core_type<tc>, window_params = [{transform_indices = @transform_0, window_bounds = array<i64: 256, 18>}, {pipeline_mode = #tpu.pipeline_mode<synchronous>, transform_indices = @transform_1, window_bounds = array<i64: 18, 16>}, {pipeline_mode = #tpu.pipeline_mode<synchronous>, transform_indices = @transform_2, window_bounds = array<i64: 1, 16>}, {transform_indices = @transform_3, window_bounds = array<i64: 256, 16>}]} {
    %c0 = arith.constant 0 : index
    %c0_0 = arith.constant 0 : index
    %0 = vector.load %arg1[%c0, %c0_0] : memref<256x18xf32, #tpu.memory_space<vmem>>, vector<256x18xf32>
    %1 = arith.truncf %0 : vector<256x18xf32> to vector<256x18xbf16>
    %c0_1 = arith.constant 0 : index
    %c0_2 = arith.constant 0 : index
    %2 = vector.load %arg2[%c0_1, %c0_2] : memref<18x16xf32, #tpu.memory_space<vmem>>, vector<18x16xf32>
    %3 = arith.truncf %2 : vector<18x16xf32> to vector<18x16xbf16>
    %cst = arith.constant dense<0.000000e+00> : vector<256x16xf32>
    %4 = tpu.matmul %1, %3, %cst {dimension_numbers = #tpu.dot_dimension_numbers<[1], [0], [0], [1], [0, 0, 1, 1], [], []>} : vector<256x18xbf16>, vector<18x16xbf16>, vector<256x16xf32> -> vector<256x16xf32>
    %c0_3 = arith.constant 0 : index
    %c0_4 = arith.constant 0 : index
    %5 = vector.load %arg3[%c0_3, %c0_4] : memref<1x16xf32, #tpu.memory_space<vmem>>, vector<1x16xf32>
    %6 = vector.broadcast %5 : vector<1x16xf32> to vector<256x16xf32>
    %7 = arith.addf %4, %6 : vector<256x16xf32>
    %cst_5 = arith.constant 0.000000e+00 : f32
    %8 = vector.broadcast %cst_5 : f32 to vector<256x16xf32>
    %9 = arith.maximumf %7, %8 : vector<256x16xf32>
    %c0_6 = arith.constant 0 : index
    %c0_7 = arith.constant 0 : index
    %10 = vector.load %arg4[%c0_6, %c0_7] : memref<256x16xf32, #tpu.memory_space<vmem>>, vector<256x16xf32>
    tpu.vector_store %arg4[%c0_6, %c0_7], %9 {strides = array<i32>} : memref<256x16xf32, #tpu.memory_space<vmem>>, vector<256x16xf32>,
    return
  }
  func.func @transform_0(%arg0: i32) -> (i32, i32) {
    %c0_i32 = arith.constant 0 : i32
    %c0_i32_0 = arith.constant 0 : i32
    return %arg0, %c0_i32 : i32, i32
  }
  func.func @transform_1(%arg0: i32) -> (i32, i32) {
    %c0_i32 = arith.constant 0 : i32
    %c0_i32_0 = arith.constant 0 : i32
    %c0_i32_1 = arith.constant 0 : i32
    return %c0_i32, %c0_i32_0 : i32, i32
  }
  func.func @transform_2(%arg0: i32) -> (i32, i32) {
    %c0_i32 = arith.constant 0 : i32
    %c0_i32_0 = arith.constant 0 : i32
    %c0_i32_1 = arith.constant 0 : i32
    return %c0_i32, %c0_i32_0 : i32, i32
  }
  func.func @transform_3(%arg0: i32) -> (i32, i32) {
    %c0_i32 = arith.constant 0 : i32
    %c0_i32_0 = arith.constant 0 : i32
    return %arg0, %c0_i32 : i32, i32
  }
}

module attributes {stable_mosaic.version = 11 : i64} {
  func.func @_gemm_bias_act_kernel(%arg0: i32, %arg1: memref<256x144xf32, #tpu.memory_space<vmem>>, %arg2: memref<144x16xf32, #tpu.memory_space<vmem>>, %arg3: memref<1x16xf32, #tpu.memory_space<vmem>>, %arg4: memref<256x16xf32, #tpu.memory_space<vmem>>) attributes {dimension_semantics = [#tpu.dimension_semantics<parallel>], iteration_bounds = array<i64: 2>, scalar_prefetch = 0 : i64, scratch_operands = 0 : i64, tpu.core_type = #tpu.core_type<tc>, window_params = [{transform_indices = @transform_0, window_bounds = array<i64: 256, 144>}, {pipeline_mode = #tpu.pipeline_mode<synchronous>, transform_indices = @transform_1, window_bounds = array<i64: 144, 16>}, {pipeline_mode = #tpu.pipeline_mode<synchronous>, transform_indices = @transform_2, window_bounds = array<i64: 1, 16>}, {transform_indices = @transform_3, window_bounds = array<i64: 256, 16>}]} {
    %c0 = arith.constant 0 : index
    %c0_0 = arith.constant 0 : index
    %0 = vector.load %arg1[%c0, %c0_0] : memref<256x144xf32, #tpu.memory_space<vmem>>, vector<256x144xf32>
    %1 = arith.truncf %0 : vector<256x144xf32> to vector<256x144xbf16>
    %c0_1 = arith.constant 0 : index
    %c0_2 = arith.constant 0 : index
    %2 = vector.load %arg2[%c0_1, %c0_2] : memref<144x16xf32, #tpu.memory_space<vmem>>, vector<144x16xf32>
    %3 = arith.truncf %2 : vector<144x16xf32> to vector<144x16xbf16>
    %cst = arith.constant dense<0.000000e+00> : vector<256x16xf32>
    %4 = tpu.matmul %1, %3, %cst {dimension_numbers = #tpu.dot_dimension_numbers<[1], [0], [0], [1], [0, 0, 1, 1], [], []>} : vector<256x144xbf16>, vector<144x16xbf16>, vector<256x16xf32> -> vector<256x16xf32>
    %c0_3 = arith.constant 0 : index
    %c0_4 = arith.constant 0 : index
    %5 = vector.load %arg3[%c0_3, %c0_4] : memref<1x16xf32, #tpu.memory_space<vmem>>, vector<1x16xf32>
    %6 = vector.broadcast %5 : vector<1x16xf32> to vector<256x16xf32>
    %7 = arith.addf %4, %6 : vector<256x16xf32>
    %cst_5 = arith.constant 0.000000e+00 : f32
    %8 = vector.broadcast %cst_5 : f32 to vector<256x16xf32>
    %9 = arith.maximumf %7, %8 : vector<256x16xf32>
    %c0_6 = arith.constant 0 : index
    %c0_7 = arith.constant 0 : index
    %10 = vector.load %arg4[%c0_6, %c0_7] : memref<256x16xf32, #tpu.memory_space<vmem>>, vector<256x16xf32>
    tpu.vector_store %arg4[%c0_6, %c0_7], %9 {strides = array<i32>} : memref<256x16xf32, #tpu.memory_space<vmem>>, vector<256x16xf32>,
    return
  }
  func.func @transform_0(%arg0: i32) -> (i32, i32) {
    %c0_i32 = arith.constant 0 : i32
    %c0_i32_0 = arith.constant 0 : i32
    return %arg0, %c0_i32 : i32, i32
  }
  func.func @transform_1(%arg0: i32) -> (i32, i32) {
    %c0_i32 = arith.constant 0 : i32
    %c0_i32_0 = arith.constant 0 : i32
    %c0_i32_1 = arith.constant 0 : i32
    return %c0_i32, %c0_i32_0 : i32, i32
  }
  func.func @transform_2(%arg0: i32) -> (i32, i32) {
    %c0_i32 = arith.constant 0 : i32
    %c0_i32_0 = arith.constant 0 : i32
    %c0_i32_1 = arith.constant 0 : i32
    return %c0_i32, %c0_i32_0 : i32, i32
  }
  func.func @transform_3(%arg0: i32) -> (i32, i32) {
    %c0_i32 = arith.constant 0 : i32
    %c0_i32_0 = arith.constant 0 : i32
    return %arg0, %c0_i32 : i32, i32
  }
}

module attributes {stable_mosaic.version = 11 : i64} {
  func.func @_vit_head_kernel(%arg0: i32, %arg1: memref<1x5x1296xf32, #tpu.memory_space<vmem>>, %arg2: memref<1296x32xf32, #tpu.memory_space<vmem>>, %arg3: memref<5x32xf32, #tpu.memory_space<vmem>>, %arg4: memref<1x32xf32, #tpu.memory_space<vmem>>, %arg5: memref<1x32xf32, #tpu.memory_space<vmem>>, %arg6: memref<32x96xf32, #tpu.memory_space<vmem>>, %arg7: memref<1x96xf32, #tpu.memory_space<vmem>>, %arg8: memref<32x32xf32, #tpu.memory_space<vmem>>, %arg9: memref<1x32xf32, #tpu.memory_space<vmem>>, %arg10: memref<1x32xf32, #tpu.memory_space<vmem>>, %arg11: memref<1x32xf32, #tpu.memory_space<vmem>>, %arg12: memref<32x32xf32, #tpu.memory_space<vmem>>, %arg13: memref<1x32xf32, #tpu.memory_space<vmem>>, %arg14: memref<32x32xf32, #tpu.memory_space<vmem>>, %arg15: memref<1x32xf32, #tpu.memory_space<vmem>>, %arg16: memref<32x128xf32, #tpu.memory_space<vmem>>, %arg17: memref<1x128xf32, #tpu.memory_space<vmem>>, %arg18: memref<1x4x128xf32, #tpu.memory_space<vmem>>) attributes {dimension_semantics = [#tpu.dimension_semantics<parallel>], iteration_bounds = array<i64: 2>, scalar_prefetch = 0 : i64, scratch_operands = 0 : i64, tpu.core_type = #tpu.core_type<tc>, window_params = [{transform_indices = @transform_0, window_bounds = array<i64: 1, 5, 1296>}, {pipeline_mode = #tpu.pipeline_mode<synchronous>, transform_indices = @transform_1, window_bounds = array<i64: 1296, 32>}, {pipeline_mode = #tpu.pipeline_mode<synchronous>, transform_indices = @transform_2, window_bounds = array<i64: 5, 32>}, {pipeline_mode = #tpu.pipeline_mode<synchronous>, transform_indices = @transform_3, window_bounds = array<i64: 1, 32>}, {pipeline_mode = #tpu.pipeline_mode<synchronous>, transform_indices = @transform_4, window_bounds = array<i64: 1, 32>}, {pipeline_mode = #tpu.pipeline_mode<synchronous>, transform_indices = @transform_5, window_bounds = array<i64: 32, 96>}, {pipeline_mode = #tpu.pipeline_mode<synchronous>, transform_indices = @transform_6, window_bounds = array<i64: 1, 96>}, {pipeline_mode = #tpu.pipeline_mode<synchronous>, transform_indices = @transform_7, window_bounds = array<i64: 32, 32>}, {pipeline_mode = #tpu.pipeline_mode<synchronous>, transform_indices = @transform_8, window_bounds = array<i64: 1, 32>}, {pipeline_mode = #tpu.pipeline_mode<synchronous>, transform_indices = @transform_9, window_bounds = array<i64: 1, 32>}, {pipeline_mode = #tpu.pipeline_mode<synchronous>, transform_indices = @transform_10, window_bounds = array<i64: 1, 32>}, {pipeline_mode = #tpu.pipeline_mode<synchronous>, transform_indices = @transform_11, window_bounds = array<i64: 32, 32>}, {pipeline_mode = #tpu.pipeline_mode<synchronous>, transform_indices = @transform_12, window_bounds = array<i64: 1, 32>}, {pipeline_mode = #tpu.pipeline_mode<synchronous>, transform_indices = @transform_13, window_bounds = array<i64: 32, 32>}, {pipeline_mode = #tpu.pipeline_mode<synchronous>, transform_indices = @transform_14, window_bounds = array<i64: 1, 32>}, {pipeline_mode = #tpu.pipeline_mode<synchronous>, transform_indices = @transform_15, window_bounds = array<i64: 32, 128>}, {pipeline_mode = #tpu.pipeline_mode<synchronous>, transform_indices = @transform_16, window_bounds = array<i64: 1, 128>}, {transform_indices = @transform_17, window_bounds = array<i64: 1, 4, 128>}]} {
    %c0 = arith.constant 0 : index
    %c0_0 = arith.constant 0 : index
    %c0_1 = arith.constant 0 : index
    %0 = vector.load %arg1[%c0, %c0_0, %c0_1] : memref<1x5x1296xf32, #tpu.memory_space<vmem>>, vector<1x5x1296xf32>
    %1 = vector.shape_cast %0 : vector<1x5x1296xf32> to vector<5x1296xf32>
    %2 = arith.truncf %1 : vector<5x1296xf32> to vector<5x1296xbf16>
    %c0_2 = arith.constant 0 : index
    %c0_3 = arith.constant 0 : index
    %3 = vector.load %arg2[%c0_2, %c0_3] : memref<1296x32xf32, #tpu.memory_space<vmem>>, vector<1296x32xf32>
    %4 = arith.truncf %3 : vector<1296x32xf32> to vector<1296x32xbf16>
    %cst = arith.constant dense<0.000000e+00> : vector<5x32xf32>
    %5 = tpu.matmul %2, %4, %cst {dimension_numbers = #tpu.dot_dimension_numbers<[1], [0], [0], [1], [0, 0, 1, 1], [], []>} : vector<5x1296xbf16>, vector<1296x32xbf16>, vector<5x32xf32> -> vector<5x32xf32>
    %c0_4 = arith.constant 0 : index
    %c0_5 = arith.constant 0 : index
    %6 = vector.load %arg3[%c0_4, %c0_5] : memref<5x32xf32, #tpu.memory_space<vmem>>, vector<5x32xf32>
    %7 = arith.addf %5, %6 : vector<5x32xf32>
    %c0_6 = arith.constant 0 : index
    %c0_7 = arith.constant 0 : index
    %8 = vector.load %arg4[%c0_6, %c0_7] : memref<1x32xf32, #tpu.memory_space<vmem>>, vector<1x32xf32>
    %c0_8 = arith.constant 0 : index
    %c0_9 = arith.constant 0 : index
    %9 = vector.load %arg5[%c0_8, %c0_9] : memref<1x32xf32, #tpu.memory_space<vmem>>, vector<1x32xf32>
    %cst_10 = arith.constant dense<0.000000e+00> : vector<5xf32>
    %10 = vector.multi_reduction <add>, %7, %cst_10 [1] : vector<5x32xf32> to vector<5xf32>
    %11 = vector.shape_cast %10 : vector<5xf32> to vector<5x1xf32>
    %cst_11 = arith.constant 3.200000e+01 : f32
    %12 = vector.broadcast %cst_11 : f32 to vector<5x1xf32>
    %13 = arith.divf %11, %12 : vector<5x1xf32>
    %14 = vector.broadcast %13 : vector<5x1xf32> to vector<5x32xf32>
    %15 = arith.subf %7, %14 : vector<5x32xf32>
    %16 = arith.mulf %15, %15 : vector<5x32xf32>
    %cst_12 = arith.constant dense<0.000000e+00> : vector<5xf32>
    %17 = vector.multi_reduction <add>, %16, %cst_12 [1] : vector<5x32xf32> to vector<5xf32>
    %18 = vector.shape_cast %17 : vector<5xf32> to vector<5x1xf32>
    %cst_13 = arith.constant 3.200000e+01 : f32
    %19 = vector.broadcast %cst_13 : f32 to vector<5x1xf32>
    %20 = arith.divf %18, %19 : vector<5x1xf32>
    %21 = vector.broadcast %13 : vector<5x1xf32> to vector<5x32xf32>
    %22 = arith.subf %7, %21 : vector<5x32xf32>
    %cst_14 = arith.constant 9.99999974E-6 : f32
    %23 = vector.broadcast %cst_14 : f32 to vector<5x1xf32>
    %24 = arith.addf %20, %23 : vector<5x1xf32>
    %25 = math.rsqrt %24 : vector<5x1xf32>
    %26 = vector.broadcast %25 : vector<5x1xf32> to vector<5x32xf32>
    %27 = arith.mulf %22, %26 : vector<5x32xf32>
    %28 = vector.broadcast %8 : vector<1x32xf32> to vector<5x32xf32>
    %29 = arith.mulf %27, %28 : vector<5x32xf32>
    %30 = vector.broadcast %9 : vector<1x32xf32> to vector<5x32xf32>
    %31 = arith.addf %29, %30 : vector<5x32xf32>
    %32 = arith.truncf %31 : vector<5x32xf32> to vector<5x32xbf16>
    %c0_15 = arith.constant 0 : index
    %c0_16 = arith.constant 0 : index
    %33 = vector.load %arg6[%c0_15, %c0_16] : memref<32x96xf32, #tpu.memory_space<vmem>>, vector<32x96xf32>
    %34 = arith.truncf %33 : vector<32x96xf32> to vector<32x96xbf16>
    %cst_17 = arith.constant dense<0.000000e+00> : vector<5x96xf32>
    %35 = tpu.matmul %32, %34, %cst_17 {dimension_numbers = #tpu.dot_dimension_numbers<[1], [0], [0], [1], [0, 0, 1, 1], [], []>} : vector<5x32xbf16>, vector<32x96xbf16>, vector<5x96xf32> -> vector<5x96xf32>
    %c0_18 = arith.constant 0 : index
    %c0_19 = arith.constant 0 : index
    %36 = vector.load %arg7[%c0_18, %c0_19] : memref<1x96xf32, #tpu.memory_space<vmem>>, vector<1x96xf32>
    %37 = vector.broadcast %36 : vector<1x96xf32> to vector<5x96xf32>
    %38 = arith.addf %35, %37 : vector<5x96xf32>
    %39 = tpu.iota {dimensions = array<i32: 0>} : vector<5x5xi32>
    %40 = tpu.iota {dimensions = array<i32: 1>} : vector<5x5xi32>
    %41 = arith.cmpi sle, %40, %39 : vector<5x5xi32>
    %c0_20 = arith.constant 0 : index
    %c0_21 = arith.constant 0 : index
    %42 = vector.load %arg8[%c0_20, %c0_21] : memref<32x32xf32, #tpu.memory_space<vmem>>, vector<32x32xf32>
    %cst_22 = arith.constant 0.000000e+00 : f32
    %43 = vector.broadcast %cst_22 : f32 to vector<5x32xf32>
    %44 = vector.extract_strided_slice %38 {offsets = [0, 0], sizes = [5, 8], strides = [1, 1]} : vector<5x96xf32> to vector<5x8xf32>
    %45 = arith.truncf %44 : vector<5x8xf32> to vector<5x8xbf16>
    %46 = vector.extract_strided_slice %38 {offsets = [0, 32], sizes = [5, 8], strides = [1, 1]} : vector<5x96xf32> to vector<5x8xf32>
    %47 = arith.truncf %46 : vector<5x8xf32> to vector<5x8xbf16>
    %48 = vector.extract_strided_slice %38 {offsets = [0, 64], sizes = [5, 8], strides = [1, 1]} : vector<5x96xf32> to vector<5x8xf32>
    %49 = arith.truncf %48 : vector<5x8xf32> to vector<5x8xbf16>
    %cst_23 = arith.constant dense<0.000000e+00> : vector<5x5xf32>
    %50 = tpu.matmul %45, %47, %cst_23 {dimension_numbers = #tpu.dot_dimension_numbers<[1], [1], [0], [0], [0, 0, 1, 0], [], []>} : vector<5x8xbf16>, vector<5x8xbf16>, vector<5x5xf32> -> vector<5x5xf32>
    %cst_24 = arith.constant 0.353553385 : f32
    %51 = vector.broadcast %cst_24 : f32 to vector<5x5xf32>
    %52 = arith.mulf %50, %51 : vector<5x5xf32>
    %cst_25 = arith.constant -1.000000e+30 : f32
    %53 = vector.broadcast %cst_25 : f32 to vector<5x5xf32>
    %54 = arith.select %41, %52, %53 : vector<5x5xi1>, vector<5x5xf32>
    %cst_26 = arith.constant dense<0xFF800000> : vector<5xf32>
    %55 = vector.multi_reduction <maximumf>, %54, %cst_26 [1] : vector<5x5xf32> to vector<5xf32>
    %56 = vector.shape_cast %55 : vector<5xf32> to vector<5x1xf32>
    %57 = vector.broadcast %56 : vector<5x1xf32> to vector<5x5xf32>
    %58 = arith.subf %54, %57 : vector<5x5xf32>
    %59 = math.exp %58 : vector<5x5xf32>
    %cst_27 = arith.constant dense<0.000000e+00> : vector<5xf32>
    %60 = vector.multi_reduction <add>, %59, %cst_27 [1] : vector<5x5xf32> to vector<5xf32>
    %61 = vector.shape_cast %60 : vector<5xf32> to vector<5x1xf32>
    %62 = tpu.reciprocal %61 {approx = true} : vector<5x1xf32> -> vector<5x1xf32>
    %63 = vector.broadcast %62 : vector<5x1xf32> to vector<5x5xf32>
    %64 = arith.mulf %59, %63 : vector<5x5xf32>
    %65 = arith.truncf %64 : vector<5x5xf32> to vector<5x5xbf16>
    %cst_28 = arith.constant dense<0.000000e+00> : vector<5x8xf32>
    %66 = tpu.matmul %65, %49, %cst_28 {dimension_numbers = #tpu.dot_dimension_numbers<[1], [0], [0], [1], [0, 0, 1, 1], [], []>} : vector<5x5xbf16>, vector<5x8xbf16>, vector<5x8xf32> -> vector<5x8xf32>
    %67 = arith.truncf %66 : vector<5x8xf32> to vector<5x8xbf16>
    %68 = vector.extract_strided_slice %42 {offsets = [0, 0], sizes = [8, 32], strides = [1, 1]} : vector<32x32xf32> to vector<8x32xf32>
    %69 = arith.truncf %68 : vector<8x32xf32> to vector<8x32xbf16>
    %cst_29 = arith.constant dense<0.000000e+00> : vector<5x32xf32>
    %70 = tpu.matmul %67, %69, %cst_29 {dimension_numbers = #tpu.dot_dimension_numbers<[1], [0], [0], [1], [0, 0, 1, 1], [], []>} : vector<5x8xbf16>, vector<8x32xbf16>, vector<5x32xf32> -> vector<5x32xf32>
    %71 = arith.addf %43, %70 : vector<5x32xf32>
    %72 = vector.extract_strided_slice %38 {offsets = [0, 8], sizes = [5, 8], strides = [1, 1]} : vector<5x96xf32> to vector<5x8xf32>
    %73 = arith.truncf %72 : vector<5x8xf32> to vector<5x8xbf16>
    %74 = vector.extract_strided_slice %38 {offsets = [0, 40], sizes = [5, 8], strides = [1, 1]} : vector<5x96xf32> to vector<5x8xf32>
    %75 = arith.truncf %74 : vector<5x8xf32> to vector<5x8xbf16>
    %76 = vector.extract_strided_slice %38 {offsets = [0, 72], sizes = [5, 8], strides = [1, 1]} : vector<5x96xf32> to vector<5x8xf32>
    %77 = arith.truncf %76 : vector<5x8xf32> to vector<5x8xbf16>
    %cst_30 = arith.constant dense<0.000000e+00> : vector<5x5xf32>
    %78 = tpu.matmul %73, %75, %cst_30 {dimension_numbers = #tpu.dot_dimension_numbers<[1], [1], [0], [0], [0, 0, 1, 0], [], []>} : vector<5x8xbf16>, vector<5x8xbf16>, vector<5x5xf32> -> vector<5x5xf32>
    %cst_31 = arith.constant 0.353553385 : f32
    %79 = vector.broadcast %cst_31 : f32 to vector<5x5xf32>
    %80 = arith.mulf %78, %79 : vector<5x5xf32>
    %cst_32 = arith.constant -1.000000e+30 : f32
    %81 = vector.broadcast %cst_32 : f32 to vector<5x5xf32>
    %82 = arith.select %41, %80, %81 : vector<5x5xi1>, vector<5x5xf32>
    %cst_33 = arith.constant dense<0xFF800000> : vector<5xf32>
    %83 = vector.multi_reduction <maximumf>, %82, %cst_33 [1] : vector<5x5xf32> to vector<5xf32>
    %84 = vector.shape_cast %83 : vector<5xf32> to vector<5x1xf32>
    %85 = vector.broadcast %84 : vector<5x1xf32> to vector<5x5xf32>
    %86 = arith.subf %82, %85 : vector<5x5xf32>
    %87 = math.exp %86 : vector<5x5xf32>
    %cst_34 = arith.constant dense<0.000000e+00> : vector<5xf32>
    %88 = vector.multi_reduction <add>, %87, %cst_34 [1] : vector<5x5xf32> to vector<5xf32>
    %89 = vector.shape_cast %88 : vector<5xf32> to vector<5x1xf32>
    %90 = tpu.reciprocal %89 {approx = true} : vector<5x1xf32> -> vector<5x1xf32>
    %91 = vector.broadcast %90 : vector<5x1xf32> to vector<5x5xf32>
    %92 = arith.mulf %87, %91 : vector<5x5xf32>
    %93 = arith.truncf %92 : vector<5x5xf32> to vector<5x5xbf16>
    %cst_35 = arith.constant dense<0.000000e+00> : vector<5x8xf32>
    %94 = tpu.matmul %93, %77, %cst_35 {dimension_numbers = #tpu.dot_dimension_numbers<[1], [0], [0], [1], [0, 0, 1, 1], [], []>} : vector<5x5xbf16>, vector<5x8xbf16>, vector<5x8xf32> -> vector<5x8xf32>
    %95 = arith.truncf %94 : vector<5x8xf32> to vector<5x8xbf16>
    %96 = vector.extract_strided_slice %42 {offsets = [8, 0], sizes = [8, 32], strides = [1, 1]} : vector<32x32xf32> to vector<8x32xf32>
    %97 = arith.truncf %96 : vector<8x32xf32> to vector<8x32xbf16>
    %cst_36 = arith.constant dense<0.000000e+00> : vector<5x32xf32>
    %98 = tpu.matmul %95, %97, %cst_36 {dimension_numbers = #tpu.dot_dimension_numbers<[1], [0], [0], [1], [0, 0, 1, 1], [], []>} : vector<5x8xbf16>, vector<8x32xbf16>, vector<5x32xf32> -> vector<5x32xf32>
    %99 = arith.addf %71, %98 : vector<5x32xf32>
    %100 = vector.extract_strided_slice %38 {offsets = [0, 16], sizes = [5, 8], strides = [1, 1]} : vector<5x96xf32> to vector<5x8xf32>
    %101 = arith.truncf %100 : vector<5x8xf32> to vector<5x8xbf16>
    %102 = vector.extract_strided_slice %38 {offsets = [0, 48], sizes = [5, 8], strides = [1, 1]} : vector<5x96xf32> to vector<5x8xf32>
    %103 = arith.truncf %102 : vector<5x8xf32> to vector<5x8xbf16>
    %104 = vector.extract_strided_slice %38 {offsets = [0, 80], sizes = [5, 8], strides = [1, 1]} : vector<5x96xf32> to vector<5x8xf32>
    %105 = arith.truncf %104 : vector<5x8xf32> to vector<5x8xbf16>
    %cst_37 = arith.constant dense<0.000000e+00> : vector<5x5xf32>
    %106 = tpu.matmul %101, %103, %cst_37 {dimension_numbers = #tpu.dot_dimension_numbers<[1], [1], [0], [0], [0, 0, 1, 0], [], []>} : vector<5x8xbf16>, vector<5x8xbf16>, vector<5x5xf32> -> vector<5x5xf32>
    %cst_38 = arith.constant 0.353553385 : f32
    %107 = vector.broadcast %cst_38 : f32 to vector<5x5xf32>
    %108 = arith.mulf %106, %107 : vector<5x5xf32>
    %cst_39 = arith.constant -1.000000e+30 : f32
    %109 = vector.broadcast %cst_39 : f32 to vector<5x5xf32>
    %110 = arith.select %41, %108, %109 : vector<5x5xi1>, vector<5x5xf32>
    %cst_40 = arith.constant dense<0xFF800000> : vector<5xf32>
    %111 = vector.multi_reduction <maximumf>, %110, %cst_40 [1] : vector<5x5xf32> to vector<5xf32>
    %112 = vector.shape_cast %111 : vector<5xf32> to vector<5x1xf32>
    %113 = vector.broadcast %112 : vector<5x1xf32> to vector<5x5xf32>
    %114 = arith.subf %110, %113 : vector<5x5xf32>
    %115 = math.exp %114 : vector<5x5xf32>
    %cst_41 = arith.constant dense<0.000000e+00> : vector<5xf32>
    %116 = vector.multi_reduction <add>, %115, %cst_41 [1] : vector<5x5xf32> to vector<5xf32>
    %117 = vector.shape_cast %116 : vector<5xf32> to vector<5x1xf32>
    %118 = tpu.reciprocal %117 {approx = true} : vector<5x1xf32> -> vector<5x1xf32>
    %119 = vector.broadcast %118 : vector<5x1xf32> to vector<5x5xf32>
    %120 = arith.mulf %115, %119 : vector<5x5xf32>
    %121 = arith.truncf %120 : vector<5x5xf32> to vector<5x5xbf16>
    %cst_42 = arith.constant dense<0.000000e+00> : vector<5x8xf32>
    %122 = tpu.matmul %121, %105, %cst_42 {dimension_numbers = #tpu.dot_dimension_numbers<[1], [0], [0], [1], [0, 0, 1, 1], [], []>} : vector<5x5xbf16>, vector<5x8xbf16>, vector<5x8xf32> -> vector<5x8xf32>
    %123 = arith.truncf %122 : vector<5x8xf32> to vector<5x8xbf16>
    %124 = vector.extract_strided_slice %42 {offsets = [16, 0], sizes = [8, 32], strides = [1, 1]} : vector<32x32xf32> to vector<8x32xf32>
    %125 = arith.truncf %124 : vector<8x32xf32> to vector<8x32xbf16>
    %cst_43 = arith.constant dense<0.000000e+00> : vector<5x32xf32>
    %126 = tpu.matmul %123, %125, %cst_43 {dimension_numbers = #tpu.dot_dimension_numbers<[1], [0], [0], [1], [0, 0, 1, 1], [], []>} : vector<5x8xbf16>, vector<8x32xbf16>, vector<5x32xf32> -> vector<5x32xf32>
    %127 = arith.addf %99, %126 : vector<5x32xf32>
    %128 = vector.extract_strided_slice %38 {offsets = [0, 24], sizes = [5, 8], strides = [1, 1]} : vector<5x96xf32> to vector<5x8xf32>
    %129 = arith.truncf %128 : vector<5x8xf32> to vector<5x8xbf16>
    %130 = vector.extract_strided_slice %38 {offsets = [0, 56], sizes = [5, 8], strides = [1, 1]} : vector<5x96xf32> to vector<5x8xf32>
    %131 = arith.truncf %130 : vector<5x8xf32> to vector<5x8xbf16>
    %132 = vector.extract_strided_slice %38 {offsets = [0, 88], sizes = [5, 8], strides = [1, 1]} : vector<5x96xf32> to vector<5x8xf32>
    %133 = arith.truncf %132 : vector<5x8xf32> to vector<5x8xbf16>
    %cst_44 = arith.constant dense<0.000000e+00> : vector<5x5xf32>
    %134 = tpu.matmul %129, %131, %cst_44 {dimension_numbers = #tpu.dot_dimension_numbers<[1], [1], [0], [0], [0, 0, 1, 0], [], []>} : vector<5x8xbf16>, vector<5x8xbf16>, vector<5x5xf32> -> vector<5x5xf32>
    %cst_45 = arith.constant 0.353553385 : f32
    %135 = vector.broadcast %cst_45 : f32 to vector<5x5xf32>
    %136 = arith.mulf %134, %135 : vector<5x5xf32>
    %cst_46 = arith.constant -1.000000e+30 : f32
    %137 = vector.broadcast %cst_46 : f32 to vector<5x5xf32>
    %138 = arith.select %41, %136, %137 : vector<5x5xi1>, vector<5x5xf32>
    %cst_47 = arith.constant dense<0xFF800000> : vector<5xf32>
    %139 = vector.multi_reduction <maximumf>, %138, %cst_47 [1] : vector<5x5xf32> to vector<5xf32>
    %140 = vector.shape_cast %139 : vector<5xf32> to vector<5x1xf32>
    %141 = vector.broadcast %140 : vector<5x1xf32> to vector<5x5xf32>
    %142 = arith.subf %138, %141 : vector<5x5xf32>
    %143 = math.exp %142 : vector<5x5xf32>
    %cst_48 = arith.constant dense<0.000000e+00> : vector<5xf32>
    %144 = vector.multi_reduction <add>, %143, %cst_48 [1] : vector<5x5xf32> to vector<5xf32>
    %145 = vector.shape_cast %144 : vector<5xf32> to vector<5x1xf32>
    %146 = tpu.reciprocal %145 {approx = true} : vector<5x1xf32> -> vector<5x1xf32>
    %147 = vector.broadcast %146 : vector<5x1xf32> to vector<5x5xf32>
    %148 = arith.mulf %143, %147 : vector<5x5xf32>
    %149 = arith.truncf %148 : vector<5x5xf32> to vector<5x5xbf16>
    %cst_49 = arith.constant dense<0.000000e+00> : vector<5x8xf32>
    %150 = tpu.matmul %149, %133, %cst_49 {dimension_numbers = #tpu.dot_dimension_numbers<[1], [0], [0], [1], [0, 0, 1, 1], [], []>} : vector<5x5xbf16>, vector<5x8xbf16>, vector<5x8xf32> -> vector<5x8xf32>
    %151 = arith.truncf %150 : vector<5x8xf32> to vector<5x8xbf16>
    %152 = vector.extract_strided_slice %42 {offsets = [24, 0], sizes = [8, 32], strides = [1, 1]} : vector<32x32xf32> to vector<8x32xf32>
    %153 = arith.truncf %152 : vector<8x32xf32> to vector<8x32xbf16>
    %cst_50 = arith.constant dense<0.000000e+00> : vector<5x32xf32>
    %154 = tpu.matmul %151, %153, %cst_50 {dimension_numbers = #tpu.dot_dimension_numbers<[1], [0], [0], [1], [0, 0, 1, 1], [], []>} : vector<5x8xbf16>, vector<8x32xbf16>, vector<5x32xf32> -> vector<5x32xf32>
    %155 = arith.addf %127, %154 : vector<5x32xf32>
    %156 = arith.addf %7, %155 : vector<5x32xf32>
    %c0_51 = arith.constant 0 : index
    %c0_52 = arith.constant 0 : index
    %157 = vector.load %arg9[%c0_51, %c0_52] : memref<1x32xf32, #tpu.memory_space<vmem>>, vector<1x32xf32>
    %158 = vector.broadcast %157 : vector<1x32xf32> to vector<5x32xf32>
    %159 = arith.addf %156, %158 : vector<5x32xf32>
    %c0_53 = arith.constant 0 : index
    %c0_54 = arith.constant 0 : index
    %160 = vector.load %arg10[%c0_53, %c0_54] : memref<1x32xf32, #tpu.memory_space<vmem>>, vector<1x32xf32>
    %c0_55 = arith.constant 0 : index
    %c0_56 = arith.constant 0 : index
    %161 = vector.load %arg11[%c0_55, %c0_56] : memref<1x32xf32, #tpu.memory_space<vmem>>, vector<1x32xf32>
    %cst_57 = arith.constant dense<0.000000e+00> : vector<5xf32>
    %162 = vector.multi_reduction <add>, %159, %cst_57 [1] : vector<5x32xf32> to vector<5xf32>
    %163 = vector.shape_cast %162 : vector<5xf32> to vector<5x1xf32>
    %cst_58 = arith.constant 3.200000e+01 : f32
    %164 = vector.broadcast %cst_58 : f32 to vector<5x1xf32>
    %165 = arith.divf %163, %164 : vector<5x1xf32>
    %166 = vector.broadcast %165 : vector<5x1xf32> to vector<5x32xf32>
    %167 = arith.subf %159, %166 : vector<5x32xf32>
    %168 = arith.mulf %167, %167 : vector<5x32xf32>
    %cst_59 = arith.constant dense<0.000000e+00> : vector<5xf32>
    %169 = vector.multi_reduction <add>, %168, %cst_59 [1] : vector<5x32xf32> to vector<5xf32>
    %170 = vector.shape_cast %169 : vector<5xf32> to vector<5x1xf32>
    %cst_60 = arith.constant 3.200000e+01 : f32
    %171 = vector.broadcast %cst_60 : f32 to vector<5x1xf32>
    %172 = arith.divf %170, %171 : vector<5x1xf32>
    %173 = vector.broadcast %165 : vector<5x1xf32> to vector<5x32xf32>
    %174 = arith.subf %159, %173 : vector<5x32xf32>
    %cst_61 = arith.constant 9.99999974E-6 : f32
    %175 = vector.broadcast %cst_61 : f32 to vector<5x1xf32>
    %176 = arith.addf %172, %175 : vector<5x1xf32>
    %177 = math.rsqrt %176 : vector<5x1xf32>
    %178 = vector.broadcast %177 : vector<5x1xf32> to vector<5x32xf32>
    %179 = arith.mulf %174, %178 : vector<5x32xf32>
    %180 = vector.broadcast %160 : vector<1x32xf32> to vector<5x32xf32>
    %181 = arith.mulf %179, %180 : vector<5x32xf32>
    %182 = vector.broadcast %161 : vector<1x32xf32> to vector<5x32xf32>
    %183 = arith.addf %181, %182 : vector<5x32xf32>
    %184 = arith.truncf %183 : vector<5x32xf32> to vector<5x32xbf16>
    %c0_62 = arith.constant 0 : index
    %c0_63 = arith.constant 0 : index
    %185 = vector.load %arg12[%c0_62, %c0_63] : memref<32x32xf32, #tpu.memory_space<vmem>>, vector<32x32xf32>
    %186 = arith.truncf %185 : vector<32x32xf32> to vector<32x32xbf16>
    %cst_64 = arith.constant dense<0.000000e+00> : vector<5x32xf32>
    %187 = tpu.matmul %184, %186, %cst_64 {dimension_numbers = #tpu.dot_dimension_numbers<[1], [0], [0], [1], [0, 0, 1, 1], [], []>} : vector<5x32xbf16>, vector<32x32xbf16>, vector<5x32xf32> -> vector<5x32xf32>
    %c0_65 = arith.constant 0 : index
    %c0_66 = arith.constant 0 : index
    %188 = vector.load %arg13[%c0_65, %c0_66] : memref<1x32xf32, #tpu.memory_space<vmem>>, vector<1x32xf32>
    %189 = vector.broadcast %188 : vector<1x32xf32> to vector<5x32xf32>
    %190 = arith.addf %187, %189 : vector<5x32xf32>
    %191 = arith.mulf %190, %190 : vector<5x32xf32>
    %192 = arith.mulf %190, %191 : vector<5x32xf32>
    %cst_67 = arith.constant 4.471500e-02 : f32
    %193 = vector.broadcast %cst_67 : f32 to vector<5x32xf32>
    %194 = arith.mulf %193, %192 : vector<5x32xf32>
    %195 = arith.addf %190, %194 : vector<5x32xf32>
    %cst_68 = arith.constant 0.797884583 : f32
    %196 = vector.broadcast %cst_68 : f32 to vector<5x32xf32>
    %197 = arith.mulf %196, %195 : vector<5x32xf32>
    %198 = math.tanh %197 : vector<5x32xf32>
    %cst_69 = arith.constant 1.000000e+00 : f32
    %199 = vector.broadcast %cst_69 : f32 to vector<5x32xf32>
    %200 = arith.addf %199, %198 : vector<5x32xf32>
    %cst_70 = arith.constant 5.000000e-01 : f32
    %201 = vector.broadcast %cst_70 : f32 to vector<5x32xf32>
    %202 = arith.mulf %201, %200 : vector<5x32xf32>
    %203 = arith.mulf %190, %202 : vector<5x32xf32>
    %204 = arith.truncf %203 : vector<5x32xf32> to vector<5x32xbf16>
    %c0_71 = arith.constant 0 : index
    %c0_72 = arith.constant 0 : index
    %205 = vector.load %arg14[%c0_71, %c0_72] : memref<32x32xf32, #tpu.memory_space<vmem>>, vector<32x32xf32>
    %206 = arith.truncf %205 : vector<32x32xf32> to vector<32x32xbf16>
    %cst_73 = arith.constant dense<0.000000e+00> : vector<5x32xf32>
    %207 = tpu.matmul %204, %206, %cst_73 {dimension_numbers = #tpu.dot_dimension_numbers<[1], [0], [0], [1], [0, 0, 1, 1], [], []>} : vector<5x32xbf16>, vector<32x32xbf16>, vector<5x32xf32> -> vector<5x32xf32>
    %208 = arith.addf %159, %207 : vector<5x32xf32>
    %c0_74 = arith.constant 0 : index
    %c0_75 = arith.constant 0 : index
    %209 = vector.load %arg15[%c0_74, %c0_75] : memref<1x32xf32, #tpu.memory_space<vmem>>, vector<1x32xf32>
    %210 = vector.broadcast %209 : vector<1x32xf32> to vector<5x32xf32>
    %211 = arith.addf %208, %210 : vector<5x32xf32>
    %212 = vector.extract_strided_slice %211 {offsets = [1, 0], sizes = [4, 32], strides = [1, 1]} : vector<5x32xf32> to vector<4x32xf32>
    %213 = arith.truncf %212 : vector<4x32xf32> to vector<4x32xbf16>
    %c0_76 = arith.constant 0 : index
    %c0_77 = arith.constant 0 : index
    %214 = vector.load %arg16[%c0_76, %c0_77] : memref<32x128xf32, #tpu.memory_space<vmem>>, vector<32x128xf32>
    %215 = arith.truncf %214 : vector<32x128xf32> to vector<32x128xbf16>
    %cst_78 = arith.constant dense<0.000000e+00> : vector<4x128xf32>
    %216 = tpu.matmul %213, %215, %cst_78 {dimension_numbers = #tpu.dot_dimension_numbers<[1], [0], [0], [1], [0, 0, 1, 1], [], []>} : vector<4x32xbf16>, vector<32x128xbf16>, vector<4x128xf32> -> vector<4x128xf32>
    %c0_79 = arith.constant 0 : index
    %c0_80 = arith.constant 0 : index
    %217 = vector.load %arg17[%c0_79, %c0_80] : memref<1x128xf32, #tpu.memory_space<vmem>>, vector<1x128xf32>
    %218 = vector.broadcast %217 : vector<1x128xf32> to vector<4x128xf32>
    %219 = arith.addf %216, %218 : vector<4x128xf32>
    %c0_81 = arith.constant 0 : index
    %c0_82 = arith.constant 0 : index
    %c0_83 = arith.constant 0 : index
    %220 = vector.load %arg18[%c0_81, %c0_82, %c0_83] : memref<1x4x128xf32, #tpu.memory_space<vmem>>, vector<1x4x128xf32>
    %221 = vector.shape_cast %220 : vector<1x4x128xf32> to vector<4x128xf32>
    %222 = vector.shape_cast %219 : vector<4x128xf32> to vector<1x4x128xf32>
    tpu.vector_store %arg18[%c0_81, %c0_82, %c0_83], %222 {strides = array<i32>} : memref<1x4x128xf32, #tpu.memory_space<vmem>>, vector<1x4x128xf32>,
    %223 = vector.extract_strided_slice %219 {offsets = [0, 21], sizes = [4, 1], strides = [1, 1]} : vector<4x128xf32> to vector<4x1xf32>
    %224 = arith.negf %223 : vector<4x1xf32>
    %225 = math.exp %224 : vector<4x1xf32>
    %cst_84 = arith.constant 1.000000e+00 : f32
    %226 = vector.broadcast %cst_84 : f32 to vector<4x1xf32>
    %227 = arith.addf %226, %225 : vector<4x1xf32>
    %228 = arith.divf %226, %227 : vector<4x1xf32>
    %c0_85 = arith.constant 0 : index
    %c0_86 = arith.constant 0 : index
    %c21 = arith.constant 21 : index
    %229 = vector.load %arg18[%c0_85, %c0_86, %c21] : memref<1x4x128xf32, #tpu.memory_space<vmem>>, vector<1x4x1xf32>
    %230 = vector.shape_cast %229 : vector<1x4x1xf32> to vector<4x1xf32>
    %231 = vector.shape_cast %228 : vector<4x1xf32> to vector<1x4x1xf32>
    tpu.vector_store %arg18[%c0_85, %c0_86, %c21], %231 {strides = array<i32>} : memref<1x4x128xf32, #tpu.memory_space<vmem>>, vector<1x4x1xf32>,
    return
  }
  func.func @transform_0(%arg0: i32) -> (i32, i32, i32) {
    %c0_i32 = arith.constant 0 : i32
    %c0_i32_0 = arith.constant 0 : i32
    %c0_i32_1 = arith.constant 0 : i32
    return %arg0, %c0_i32, %c0_i32_0 : i32, i32, i32
  }
  func.func @transform_1(%arg0: i32) -> (i32, i32) {
    %c0_i32 = arith.constant 0 : i32
    %c0_i32_0 = arith.constant 0 : i32
    %c0_i32_1 = arith.constant 0 : i32
    return %c0_i32, %c0_i32_0 : i32, i32
  }
  func.func @transform_2(%arg0: i32) -> (i32, i32) {
    %c0_i32 = arith.constant 0 : i32
    %c0_i32_0 = arith.constant 0 : i32
    %c0_i32_1 = arith.constant 0 : i32
    return %c0_i32, %c0_i32_0 : i32, i32
  }
  func.func @transform_3(%arg0: i32) -> (i32, i32) {
    %c0_i32 = arith.constant 0 : i32
    %c0_i32_0 = arith.constant 0 : i32
    %c0_i32_1 = arith.constant 0 : i32
    return %c0_i32, %c0_i32_0 : i32, i32
  }
  func.func @transform_4(%arg0: i32) -> (i32, i32) {
    %c0_i32 = arith.constant 0 : i32
    %c0_i32_0 = arith.constant 0 : i32
    %c0_i32_1 = arith.constant 0 : i32
    return %c0_i32, %c0_i32_0 : i32, i32
  }
  func.func @transform_5(%arg0: i32) -> (i32, i32) {
    %c0_i32 = arith.constant 0 : i32
    %c0_i32_0 = arith.constant 0 : i32
    %c0_i32_1 = arith.constant 0 : i32
    return %c0_i32, %c0_i32_0 : i32, i32
  }
  func.func @transform_6(%arg0: i32) -> (i32, i32) {
    %c0_i32 = arith.constant 0 : i32
    %c0_i32_0 = arith.constant 0 : i32
    %c0_i32_1 = arith.constant 0 : i32
    return %c0_i32, %c0_i32_0 : i32, i32
  }
  func.func @transform_7(%arg0: i32) -> (i32, i32) {
    %c0_i32 = arith.constant 0 : i32
    %c0_i32_0 = arith.constant 0 : i32
    %c0_i32_1 = arith.constant 0 : i32
    return %c0_i32, %c0_i32_0 : i32, i32
  }
  func.func @transform_8(%arg0: i32) -> (i32, i32) {
    %c0_i32 = arith.constant 0 : i32
    %c0_i32_0 = arith.constant 0 : i32
    %c0_i32_1 = arith.constant 0 : i32
    return %c0_i32, %c0_i32_0 : i32, i32
  }
  func.func @transform_9(%arg0: i32) -> (i32, i32) {
    %c0_i32 = arith.constant 0 : i32
    %c0_i32_0 = arith.constant 0 : i32
    %c0_i32_1 = arith.constant 0 : i32
    return %c0_i32, %c0_i32_0 : i32, i32
  }
  func.func @transform_10(%arg0: i32) -> (i32, i32) {
    %c0_i32 = arith.constant 0 : i32
    %c0_i32_0 = arith.constant 0 : i32
    %c0_i32_1 = arith.constant 0 : i32
    return %c0_i32, %c0_i32_0 : i32, i32
  }
  func.func @transform_11(%arg0: i32) -> (i32, i32) {
    %c0_i32 = arith.constant 0 : i32
    %c0_i32_0 = arith.constant 0 : i32
    %c0_i32_1 = arith.constant 0 : i32
    return %c0_i32, %c0_i32_0 : i32, i32
  }
  func.func @transform_12(%arg0: i32) -> (i32, i32) {
    %c0_i32 = arith.constant 0 : i32
    %c0_i32_0 = arith.constant 0 : i32
    %c0_i32_1 = arith.constant 0 : i32
    return %c0_i32, %c0_i32_0 : i32, i32
  }
  func.func @transform_13(%arg0: i32) -> (i32, i32) {
    %c0_i32 = arith.constant 0 : i32
    %c0_i32_0 = arith.constant 0 : i32
    %c0_i32_1 = arith.constant 0 : i32
    return %c0_i32, %c0_i32_0 : i32, i32
  }
  func.func @transform_14(%arg0: i32) -> (i32, i32) {
    %c0_i32 = arith.constant 0 : i32
    %c0_i32_0 = arith.constant 0 : i32
    %c0_i32_1 = arith.constant 0 : i32
    return %c0_i32, %c0_i32_0 : i32, i32
  }
  func.func @transform_15(%arg0: i32) -> (i32, i32) {
    %c0_i32 = arith.constant 0 : i32
    %c0_i32_0 = arith.constant 0 : i32
    %c0_i32_1 = arith.constant 0 : i32
    return %c0_i32, %c0_i32_0 : i32, i32
  }
  func.func @transform_16(%arg0: i32) -> (i32, i32) {
    %c0_i32 = arith.constant 0 : i32
    %c0_i32_0 = arith.constant 0 : i32
    %c0_i32_1 = arith.constant 0 : i32
    return %c0_i32, %c0_i32_0 : i32, i32
  }
  func.func @transform_17(%arg0: i32) -> (i32, i32, i32) {
    %c0_i32 = arith.constant 0 : i32
    %c0_i32_0 = arith.constant 0 : i32
    %c0_i32_1 = arith.constant 0 : i32
    return %arg0, %c0_i32, %c0_i32_0 : i32, i32, i32
  }
}

</mosaic_0001>

<llo_original>
// kernel: cnn_head_forward.3
$region0: #{cnn_head_forward.3}
  #allocation0 [shape = 'u32[]', space=smem, size = 0x4, offset = 0x4, fixed_abs, tag = 'smem constant byte address 0x4 - core index']
  #allocation1 [shape = 'u32[144,128]{1,0:T(1,128)}', space=vmem, size = 0x12000, scoped, tag = 'internal scratch']
  %s0 = inlined_call_operand.vmem [shape: f32[512,18], index: 0, kind: input, shape index: {}]
  %s1 = inlined_call_operand.vmem [shape: f32[18,16], index: 1, kind: input, shape index: {}]
  %s2 = inlined_call_operand.vmem [shape: f32[1,16], index: 2, kind: input, shape index: {}]
  %s3 = inlined_call_operand.vmem [shape: f32[512,16], index: 3, kind: output, shape index: {}]
  %s4 = sld [smem:[#allocation0]]
  $region45: #{cnn_head_forward.3} parent=0
    _
  %s6 = ssub.s32 1, %s4
  %s7 = scalar_select 0, %s6, %s4
  loop: start=0, step=1, limit=4
  $region2: #{cnn_head_forward.3} parent=0 // loop_pre_header
    _
  $region3: #{cnn_head_forward.3} parent=0 // loop_header
    %s9 = sphi 0, %s13
    %p10 = scmp.ge.s32.totalorder %s9, 4
    %s19 = sphi 0, %s21
    %s22 = sphi 0, %s19
    %s23 = sphi 0, %s22
    %s39 = sphi 0, %s23
    %s43 = sphi 0, %s43
    %s45 = sphi 0, %s43
    %s46 = sphi 0, %s45
    %s60 = sphi 0, %s46
    %s64 = sphi 0, %s64
    %s66 = sphi 0, %s64
    %s67 = sphi 0, %s66
    %s81 = sphi 0, %s67
    %s87 = sphi 0, %s89
    %s90 = sphi 0, %s87
    %s91 = sphi 0, %s90
    %s107 = sphi 0, %s91
  $region4: #{cnn_head_forward.3} parent=0 // loop_header_branch
    %12 = sbr.rel (%p10) target = $region8
  $region5: #{cnn_head_forward.3} parent=0 // loop_body
    %s14 = ssub.s32 %s9, 1
    %s15 = ssub.s32 %s9, 2
    %s16 = sadd.s32 %s9, 1
    %s17 = ssub.s32 %s9, %s16
    %p18 = scmp.eq.s32.totalorder %s17, 0
    %s20 = sadd.s32 %s19, 1
    %s21 = scalar_select %p18, %s19, %s20
    %p24 = pneg %p18
    %p25 = scmp.eq.s32.totalorder %s9, 1
    %p26 = por %p24, %p25
    %p27 = scmp.ne.s32.totalorder %s19, %s22
    %p28 = scmp.eq.s32.totalorder %s9, 0
    %p29 = por %p27, %p28
    %p30 = scmp.ne.s32.totalorder %s19, %s22
    %p31 = scmp.eq.s32.totalorder %s14, 1
    %p32 = por %p30, %p31
    %p33 = scmp.ne.s32.totalorder %s22, %s23
    %p34 = scmp.eq.s32.totalorder %s14, 0
    %p35 = por %p33, %p34
    %p36 = scmp.ne.s32.totalorder %s22, %s23
    %p37 = scmp.eq.s32.totalorder %s15, 1
    %p38 = por %p36, %p37
    %p40 = scmp.ne.s32.totalorder %s23, %s39
    %p41 = scmp.eq.s32.totalorder %s15, 0
    %p42 = por %p40, %p41
    %s44 = sadd.s32 %s43, 1
    %p47 = scmp.eq.s32.totalorder %s9, 1
    %p48 = scmp.ne.s32.totalorder %s43, %s45
    %p49 = scmp.eq.s32.totalorder %s9, 0
    %p50 = por %p48, %p49
    %p51 = scmp.ne.s32.totalorder %s43, %s45
    %p52 = scmp.eq.s32.totalorder %s14, 1
    %p53 = por %p51, %p52
    %p54 = scmp.ne.s32.totalorder %s45, %s46
    %p55 = scmp.eq.s32.totalorder %s14, 0
    %p56 = por %p54, %p55
    %p57 = scmp.ne.s32.totalorder %s45, %s46
    %p58 = scmp.eq.s32.totalorder %s15, 1
    %p59 = por %p57, %p58
    %p61 = scmp.ne.s32.totalorder %s46, %s60
    %p62 = scmp.eq.s32.totalorder %s15, 0
    %p63 = por %p61, %p62
    %s65 = sadd.s32 %s64, 1
    %p68 = scmp.eq.s32.totalorder %s9, 1
    %p69 = scmp.ne.s32.totalorder %s64, %s66
    %p70 = scmp.eq.s32.totalorder %s9, 0
    %p71 = por %p69, %p70
    %p72 = scmp.ne.s32.totalorder %s64, %s66
    %p73 = scmp.eq.s32.totalorder %s14, 1
    %p74 = por %p72, %p73
    %p75 = scmp.ne.s32.totalorder %s66, %s67
    %p76 = scmp.eq.s32.totalorder %s14, 0
    %p77 = por %p75, %p76
    %p78 = scmp.ne.s32.totalorder %s66, %s67
    %p79 = scmp.eq.s32.totalorder %s15, 1
    %p80 = por %p78, %p79
    %p82 = scmp.ne.s32.totalorder %s67, %s81
    %p83 = scmp.eq.s32.totalorder %s15, 0
    %p84 = por %p82, %p83
    %s85 = ssub.s32 %s9, %s16
    %p86 = scmp.eq.s32.totalorder %s85, 0
    %s88 = sadd.s32 %s87, 1
    %s89 = scalar_select %p86, %s87, %s88
    %p92 = pneg %p86
    %p93 = scmp.eq.s32.totalorder %s9, 1
    %p94 = por %p92, %p93
    %p95 = scmp.ne.s32.totalorder %s87, %s90
    %p96 = scmp.eq.s32.totalorder %s9, 0
    %p97 = por %p95, %p96
    %p98 = scmp.ne.s32.totalorder %s87, %s90
    %p99 = scmp.eq.s32.totalorder %s14, 1
    %p100 = por %p98, %p99
    %p101 = scmp.ne.s32.totalorder %s90, %s91
    %p102 = scmp.eq.s32.totalorder %s14, 0
    %p103 = por %p101, %p102
    %p104 = scmp.ne.s32.totalorder %s90, %s91
    %p105 = scmp.eq.s32.totalorder %s15, 1
    %p106 = por %p104, %p105
    %p108 = scmp.ne.s32.totalorder %s91, %s107
    %p109 = scmp.eq.s32.totalorder %s15, 0
    %p110 = por %p108, %p109
    %p111 = scmp.le.s32.totalorder 1, %s9
    %p112 = scmp.lt.s32.totalorder %s9, 3
    %p113 = pnand %p111, %p112
    %p114 = pneg %p113
    // Predicated region
    $region9: #{cnn_head_forward.3} parent=5 // pred_check
      _
    $region10: #{cnn_head_forward.3} parent=5 // pred_check_branch
      %116 = sbr.rel (%p113) target = $region12
    $region11: #{cnn_head_forward.3} parent=5 // pred_region
      %s117 = ssub.s32 %s9, 1
      // Predicated region
      $region13: #{cnn_head_forward.3} parent=11 // pred_check
        %p118 = pneg %p56
      $region14: #{cnn_head_forward.3} parent=11 // pred_check_branch
        %120 = sbr.rel (%p118) target = $region16
      $region15: #{cnn_head_forward.3} parent=11 // pred_region
        _
      $region16: #{cnn_head_forward.3} parent=11 // pred_fallthru
        _
      // Predicated region
      $region17: #{cnn_head_forward.3} parent=11 // pred_check
        %p121 = pneg %p77
      $region18: #{cnn_head_forward.3} parent=11 // pred_check_branch
        %123 = sbr.rel (%p121) target = $region20
      $region19: #{cnn_head_forward.3} parent=11 // pred_region
        _
      $region20: #{cnn_head_forward.3} parent=11 // pred_fallthru
        _
    $region12: #{cnn_head_forward.3} parent=5 // pred_fallthru
      _
    %p124 = scmp.lt.s32.totalorder %s9, 2
    // Predicated region
    $region21: #{cnn_head_forward.3} parent=5 // pred_check
      %p125 = pneg %p124
    $region22: #{cnn_head_forward.3} parent=5 // pred_check_branch
      %127 = sbr.rel (%p125) target = $region24
    $region23: #{cnn_head_forward.3} parent=5 // pred_region
      // Predicated region
      $region25: #{cnn_head_forward.3} parent=23 // pred_check
        %p128 = pneg %p29
      $region26: #{cnn_head_forward.3} parent=23 // pred_check_branch
        %130 = sbr.rel (%p128) target = $region28
      $region27: #{cnn_head_forward.3} parent=23 // pred_region
        %s131 = smul.u32 32, %s9
        %p132 = scmp.lt.s32.totalorder %s131, 63
        %s133 = scalar_select %p132, %s131, 63
        %s134 = smul.addr %s133, 8
        %s135 = scalar_lea.vmem %s0, %s134
        %s136 = smul.u32 32, %s9
      $region28: #{cnn_head_forward.3} parent=23 // pred_fallthru
        _
    $region24: #{cnn_head_forward.3} parent=5 // pred_fallthru
      _
    %p137 = scmp.le.s32.totalorder 1, %s9
    %p138 = scmp.lt.s32.totalorder %s9, 3
    %p139 = pnand %p137, %p138
    %p140 = pneg %p139
    // Predicated region
    $region29: #{cnn_head_forward.3} parent=5 // pred_check
      _
    $region30: #{cnn_head_forward.3} parent=5 // pred_check_branch
      %142 = sbr.rel (%p139) target = $region32
    $region31: #{cnn_head_forward.3} parent=5 // pred_region
      %s143 = ssub.s32 %s9, 1
      %s144 = smul.u32 32, %s14
      %p145 = scmp.lt.s32.totalorder %s144, 63
      %s146 = scalar_select %p145, %s144, 63
      %s147 = smul.addr %s146, 8
      %s148 = scalar_lea.vmem %s0, %s147
      %p149 = pneg %p35
      %p150 = pneg %p32
      %p151 = pneg %p56
      %p152 = pneg %p53
      %p153 = pneg %p77
      %p154 = pneg %p74
      %p155 = pneg %p103
      %p156 = pneg %p100
      %s157 = smul.u32 32, %s14
      %p158 = scmp.lt.s32.totalorder %s157, 63
      %s159 = scalar_select %p158, %s157, 63
      %s160 = smul.addr %s159, 8
      %s161 = scalar_lea.vmem %s3, %s160
      %s162 = smul.u32 32, %s14
      %p163 = scmp.lt.s32.totalorder %s162, 63
      %s164 = scalar_select %p163, %s162, 63
      %s165 = smul.addr %s164, 8
      %s166 = scalar_lea.vmem %s0, %s165
      %s167 = smul.u32 32, %s14
      %s168 = smul.u32 32, %s14
      %p169 = scmp.lt.s32.totalorder %s168, 63
      %s170 = scalar_select %p169, %s168, 63
      %s171 = smul.addr %s170, 8
      %s172 = scalar_lea.vmem %s3, %s171
      %s173 = smul.u32 32, %s14
      %v175 = vld [vmem:[%s166] sm:$0xff]
      %v176 = vld [vmem:[%s166 + $0x8] sm:$0xff]
      %v177 = vld [vmem:[%s166 + $0x10] sm:$0xff]
      %v178 = vld [vmem:[%s166 + $0x18] sm:$0xff]
      %v179 = vld [vmem:[%s166 + $0x20] sm:$0xff]
      %v180 = vld [vmem:[%s166 + $0x28] sm:$0xff]
      %v181 = vld [vmem:[%s166 + $0x30] sm:$0xff]
      %v182 = vld [vmem:[%s166 + $0x38] sm:$0xff]
      %v183 = vld [vmem:[%s166 + $0x40] sm:$0xff]
      %v184 = vld [vmem:[%s166 + $0x48] sm:$0xff]
      %v185 = vld [vmem:[%s166 + $0x50] sm:$0xff]
      %v186 = vld [vmem:[%s166 + $0x58] sm:$0xff]
      %v187 = vld [vmem:[%s166 + $0x60] sm:$0xff]
      %v188 = vld [vmem:[%s166 + $0x68] sm:$0xff]
      %v189 = vld [vmem:[%s166 + $0x70] sm:$0xff]
      %v190 = vld [vmem:[%s166 + $0x78] sm:$0xff]
      %v191 = vld [vmem:[%s166 + $0x80] sm:$0xff]
      %v192 = vld [vmem:[%s166 + $0x88] sm:$0xff]
      %v193 = vld [vmem:[%s166 + $0x90] sm:$0xff]
      %v194 = vld [vmem:[%s166 + $0x98] sm:$0xff]
      %v195 = vld [vmem:[%s166 + $0xa0] sm:$0xff]
      %v196 = vld [vmem:[%s166 + $0xa8] sm:$0xff]
      %v197 = vld [vmem:[%s166 + $0xb0] sm:$0xff]
      %v198 = vld [vmem:[%s166 + $0xb8] sm:$0xff]
      %v199 = vld [vmem:[%s166 + $0xc0] sm:$0xff]
      %v200 = vld [vmem:[%s166 + $0xc8] sm:$0xff]
      %v201 = vld [vmem:[%s166 + $0xd0] sm:$0xff]
      %v202 = vld [vmem:[%s166 + $0xd8] sm:$0xff]
      %v203 = vld [vmem:[%s166 + $0xe0] sm:$0xff]
      %v204 = vld [vmem:[%s166 + $0xe8] sm:$0xff]
      %v205 = vld [vmem:[%s166 + $0xf0] sm:$0xff]
      %v206 = vld [vmem:[%s166 + $0xf8] sm:$0xff]
      %v207 = vpack.c.bf16 %v176, %v175
      %v208 = vpack.c.bf16 %v178, %v177
      %v209 = vpack.c.bf16 %v180, %v179
      %v210 = vpack.c.bf16 %v182, %v181
      %v211 = vpack.c.bf16 %v184, %v183
      %v212 = vpack.c.bf16 %v186, %v185
      %v213 = vpack.c.bf16 %v188, %v187
      %v214 = vpack.c.bf16 %v190, %v189
      %v215 = vpack.c.bf16 %v192, %v191
      %v216 = vpack.c.bf16 %v194, %v193
      %v217 = vpack.c.bf16 %v196, %v195
      %v218 = vpack.c.bf16 %v198, %v197
      %v219 = vpack.c.bf16 %v200, %v199
      %v220 = vpack.c.bf16 %v202, %v201
      %v221 = vpack.c.bf16 %v204, %v203
      %v222 = vpack.c.bf16 %v206, %v205
      %v223 = vld [vmem:[%s1] sm:$0xff]
      %v224 = vld [vmem:[%s1 + $0x8] sm:$0xff]
      %v225 = vld [vmem:[%s1 + $0x10] sm:$0x3]
      %v226 = vpack.c.bf16 %v224, %v223
      %v227 = vpack.c.bf16 %v225, %v225
      %v228 = vld [vmem:[%s2] sm:$0x1]
      %v230 = vlaneseq
      %v231 = vshrl.u32 %v230, 7
      %v232 = vsub.s32 0, %v231
      %v233 = vrot.slane %v228, %v232
      %vm235 = vcmask 146432
      %v237 = vsel %vm235, %v207, 0
      %v240 = vsel %vm235, %v208, 0
      %v243 = vsel %vm235, %v209, 0
      %v246 = vsel %vm235, %v210, 0
      %v249 = vsel %vm235, %v211, 0
      %v252 = vsel %vm235, %v212, 0
      %v255 = vsel %vm235, %v213, 0
      %v258 = vsel %vm235, %v214, 0
      %v261 = vsel %vm235, %v215, 0
      %v264 = vsel %vm235, %v216, 0
      %v267 = vsel %vm235, %v217, 0
      %v270 = vsel %vm235, %v218, 0
      %v273 = vsel %vm235, %v219, 0
      %v276 = vsel %vm235, %v220, 0
      %v279 = vsel %vm235, %v221, 0
      %v282 = vsel %vm235, %v222, 0
      %vm284 = vcmask 1040384
      %v286 = vsel %vm284, %v227, 0
      %288 = vmatprep.subr.bf16.mxu0 0
      %289 = vmatpush1.bf16.msra.mxu0 %v226
      %290 = vmatprep.subr.bf16.mxu0 0
      %291 = vmatpush1.bf16.msra.mxu0 %v286
      %292 = vmatprep.subr.bf16.mxu0 0
      %293 = vmatpush1.bf16.msra.mxu0 0
      %294 = vmatprep.subr.bf16.mxu0 0
      %295 = vmatpush1.bf16.msra.mxu0 0
      %296 = vmatprep.subr.bf16.mxu0 0
      %297 = vmatpush1.bf16.msra.mxu0 0
      %298 = vmatprep.subr.bf16.mxu0 0
      %299 = vmatpush1.bf16.msra.mxu0 0
      %300 = vmatprep.subr.bf16.mxu0 0
      %301 = vmatpush1.bf16.msra.mxu0 0
      %302 = vmatprep.subr.bf16.mxu0 0
      %303 = vmatpush1.bf16.msra.mxu0 0
      %304 = vmatprep.subr.bf16.mxu0 0
      %305 = vmatpush1.bf16.msra.mxu0 0
      %306 = vmatprep.subr.bf16.mxu0 0
      %307 = vmatpush1.bf16.msra.mxu0 0
      %308 = vmatprep.subr.bf16.mxu0 0
      %309 = vmatpush1.bf16.msra.mxu0 0
      %310 = vmatprep.subr.bf16.mxu0 0
      %311 = vmatpush1.bf16.msra.mxu0 0
      %312 = vmatprep.subr.bf16.mxu0 0
      %313 = vmatpush1.bf16.msra.mxu0 0
      %314 = vmatprep.subr.bf16.mxu0 0
      %315 = vmatpush1.bf16.msra.mxu0 0
      %316 = vmatprep.subr.bf16.mxu0 0
      %317 = vmatpush1.bf16.msra.mxu0 0
      %318 = vmatprep.subr.bf16.mxu0 0
      %319 = vmatpush1.bf16.msra.mxu0 0
      %320 = vmatprep.mubr.bf16.mxu0 0
      %321 = vmatmul.mubr.bf16.gmra.mrb[0].mxu0 %v237
      %v322 = vpop.f32.mrb[0].mxu0
      %v323 = vadd.f32 %v233, %v322
      %v324 = vpop.f32.mrb[0].mxu0
      %v325 = vpop.f32.mrb[0].mxu0
      %v326 = vadd.f32 %v233, %v325
      %v327 = vpop.f32.mrb[0].mxu0
      %328 = vmatprep.mubr.bf16.mxu0 0
      %329 = vmatmul.mubr.bf16.gmra.mrb[0].mxu0 %v240
      %v330 = vpop.f32.mrb[0].mxu0
      %v331 = vadd.f32 %v233, %v330
      %v332 = vpop.f32.mrb[0].mxu0
      %v333 = vpop.f32.mrb[0].mxu0
      %v334 = vadd.f32 %v233, %v333
      %v335 = vpop.f32.mrb[0].mxu0
      %336 = vmatprep.mubr.bf16.mxu0 0
      %337 = vmatmul.mubr.bf16.gmra.mrb[0].mxu0 %v243
      %v338 = vpop.f32.mrb[0].mxu0
      %v339 = vadd.f32 %v233, %v338
      %v340 = vpop.f32.mrb[0].mxu0
      %v341 = vpop.f32.mrb[0].mxu0
      %v342 = vadd.f32 %v233, %v341
      %v343 = vpop.f32.mrb[0].mxu0
      %344 = vmatprep.mubr.bf16.mxu0 0
      %345 = vmatmul.mubr.bf16.gmra.mrb[0].mxu0 %v246
      %v346 = vpop.f32.mrb[0].mxu0
      %v347 = vadd.f32 %v233, %v346
      %v348 = vpop.f32.mrb[0].mxu0
      %v349 = vpop.f32.mrb[0].mxu0
      %v350 = vadd.f32 %v233, %v349
      %v351 = vpop.f32.mrb[0].mxu0
      %352 = vmatprep.mubr.bf16.mxu0 0
      %353 = vmatmul.mubr.bf16.gmra.mrb[0].mxu0 %v249
      %v354 = vpop.f32.mrb[0].mxu0
      %v355 = vadd.f32 %v233, %v354
      %v356 = vpop.f32.mrb[0].mxu0
      %v357 = vpop.f32.mrb[0].mxu0
      %v358 = vadd.f32 %v233, %v357
      %v359 = vpop.f32.mrb[0].mxu0
      %360 = vmatprep.mubr.bf16.mxu0 0
      %361 = vmatmul.mubr.bf16.gmra.mrb[0].mxu0 %v252
      %v362 = vpop.f32.mrb[0].mxu0
      %v363 = vadd.f32 %v233, %v362
      %v364 = vpop.f32.mrb[0].mxu0
      %v365 = vpop.f32.mrb[0].mxu0
      %v366 = vadd.f32 %v233, %v365
      %v367 = vpop.f32.mrb[0].mxu0
      %368 = vmatprep.mubr.bf16.mxu0 0
      %369 = vmatmul.mubr.bf16.gmra.mrb[0].mxu0 %v255
      %v370 = vpop.f32.mrb[0].mxu0
      %v371 = vadd.f32 %v233, %v370
      %v372 = vpop.f32.mrb[0].mxu0
      %v373 = vpop.f32.mrb[0].mxu0
      %v374 = vadd.f32 %v233, %v373
      %v375 = vpop.f32.mrb[0].mxu0
      %376 = vmatprep.mubr.bf16.mxu0 0
      %377 = vmatmul.mubr.bf16.gmra.mrb[0].mxu0 %v258
      %v378 = vpop.f32.mrb[0].mxu0
      %v379 = vadd.f32 %v233, %v378
      %v380 = vpop.f32.mrb[0].mxu0
      %v381 = vpop.f32.mrb[0].mxu0
      %v382 = vadd.f32 %v233, %v381
      %v383 = vpop.f32.mrb[0].mxu0
      %384 = vmatprep.mubr.bf16.mxu0 0
      %385 = vmatmul.mubr.bf16.gmra.mrb[0].mxu0 %v261
      %v386 = vpop.f32.mrb[0].mxu0
      %v387 = vadd.f32 %v233, %v386
      %v388 = vpop.f32.mrb[0].mxu0
      %v389 = vpop.f32.mrb[0].mxu0
      %v390 = vadd.f32 %v233, %v389
      %v391 = vpop.f32.mrb[0].mxu0
      %392 = vmatprep.mubr.bf16.mxu0 0
      %393 = vmatmul.mubr.bf16.gmra.mrb[0].mxu0 %v264
      %v394 = vpop.f32.mrb[0].mxu0
      %v395 = vadd.f32 %v233, %v394
      %v396 = vpop.f32.mrb[0].mxu0
      %v397 = vpop.f32.mrb[0].mxu0
      %v398 = vadd.f32 %v233, %v397
      %v399 = vpop.f32.mrb[0].mxu0
      %400 = vmatprep.mubr.bf16.mxu0 0
      %401 = vmatmul.mubr.bf16.gmra.mrb[0].mxu0 %v267
      %v402 = vpop.f32.mrb[0].mxu0
      %v403 = vadd.f32 %v233, %v402
      %v404 = vpop.f32.mrb[0].mxu0
      %v405 = vpop.f32.mrb[0].mxu0
      %v406 = vadd.f32 %v233, %v405
      %v407 = vpop.f32.mrb[0].mxu0
      %408 = vmatprep.mubr.bf16.mxu0 0
      %409 = vmatmul.mubr.bf16.gmra.mrb[0].mxu0 %v270
      %v410 = vpop.f32.mrb[0].mxu0
      %v411 = vadd.f32 %v233, %v410
      %v412 = vpop.f32.mrb[0].mxu0
      %v413 = vpop.f32.mrb[0].mxu0
      %v414 = vadd.f32 %v233, %v413
      %v415 = vpop.f32.mrb[0].mxu0
      %416 = vmatprep.mubr.bf16.mxu0 0
      %417 = vmatmul.mubr.bf16.gmra.mrb[0].mxu0 %v273
      %v418 = vpop.f32.mrb[0].mxu0
      %v419 = vadd.f32 %v233, %v418
      %v420 = vpop.f32.mrb[0].mxu0
      %v421 = vpop.f32.mrb[0].mxu0
      %v422 = vadd.f32 %v233, %v421
      %v423 = vpop.f32.mrb[0].mxu0
      %424 = vmatprep.mubr.bf16.mxu0 0
      %425 = vmatmul.mubr.bf16.gmra.mrb[0].mxu0 %v276
      %v426 = vpop.f32.mrb[0].mxu0
      %v427 = vadd.f32 %v233, %v426
      %v428 = vpop.f32.mrb[0].mxu0
      %v429 = vpop.f32.mrb[0].mxu0
      %v430 = vadd.f32 %v233, %v429
      %v431 = vpop.f32.mrb[0].mxu0
      %432 = vmatprep.mubr.bf16.mxu0 0
      %433 = vmatmul.mubr.bf16.gmra.mrb[0].mxu0 %v279
      %v434 = vpop.f32.mrb[0].mxu0
      %v435 = vadd.f32 %v233, %v434
      %v436 = vpop.f32.mrb[0].mxu0
      %v437 = vpop.f32.mrb[0].mxu0
      %v438 = vadd.f32 %v233, %v437
      %v439 = vpop.f32.mrb[0].mxu0
      %440 = vmatprep.mubr.bf16.mxu0 0
      %441 = vmatmul.mubr.bf16.gmra.mrb[0].mxu0 %v282
      %v442 = vpop.f32.mrb[0].mxu0
      %v443 = vadd.f32 %v233, %v442
      %v444 = vpop.f32.mrb[0].mxu0
      %v445 = vpop.f32.mrb[0].mxu0
      %v446 = vadd.f32 %v233, %v445
      %v447 = vpop.f32.mrb[0].mxu0
      %448 = vdwg.mxu0
      %v449 = vmax.f32 %v323, 0.0
      %v450 = vmax.f32 %v326, 0.0
      %v451 = vmax.f32 %v331, 0.0
      %v452 = vmax.f32 %v334, 0.0
      %v453 = vmax.f32 %v339, 0.0
      %v454 = vmax.f32 %v342, 0.0
      %v455 = vmax.f32 %v347, 0.0
      %v456 = vmax.f32 %v350, 0.0
      %v457 = vmax.f32 %v355, 0.0
      %v458 = vmax.f32 %v358, 0.0
      %v459 = vmax.f32 %v363, 0.0
      %v460 = vmax.f32 %v366, 0.0
      %v461 = vmax.f32 %v371, 0.0
      %v462 = vmax.f32 %v374, 0.0
      %v463 = vmax.f32 %v379, 0.0
      %v464 = vmax.f32 %v382, 0.0
      %v465 = vmax.f32 %v387, 0.0
      %v466 = vmax.f32 %v390, 0.0
      %v467 = vmax.f32 %v395, 0.0
      %v468 = vmax.f32 %v398, 0.0
      %v469 = vmax.f32 %v403, 0.0
      %v470 = vmax.f32 %v406, 0.0
      %v471 = vmax.f32 %v411, 0.0
      %v472 = vmax.f32 %v414, 0.0
      %v473 = vmax.f32 %v419, 0.0
      %v474 = vmax.f32 %v422, 0.0
      %v475 = vmax.f32 %v427, 0.0
      %v476 = vmax.f32 %v430, 0.0
      %v477 = vmax.f32 %v435, 0.0
      %v478 = vmax.f32 %v438, 0.0
      %v479 = vmax.f32 %v443, 0.0
      %v480 = vmax.f32 %v446, 0.0
      %vm481 = vcmask 130048
      %482 = vst.msk [vmem:[%s172] sm:$0xff] %vm481, %v449
      %483 = vst.msk [vmem:[%s172 + $0x8] sm:$0xff] %vm481, %v450
      %484 = vst.msk [vmem:[%s172 + $0x10] sm:$0xff] %vm481, %v451
      %485 = vst.msk [vmem:[%s172 + $0x18] sm:$0xff] %vm481, %v452
      %486 = vst.msk [vmem:[%s172 + $0x20] sm:$0xff] %vm481, %v453
      %487 = vst.msk [vmem:[%s172 + $0x28] sm:$0xff] %vm481, %v454
      %488 = vst.msk [vmem:[%s172 + $0x30] sm:$0xff] %vm481, %v455
      %489 = vst.msk [vmem:[%s172 + $0x38] sm:$0xff] %vm481, %v456
      %490 = vst.msk [vmem:[%s172 + $0x40] sm:$0xff] %vm481, %v457
      %491 = vst.msk [vmem:[%s172 + $0x48] sm:$0xff] %vm481, %v458
      %492 = vst.msk [vmem:[%s172 + $0x50] sm:$0xff] %vm481, %v459
      %493 = vst.msk [vmem:[%s172 + $0x58] sm:$0xff] %vm481, %v460
      %494 = vst.msk [vmem:[%s172 + $0x60] sm:$0xff] %vm481, %v461
      %495 = vst.msk [vmem:[%s172 + $0x68] sm:$0xff] %vm481, %v462
      %496 = vst.msk [vmem:[%s172 + $0x70] sm:$0xff] %vm481, %v463
      %497 = vst.msk [vmem:[%s172 + $0x78] sm:$0xff] %vm481, %v464
      %498 = vst.msk [vmem:[%s172 + $0x80] sm:$0xff] %vm481, %v465
      %499 = vst.msk [vmem:[%s172 + $0x88] sm:$0xff] %vm481, %v466
      %500 = vst.msk [vmem:[%s172 + $0x90] sm:$0xff] %vm481, %v467
      %501 = vst.msk [vmem:[%s172 + $0x98] sm:$0xff] %vm481, %v468
      %502 = vst.msk [vmem:[%s172 + $0xa0] sm:$0xff] %vm481, %v469
      %503 = vst.msk [vmem:[%s172 + $0xa8] sm:$0xff] %vm481, %v470
      %504 = vst.msk [vmem:[%s172 + $0xb0] sm:$0xff] %vm481, %v471
      %505 = vst.msk [vmem:[%s172 + $0xb8] sm:$0xff] %vm481, %v472
      %506 = vst.msk [vmem:[%s172 + $0xc0] sm:$0xff] %vm481, %v473
      %507 = vst.msk [vmem:[%s172 + $0xc8] sm:$0xff] %vm481, %v474
      %508 = vst.msk [vmem:[%s172 + $0xd0] sm:$0xff] %vm481, %v475
      %509 = vst.msk [vmem:[%s172 + $0xd8] sm:$0xff] %vm481, %v476
      %510 = vst.msk [vmem:[%s172 + $0xe0] sm:$0xff] %vm481, %v477
      %511 = vst.msk [vmem:[%s172 + $0xe8] sm:$0xff] %vm481, %v478
      %512 = vst.msk [vmem:[%s172 + $0xf0] sm:$0xff] %vm481, %v479
      %513 = vst.msk [vmem:[%s172 + $0xf8] sm:$0xff] %vm481, %v480
      %s514 = smul.u32 32, %s14
      %p515 = scmp.lt.s32.totalorder %s514, 63
      %s516 = scalar_select %p515, %s514, 63
      %s517 = smul.addr %s516, 8
      %s518 = scalar_lea.vmem %s3, %s517
      // Predicated region
      $region33: #{cnn_head_forward.3} parent=31 // pred_check
        %p519 = pneg %p100
      $region34: #{cnn_head_forward.3} parent=31 // pred_check_branch
        %521 = sbr.rel (%p519) target = $region36
      $region35: #{cnn_head_forward.3} parent=31 // pred_region
        %s522 = smul.u32 32, %s14
      $region36: #{cnn_head_forward.3} parent=31 // pred_fallthru
        _
    $region32: #{cnn_head_forward.3} parent=5 // pred_fallthru
      _
    %p523 = scmp.le.s32.totalorder 2, %s9
    // Predicated region
    $region37: #{cnn_head_forward.3} parent=5 // pred_check
      %p524 = pneg %p523
    $region38: #{cnn_head_forward.3} parent=5 // pred_check_branch
      %526 = sbr.rel (%p524) target = $region40
    $region39: #{cnn_head_forward.3} parent=5 // pred_region
      %s527 = ssub.s32 %s9, 2
      // Predicated region
      $region41: #{cnn_head_forward.3} parent=39 // pred_check
        %p528 = pneg %p106
      $region42: #{cnn_head_forward.3} parent=39 // pred_check_branch
        %530 = sbr.rel (%p528) target = $region44
      $region43: #{cnn_head_forward.3} parent=39 // pred_region
        %s531 = smul.u32 32, %s15
        %p532 = scmp.lt.s32.totalorder %s531, 63
        %s533 = scalar_select %p532, %s531, 63
        %s534 = smul.addr %s533, 8
        %s535 = scalar_lea.vmem %s3, %s534
      $region44: #{cnn_head_forward.3} parent=39 // pred_fallthru
        _
    $region40: #{cnn_head_forward.3} parent=5 // pred_fallthru
      _
  $region6: #{cnn_head_forward.3} parent=0 // loop_footer
    %s13 = sadd.s32 1, %s9
  $region7: #{cnn_head_forward.3} parent=0 // loop_footer_branch
    %8 = sbr.rel target = $region3
  $region8: #{cnn_head_forward.3} parent=0 // loop_exit
    _

// kernel: cnn_head_forward.4
$region0: #{cnn_head_forward.4}
  #allocation0 [shape = 'u32[]', space=smem, size = 0x4, offset = 0x4, fixed_abs, tag = 'smem constant byte address 0x4 - core index']
  #allocation1 [shape = 'u32[144,128]{1,0:T(1,128)}', space=vmem, size = 0x12000, scoped, tag = 'internal scratch']
  %s0 = inlined_call_operand.vmem [shape: f32[512,144], index: 0, kind: input, shape index: {}]
  %s1 = inlined_call_operand.vmem [shape: f32[144,16], index: 1, kind: input, shape index: {}]
  %s2 = inlined_call_operand.vmem [shape: f32[1,16], index: 2, kind: input, shape index: {}]
  %s3 = inlined_call_operand.vmem [shape: f32[512,16], index: 3, kind: output, shape index: {}]
  %s4 = sld [smem:[#allocation0]]
  $region45: #{cnn_head_forward.4} parent=0
    _
  %s6 = ssub.s32 1, %s4
  %s7 = scalar_select 0, %s6, %s4
  loop: start=0, step=1, limit=4
  $region2: #{cnn_head_forward.4} parent=0 // loop_pre_header
    _
  $region3: #{cnn_head_forward.4} parent=0 // loop_header
    %s9 = sphi 0, %s13
    %p10 = scmp.ge.s32.totalorder %s9, 4
    %s19 = sphi 0, %s21
    %s22 = sphi 0, %s19
    %s23 = sphi 0, %s22
    %s39 = sphi 0, %s23
    %s43 = sphi 0, %s43
    %s45 = sphi 0, %s43
    %s46 = sphi 0, %s45
    %s60 = sphi 0, %s46
    %s64 = sphi 0, %s64
    %s66 = sphi 0, %s64
    %s67 = sphi 0, %s66
    %s81 = sphi 0, %s67
    %s87 = sphi 0, %s89
    %s90 = sphi 0, %s87
    %s91 = sphi 0, %s90
    %s107 = sphi 0, %s91
  $region4: #{cnn_head_forward.4} parent=0 // loop_header_branch
    %12 = sbr.rel (%p10) target = $region8
  $region5: #{cnn_head_forward.4} parent=0 // loop_body
    %s14 = ssub.s32 %s9, 1
    %s15 = ssub.s32 %s9, 2
    %s16 = sadd.s32 %s9, 1
    %s17 = ssub.s32 %s9, %s16
    %p18 = scmp.eq.s32.totalorder %s17, 0
    %s20 = sadd.s32 %s19, 1
    %s21 = scalar_select %p18, %s19, %s20
    %p24 = pneg %p18
    %p25 = scmp.eq.s32.totalorder %s9, 1
    %p26 = por %p24, %p25
    %p27 = scmp.ne.s32.totalorder %s19, %s22
    %p28 = scmp.eq.s32.totalorder %s9, 0
    %p29 = por %p27, %p28
    %p30 = scmp.ne.s32.totalorder %s19, %s22
    %p31 = scmp.eq.s32.totalorder %s14, 1
    %p32 = por %p30, %p31
    %p33 = scmp.ne.s32.totalorder %s22, %s23
    %p34 = scmp.eq.s32.totalorder %s14, 0
    %p35 = por %p33, %p34
    %p36 = scmp.ne.s32.totalorder %s22, %s23
    %p37 = scmp.eq.s32.totalorder %s15, 1
    %p38 = por %p36, %p37
    %p40 = scmp.ne.s32.totalorder %s23, %s39
    %p41 = scmp.eq.s32.totalorder %s15, 0
    %p42 = por %p40, %p41
    %s44 = sadd.s32 %s43, 1
    %p47 = scmp.eq.s32.totalorder %s9, 1
    %p48 = scmp.ne.s32.totalorder %s43, %s45
    %p49 = scmp.eq.s32.totalorder %s9, 0
    %p50 = por %p48, %p49
    %p51 = scmp.ne.s32.totalorder %s43, %s45
    %p52 = scmp.eq.s32.totalorder %s14, 1
    %p53 = por %p51, %p52
    %p54 = scmp.ne.s32.totalorder %s45, %s46
    %p55 = scmp.eq.s32.totalorder %s14, 0
    %p56 = por %p54, %p55
    %p57 = scmp.ne.s32.totalorder %s45, %s46
    %p58 = scmp.eq.s32.totalorder %s15, 1
    %p59 = por %p57, %p58
    %p61 = scmp.ne.s32.totalorder %s46, %s60
    %p62 = scmp.eq.s32.totalorder %s15, 0
    %p63 = por %p61, %p62
    %s65 = sadd.s32 %s64, 1
    %p68 = scmp.eq.s32.totalorder %s9, 1
    %p69 = scmp.ne.s32.totalorder %s64, %s66
    %p70 = scmp.eq.s32.totalorder %s9, 0
    %p71 = por %p69, %p70
    %p72 = scmp.ne.s32.totalorder %s64, %s66
    %p73 = scmp.eq.s32.totalorder %s14, 1
    %p74 = por %p72, %p73
    %p75 = scmp.ne.s32.totalorder %s66, %s67
    %p76 = scmp.eq.s32.totalorder %s14, 0
    %p77 = por %p75, %p76
    %p78 = scmp.ne.s32.totalorder %s66, %s67
    %p79 = scmp.eq.s32.totalorder %s15, 1
    %p80 = por %p78, %p79
    %p82 = scmp.ne.s32.totalorder %s67, %s81
    %p83 = scmp.eq.s32.totalorder %s15, 0
    %p84 = por %p82, %p83
    %s85 = ssub.s32 %s9, %s16
    %p86 = scmp.eq.s32.totalorder %s85, 0
    %s88 = sadd.s32 %s87, 1
    %s89 = scalar_select %p86, %s87, %s88
    %p92 = pneg %p86
    %p93 = scmp.eq.s32.totalorder %s9, 1
    %p94 = por %p92, %p93
    %p95 = scmp.ne.s32.totalorder %s87, %s90
    %p96 = scmp.eq.s32.totalorder %s9, 0
    %p97 = por %p95, %p96
    %p98 = scmp.ne.s32.totalorder %s87, %s90
    %p99 = scmp.eq.s32.totalorder %s14, 1
    %p100 = por %p98, %p99
    %p101 = scmp.ne.s32.totalorder %s90, %s91
    %p102 = scmp.eq.s32.totalorder %s14, 0
    %p103 = por %p101, %p102
    %p104 = scmp.ne.s32.totalorder %s90, %s91
    %p105 = scmp.eq.s32.totalorder %s15, 1
    %p106 = por %p104, %p105
    %p108 = scmp.ne.s32.totalorder %s91, %s107
    %p109 = scmp.eq.s32.totalorder %s15, 0
    %p110 = por %p108, %p109
    %p111 = scmp.le.s32.totalorder 1, %s9
    %p112 = scmp.lt.s32.totalorder %s9, 3
    %p113 = pnand %p111, %p112
    %p114 = pneg %p113
    // Predicated region
    $region9: #{cnn_head_forward.4} parent=5 // pred_check
      _
    $region10: #{cnn_head_forward.4} parent=5 // pred_check_branch
      %116 = sbr.rel (%p113) target = $region12
    $region11: #{cnn_head_forward.4} parent=5 // pred_region
      %s117 = ssub.s32 %s9, 1
      // Predicated region
      $region13: #{cnn_head_forward.4} parent=11 // pred_check
        %p118 = pneg %p56
      $region14: #{cnn_head_forward.4} parent=11 // pred_check_branch
        %120 = sbr.rel (%p118) target = $region16
      $region15: #{cnn_head_forward.4} parent=11 // pred_region
        _
      $region16: #{cnn_head_forward.4} parent=11 // pred_fallthru
        _
      // Predicated region
      $region17: #{cnn_head_forward.4} parent=11 // pred_check
        %p121 = pneg %p77
      $region18: #{cnn_head_forward.4} parent=11 // pred_check_branch
        %123 = sbr.rel (%p121) target = $region20
      $region19: #{cnn_head_forward.4} parent=11 // pred_region
        _
      $region20: #{cnn_head_forward.4} parent=11 // pred_fallthru
        _
    $region12: #{cnn_head_forward.4} parent=5 // pred_fallthru
      _
    %p124 = scmp.lt.s32.totalorder %s9, 2
    // Predicated region
    $region21: #{cnn_head_forward.4} parent=5 // pred_check
      %p125 = pneg %p124
    $region22: #{cnn_head_forward.4} parent=5 // pred_check_branch
      %127 = sbr.rel (%p125) target = $region24
    $region23: #{cnn_head_forward.4} parent=5 // pred_region
      // Predicated region
      $region25: #{cnn_head_forward.4} parent=23 // pred_check
        %p128 = pneg %p29
      $region26: #{cnn_head_forward.4} parent=23 // pred_check_branch
        %130 = sbr.rel (%p128) target = $region28
      $region27: #{cnn_head_forward.4} parent=23 // pred_region
        %s131 = smul.u32 32, %s9
        %p132 = scmp.lt.s32.totalorder %s131, 63
        %s133 = scalar_select %p132, %s131, 63
        %s134 = smul.addr %s133, 2
        %s135 = smul.addr %s134, 8
        %s136 = scalar_lea.vmem %s0, %s135
        %s137 = smul.u32 32, %s9
      $region28: #{cnn_head_forward.4} parent=23 // pred_fallthru
        _
    $region24: #{cnn_head_forward.4} parent=5 // pred_fallthru
      _
    %p138 = scmp.le.s32.totalorder 1, %s9
    %p139 = scmp.lt.s32.totalorder %s9, 3
    %p140 = pnand %p138, %p139
    %p141 = pneg %p140
    // Predicated region
    $region29: #{cnn_head_forward.4} parent=5 // pred_check
      _
    $region30: #{cnn_head_forward.4} parent=5 // pred_check_branch
      %143 = sbr.rel (%p140) target = $region32
    $region31: #{cnn_head_forward.4} parent=5 // pred_region
      %s144 = ssub.s32 %s9, 1
      %s145 = smul.u32 32, %s14
      %p146 = scmp.lt.s32.totalorder %s145, 63
      %s147 = scalar_select %p146, %s145, 63
      %s148 = smul.addr %s147, 2
      %s149 = smul.addr %s148, 8
      %s150 = scalar_lea.vmem %s0, %s149
      %p151 = pneg %p35
      %p152 = pneg %p32
      %p153 = pneg %p56
      %p154 = pneg %p53
      %p155 = pneg %p77
      %p156 = pneg %p74
      %p157 = pneg %p103
      %p158 = pneg %p100
      %s159 = smul.u32 32, %s14
      %p160 = scmp.lt.s32.totalorder %s159, 63
      %s161 = scalar_select %p160, %s159, 63
      %s162 = smul.addr %s161, 8
      %s163 = scalar_lea.vmem %s3, %s162
      %s164 = smul.u32 32, %s14
      %p165 = scmp.lt.s32.totalorder %s164, 63
      %s166 = scalar_select %p165, %s164, 63
      %s167 = smul.addr %s166, 2
      %s168 = smul.addr %s167, 8
      %s169 = scalar_lea.vmem %s0, %s168
      %s170 = smul.u32 32, %s14
      %s171 = smul.u32 32, %s14
      %p172 = scmp.lt.s32.totalorder %s171, 63
      %s173 = scalar_select %p172, %s171, 63
      %s174 = smul.addr %s173, 8
      %s175 = scalar_lea.vmem %s3, %s174
      %s176 = smul.u32 32, %s14
      %v178 = vld [vmem:[%s169] sm:$0xff]
      %v179 = vld [vmem:[%s169 + $0x8] sm:$0xff]
      %v180 = vld [vmem:[%s169 + $0x10] sm:$0xff]
      %v181 = vld [vmem:[%s169 + $0x18] sm:$0xff]
      %v182 = vld [vmem:[%s169 + $0x20] sm:$0xff]
      %v183 = vld [vmem:[%s169 + $0x28] sm:$0xff]
      %v184 = vld [vmem:[%s169 + $0x30] sm:$0xff]
      %v185 = vld [vmem:[%s169 + $0x38] sm:$0xff]
      %v186 = vld [vmem:[%s169 + $0x40] sm:$0xff]
      %v187 = vld [vmem:[%s169 + $0x48] sm:$0xff]
      %v188 = vld [vmem:[%s169 + $0x50] sm:$0xff]
      %v189 = vld [vmem:[%s169 + $0x58] sm:$0xff]
      %v190 = vld [vmem:[%s169 + $0x60] sm:$0xff]
      %v191 = vld [vmem:[%s169 + $0x68] sm:$0xff]
      %v192 = vld [vmem:[%s169 + $0x70] sm:$0xff]
      %v193 = vld [vmem:[%s169 + $0x78] sm:$0xff]
      %v194 = vld [vmem:[%s169 + $0x80] sm:$0xff]
      %v195 = vld [vmem:[%s169 + $0x88] sm:$0xff]
      %v196 = vld [vmem:[%s169 + $0x90] sm:$0xff]
      %v197 = vld [vmem:[%s169 + $0x98] sm:$0xff]
      %v198 = vld [vmem:[%s169 + $0xa0] sm:$0xff]
      %v199 = vld [vmem:[%s169 + $0xa8] sm:$0xff]
      %v200 = vld [vmem:[%s169 + $0xb0] sm:$0xff]
      %v201 = vld [vmem:[%s169 + $0xb8] sm:$0xff]
      %v202 = vld [vmem:[%s169 + $0xc0] sm:$0xff]
      %v203 = vld [vmem:[%s169 + $0xc8] sm:$0xff]
      %v204 = vld [vmem:[%s169 + $0xd0] sm:$0xff]
      %v205 = vld [vmem:[%s169 + $0xd8] sm:$0xff]
      %v206 = vld [vmem:[%s169 + $0xe0] sm:$0xff]
      %v207 = vld [vmem:[%s169 + $0xe8] sm:$0xff]
      %v208 = vld [vmem:[%s169 + $0xf0] sm:$0xff]
      %v209 = vld [vmem:[%s169 + $0xf8] sm:$0xff]
      %v210 = vld [vmem:[%s169 + $0x100] sm:$0xff]
      %v211 = vld [vmem:[%s169 + $0x108] sm:$0xff]
      %v212 = vld [vmem:[%s169 + $0x110] sm:$0xff]
      %v213 = vld [vmem:[%s169 + $0x118] sm:$0xff]
      %v214 = vld [vmem:[%s169 + $0x120] sm:$0xff]
      %v215 = vld [vmem:[%s169 + $0x128] sm:$0xff]
      %v216 = vld [vmem:[%s169 + $0x130] sm:$0xff]
      %v217 = vld [vmem:[%s169 + $0x138] sm:$0xff]
      %v218 = vld [vmem:[%s169 + $0x140] sm:$0xff]
      %v219 = vld [vmem:[%s169 + $0x148] sm:$0xff]
      %v220 = vld [vmem:[%s169 + $0x150] sm:$0xff]
      %v221 = vld [vmem:[%s169 + $0x158] sm:$0xff]
      %v222 = vld [vmem:[%s169 + $0x160] sm:$0xff]
      %v223 = vld [vmem:[%s169 + $0x168] sm:$0xff]
      %v224 = vld [vmem:[%s169 + $0x170] sm:$0xff]
      %v225 = vld [vmem:[%s169 + $0x178] sm:$0xff]
      %v226 = vld [vmem:[%s169 + $0x180] sm:$0xff]
      %v227 = vld [vmem:[%s169 + $0x188] sm:$0xff]
      %v228 = vld [vmem:[%s169 + $0x190] sm:$0xff]
      %v229 = vld [vmem:[%s169 + $0x198] sm:$0xff]
      %v230 = vld [vmem:[%s169 + $0x1a0] sm:$0xff]
      %v231 = vld [vmem:[%s169 + $0x1a8] sm:$0xff]
      %v232 = vld [vmem:[%s169 + $0x1b0] sm:$0xff]
      %v233 = vld [vmem:[%s169 + $0x1b8] sm:$0xff]
      %v234 = vld [vmem:[%s169 + $0x1c0] sm:$0xff]
      %v235 = vld [vmem:[%s169 + $0x1c8] sm:$0xff]
      %v236 = vld [vmem:[%s169 + $0x1d0] sm:$0xff]
      %v237 = vld [vmem:[%s169 + $0x1d8] sm:$0xff]
      %v238 = vld [vmem:[%s169 + $0x1e0] sm:$0xff]
      %v239 = vld [vmem:[%s169 + $0x1e8] sm:$0xff]
      %v240 = vld [vmem:[%s169 + $0x1f0] sm:$0xff]
      %v241 = vld [vmem:[%s169 + $0x1f8] sm:$0xff]
      %v242 = vpack.c.bf16 %v180, %v178
      %v243 = vpack.c.bf16 %v181, %v179
      %v244 = vpack.c.bf16 %v184, %v182
      %v245 = vpack.c.bf16 %v185, %v183
      %v246 = vpack.c.bf16 %v188, %v186
      %v247 = vpack.c.bf16 %v189, %v187
      %v248 = vpack.c.bf16 %v192, %v190
      %v249 = vpack.c.bf16 %v193, %v191
      %v250 = vpack.c.bf16 %v196, %v194
      %v251 = vpack.c.bf16 %v197, %v195
      %v252 = vpack.c.bf16 %v200, %v198
      %v253 = vpack.c.bf16 %v201, %v199
      %v254 = vpack.c.bf16 %v204, %v202
      %v255 = vpack.c.bf16 %v205, %v203
      %v256 = vpack.c.bf16 %v208, %v206
      %v257 = vpack.c.bf16 %v209, %v207
      %v258 = vpack.c.bf16 %v212, %v210
      %v259 = vpack.c.bf16 %v213, %v211
      %v260 = vpack.c.bf16 %v216, %v214
      %v261 = vpack.c.bf16 %v217, %v215
      %v262 = vpack.c.bf16 %v220, %v218
      %v263 = vpack.c.bf16 %v221, %v219
      %v264 = vpack.c.bf16 %v224, %v222
      %v265 = vpack.c.bf16 %v225, %v223
      %v266 = vpack.c.bf16 %v228, %v226
      %v267 = vpack.c.bf16 %v229, %v227
      %v268 = vpack.c.bf16 %v232, %v230
      %v269 = vpack.c.bf16 %v233, %v231
      %v270 = vpack.c.bf16 %v236, %v234
      %v271 = vpack.c.bf16 %v237, %v235
      %v272 = vpack.c.bf16 %v240, %v238
      %v273 = vpack.c.bf16 %v241, %v239
      %v274 = vld [vmem:[%s1] sm:$0xff]
      %v275 = vld [vmem:[%s1 + $0x8] sm:$0xff]
      %v276 = vld [vmem:[%s1 + $0x10] sm:$0xff]
      %v277 = vld [vmem:[%s1 + $0x18] sm:$0xff]
      %v278 = vld [vmem:[%s1 + $0x20] sm:$0xff]
      %v279 = vld [vmem:[%s1 + $0x28] sm:$0xff]
      %v280 = vld [vmem:[%s1 + $0x30] sm:$0xff]
      %v281 = vld [vmem:[%s1 + $0x38] sm:$0xff]
      %v282 = vld [vmem:[%s1 + $0x40] sm:$0xff]
      %v283 = vld [vmem:[%s1 + $0x48] sm:$0xff]
      %v284 = vld [vmem:[%s1 + $0x50] sm:$0xff]
      %v285 = vld [vmem:[%s1 + $0x58] sm:$0xff]
      %v286 = vld [vmem:[%s1 + $0x60] sm:$0xff]
      %v287 = vld [vmem:[%s1 + $0x68] sm:$0xff]
      %v288 = vld [vmem:[%s1 + $0x70] sm:$0xff]
      %v289 = vld [vmem:[%s1 + $0x78] sm:$0xff]
      %v290 = vld [vmem:[%s1 + $0x80] sm:$0xff]
      %v291 = vld [vmem:[%s1 + $0x88] sm:$0xff]
      %v292 = vpack.c.bf16 %v275, %v274
      %v293 = vpack.c.bf16 %v277, %v276
      %v294 = vpack.c.bf16 %v279, %v278
      %v295 = vpack.c.bf16 %v281, %v280
      %v296 = vpack.c.bf16 %v283, %v282
      %v297 = vpack.c.bf16 %v285, %v284
      %v298 = vpack.c.bf16 %v287, %v286
      %v299 = vpack.c.bf16 %v289, %v288
      %v300 = vpack.c.bf16 %v291, %v290
      %v301 = vld [vmem:[%s2] sm:$0x1]
      %v303 = vlaneseq
      %v304 = vshrl.u32 %v303, 7
      %v305 = vsub.s32 0, %v304
      %v306 = vrot.slane %v301, %v305
      %vm308 = vcmask 130048
      %v310 = vsel %vm308, %v243, 0
      %v313 = vsel %vm308, %v245, 0
      %v316 = vsel %vm308, %v247, 0
      %v319 = vsel %vm308, %v249, 0
      %v322 = vsel %vm308, %v251, 0
      %v325 = vsel %vm308, %v253, 0
      %v328 = vsel %vm308, %v255, 0
      %v331 = vsel %vm308, %v257, 0
      %v334 = vsel %vm308, %v259, 0
      %v337 = vsel %vm308, %v261, 0
      %v340 = vsel %vm308, %v263, 0
      %v343 = vsel %vm308, %v265, 0
      %v346 = vsel %vm308, %v267, 0
      %v349 = vsel %vm308, %v269, 0
      %v352 = vsel %vm308, %v271, 0
      %v355 = vsel %vm308, %v273, 0
      %357 = vmatprep.subr.bf16.mxu0 0
      %358 = vmatpush1.bf16.msra.mxu0 %v292
      %359 = vmatprep.subr.bf16.mxu0 0
      %360 = vmatpush1.bf16.msra.mxu0 %v293
      %361 = vmatprep.subr.bf16.mxu0 0
      %362 = vmatpush1.bf16.msra.mxu0 %v294
      %363 = vmatprep.subr.bf16.mxu0 0
      %364 = vmatpush1.bf16.msra.mxu0 %v295
      %365 = vmatprep.subr.bf16.mxu0 0
      %366 = vmatpush1.bf16.msra.mxu0 %v296
      %367 = vmatprep.subr.bf16.mxu0 0
      %368 = vmatpush1.bf16.msra.mxu0 %v297
      %369 = vmatprep.subr.bf16.mxu0 0
      %370 = vmatpush1.bf16.msra.mxu0 %v298
      %371 = vmatprep.subr.bf16.mxu0 0
      %372 = vmatpush1.bf16.msra.mxu0 %v299
      %373 = vmatprep.subr.bf16.mxu0 0
      %374 = vmatpush1.bf16.msra.mxu0 %v300
      %375 = vmatprep.subr.bf16.mxu0 0
      %376 = vmatpush1.bf16.msra.mxu0 0
      %377 = vmatprep.subr.bf16.mxu0 0
      %378 = vmatpush1.bf16.msra.mxu0 0
      %379 = vmatprep.subr.bf16.mxu0 0
      %380 = vmatpush1.bf16.msra.mxu0 0
      %381 = vmatprep.subr.bf16.mxu0 0
      %382 = vmatpush1.bf16.msra.mxu0 0
      %383 = vmatprep.subr.bf16.mxu0 0
      %384 = vmatpush1.bf16.msra.mxu0 0
      %385 = vmatprep.subr.bf16.mxu0 0
      %386 = vmatpush1.bf16.msra.mxu0 0
      %387 = vmatprep.subr.bf16.mxu0 0
      %388 = vmatpush1.bf16.msra.mxu0 0
      %389 = vmatprep.mubr.bf16.mxu0 %v310
      %390 = vmatmul.mubr.bf16.gmra.mrb[0].mxu0 %v242
      %v391 = vpop.f32.mrb[0].mxu0
      %v392 = vadd.f32 %v306, %v391
      %v393 = vpop.f32.mrb[0].mxu0
      %v394 = vpop.f32.mrb[0].mxu0
      %v395 = vadd.f32 %v306, %v394
      %v396 = vpop.f32.mrb[0].mxu0
      %397 = vmatprep.mubr.bf16.mxu0 %v313
      %398 = vmatmul.mubr.bf16.gmra.mrb[0].mxu0 %v244
      %v399 = vpop.f32.mrb[0].mxu0
      %v400 = vadd.f32 %v306, %v399
      %v401 = vpop.f32.mrb[0].mxu0
      %v402 = vpop.f32.mrb[0].mxu0
      %v403 = vadd.f32 %v306, %v402
      %v404 = vpop.f32.mrb[0].mxu0
      %405 = vmatprep.mubr.bf16.mxu0 %v316
      %406 = vmatmul.mubr.bf16.gmra.mrb[0].mxu0 %v246
      %v407 = vpop.f32.mrb[0].mxu0
      %v408 = vadd.f32 %v306, %v407
      %v409 = vpop.f32.mrb[0].mxu0
      %v410 = vpop.f32.mrb[0].mxu0
      %v411 = vadd.f32 %v306, %v410
      %v412 = vpop.f32.mrb[0].mxu0
      %413 = vmatprep.mubr.bf16.mxu0 %v319
      %414 = vmatmul.mubr.bf16.gmra.mrb[0].mxu0 %v248
      %v415 = vpop.f32.mrb[0].mxu0
      %v416 = vadd.f32 %v306, %v415
      %v417 = vpop.f32.mrb[0].mxu0
      %v418 = vpop.f32.mrb[0].mxu0
      %v419 = vadd.f32 %v306, %v418
      %v420 = vpop.f32.mrb[0].mxu0
      %421 = vmatprep.mubr.bf16.mxu0 %v322
      %422 = vmatmul.mubr.bf16.gmra.mrb[0].mxu0 %v250
      %v423 = vpop.f32.mrb[0].mxu0
      %v424 = vadd.f32 %v306, %v423
      %v425 = vpop.f32.mrb[0].mxu0
      %v426 = vpop.f32.mrb[0].mxu0
      %v427 = vadd.f32 %v306, %v426
      %v428 = vpop.f32.mrb[0].mxu0
      %429 = vmatprep.mubr.bf16.mxu0 %v325
      %430 = vmatmul.mubr.bf16.gmra.mrb[0].mxu0 %v252
      %v431 = vpop.f32.mrb[0].mxu0
      %v432 = vadd.f32 %v306, %v431
      %v433 = vpop.f32.mrb[0].mxu0
      %v434 = vpop.f32.mrb[0].mxu0
      %v435 = vadd.f32 %v306, %v434
      %v436 = vpop.f32.mrb[0].mxu0
      %437 = vmatprep.mubr.bf16.mxu0 %v328
      %438 = vmatmul.mubr.bf16.gmra.mrb[0].mxu0 %v254
      %v439 = vpop.f32.mrb[0].mxu0
      %v440 = vadd.f32 %v306, %v439
      %v441 = vpop.f32.mrb[0].mxu0
      %v442 = vpop.f32.mrb[0].mxu0
      %v443 = vadd.f32 %v306, %v442
      %v444 = vpop.f32.mrb[0].mxu0
      %445 = vmatprep.mubr.bf16.mxu0 %v331
      %446 = vmatmul.mubr.bf16.gmra.mrb[0].mxu0 %v256
      %v447 = vpop.f32.mrb[0].mxu0
      %v448 = vadd.f32 %v306, %v447
      %v449 = vpop.f32.mrb[0].mxu0
      %v450 = vpop.f32.mrb[0].mxu0
      %v451 = vadd.f32 %v306, %v450
      %v452 = vpop.f32.mrb[0].mxu0
      %453 = vmatprep.mubr.bf16.mxu0 %v334
      %454 = vmatmul.mubr.bf16.gmra.mrb[0].mxu0 %v258
      %v455 = vpop.f32.mrb[0].mxu0
      %v456 = vadd.f32 %v306, %v455
      %v457 = vpop.f32.mrb[0].mxu0
      %v458 = vpop.f32.mrb[0].mxu0
      %v459 = vadd.f32 %v306, %v458
      %v460 = vpop.f32.mrb[0].mxu0
      %461 = vmatprep.mubr.bf16.mxu0 %v337
      %462 = vmatmul.mubr.bf16.gmra.mrb[0].mxu0 %v260
      %v463 = vpop.f32.mrb[0].mxu0
      %v464 = vadd.f32 %v306, %v463
      %v465 = vpop.f32.mrb[0].mxu0
      %v466 = vpop.f32.mrb[0].mxu0
      %v467 = vadd.f32 %v306, %v466
      %v468 = vpop.f32.mrb[0].mxu0
      %469 = vmatprep.mubr.bf16.mxu0 %v340
      %470 = vmatmul.mubr.bf16.gmra.mrb[0].mxu0 %v262
      %v471 = vpop.f32.mrb[0].mxu0
      %v472 = vadd.f32 %v306, %v471
      %v473 = vpop.f32.mrb[0].mxu0
      %v474 = vpop.f32.mrb[0].mxu0
      %v475 = vadd.f32 %v306, %v474
      %v476 = vpop.f32.mrb[0].mxu0
      %477 = vmatprep.mubr.bf16.mxu0 %v343
      %478 = vmatmul.mubr.bf16.gmra.mrb[0].mxu0 %v264
      %v479 = vpop.f32.mrb[0].mxu0
      %v480 = vadd.f32 %v306, %v479
      %v481 = vpop.f32.mrb[0].mxu0
      %v482 = vpop.f32.mrb[0].mxu0
      %v483 = vadd.f32 %v306, %v482
      %v484 = vpop.f32.mrb[0].mxu0
      %485 = vmatprep.mubr.bf16.mxu0 %v346
      %486 = vmatmul.mubr.bf16.gmra.mrb[0].mxu0 %v266
      %v487 = vpop.f32.mrb[0].mxu0
      %v488 = vadd.f32 %v306, %v487
      %v489 = vpop.f32.mrb[0].mxu0
      %v490 = vpop.f32.mrb[0].mxu0
      %v491 = vadd.f32 %v306, %v490
      %v492 = vpop.f32.mrb[0].mxu0
      %493 = vmatprep.mubr.bf16.mxu0 %v349
      %494 = vmatmul.mubr.bf16.gmra.mrb[0].mxu0 %v268
      %v495 = vpop.f32.mrb[0].mxu0
      %v496 = vadd.f32 %v306, %v495
      %v497 = vpop.f32.mrb[0].mxu0
      %v498 = vpop.f32.mrb[0].mxu0
      %v499 = vadd.f32 %v306, %v498
      %v500 = vpop.f32.mrb[0].mxu0
      %501 = vmatprep.mubr.bf16.mxu0 %v352
      %502 = vmatmul.mubr.bf16.gmra.mrb[0].mxu0 %v270
      %v503 = vpop.f32.mrb[0].mxu0
      %v504 = vadd.f32 %v306, %v503
      %v505 = vpop.f32.mrb[0].mxu0
      %v506 = vpop.f32.mrb[0].mxu0
      %v507 = vadd.f32 %v306, %v506
      %v508 = vpop.f32.mrb[0].mxu0
      %509 = vmatprep.mubr.bf16.mxu0 %v355
      %510 = vmatmul.mubr.bf16.gmra.mrb[0].mxu0 %v272
      %v511 = vpop.f32.mrb[0].mxu0
      %v512 = vadd.f32 %v306, %v511
      %v513 = vpop.f32.mrb[0].mxu0
      %v514 = vpop.f32.mrb[0].mxu0
      %v515 = vadd.f32 %v306, %v514
      %v516 = vpop.f32.mrb[0].mxu0
      %517 = vdwg.mxu0
      %v518 = vmax.f32 %v392, 0.0
      %v519 = vmax.f32 %v395, 0.0
      %v520 = vmax.f32 %v400, 0.0
      %v521 = vmax.f32 %v403, 0.0
      %v522 = vmax.f32 %v408, 0.0
      %v523 = vmax.f32 %v411, 0.0
      %v524 = vmax.f32 %v416, 0.0
      %v525 = vmax.f32 %v419, 0.0
      %v526 = vmax.f32 %v424, 0.0
      %v527 = vmax.f32 %v427, 0.0
      %v528 = vmax.f32 %v432, 0.0
      %v529 = vmax.f32 %v435, 0.0
      %v530 = vmax.f32 %v440, 0.0
      %v531 = vmax.f32 %v443, 0.0
      %v532 = vmax.f32 %v448, 0.0
      %v533 = vmax.f32 %v451, 0.0
      %v534 = vmax.f32 %v456, 0.0
      %v535 = vmax.f32 %v459, 0.0
      %v536 = vmax.f32 %v464, 0.0
      %v537 = vmax.f32 %v467, 0.0
      %v538 = vmax.f32 %v472, 0.0
      %v539 = vmax.f32 %v475, 0.0
      %v540 = vmax.f32 %v480, 0.0
      %v541 = vmax.f32 %v483, 0.0
      %v542 = vmax.f32 %v488, 0.0
      %v543 = vmax.f32 %v491, 0.0
      %v544 = vmax.f32 %v496, 0.0
      %v545 = vmax.f32 %v499, 0.0
      %v546 = vmax.f32 %v504, 0.0
      %v547 = vmax.f32 %v507, 0.0
      %v548 = vmax.f32 %v512, 0.0
      %v549 = vmax.f32 %v515, 0.0
      %550 = vst.msk [vmem:[%s175] sm:$0xff] %vm308, %v518
      %551 = vst.msk [vmem:[%s175 + $0x8] sm:$0xff] %vm308, %v519
      %552 = vst.msk [vmem:[%s175 + $0x10] sm:$0xff] %vm308, %v520
      %553 = vst.msk [vmem:[%s175 + $0x18] sm:$0xff] %vm308, %v521
      %554 = vst.msk [vmem:[%s175 + $0x20] sm:$0xff] %vm308, %v522
      %555 = vst.msk [vmem:[%s175 + $0x28] sm:$0xff] %vm308, %v523
      %556 = vst.msk [vmem:[%s175 + $0x30] sm:$0xff] %vm308, %v524
      %557 = vst.msk [vmem:[%s175 + $0x38] sm:$0xff] %vm308, %v525
      %558 = vst.msk [vmem:[%s175 + $0x40] sm:$0xff] %vm308, %v526
      %559 = vst.msk [vmem:[%s175 + $0x48] sm:$0xff] %vm308, %v527
      %560 = vst.msk [vmem:[%s175 + $0x50] sm:$0xff] %vm308, %v528
      %561 = vst.msk [vmem:[%s175 + $0x58] sm:$0xff] %vm308, %v529
      %562 = vst.msk [vmem:[%s175 + $0x60] sm:$0xff] %vm308, %v530
      %563 = vst.msk [vmem:[%s175 + $0x68] sm:$0xff] %vm308, %v531
      %564 = vst.msk [vmem:[%s175 + $0x70] sm:$0xff] %vm308, %v532
      %565 = vst.msk [vmem:[%s175 + $0x78] sm:$0xff] %vm308, %v533
      %566 = vst.msk [vmem:[%s175 + $0x80] sm:$0xff] %vm308, %v534
      %567 = vst.msk [vmem:[%s175 + $0x88] sm:$0xff] %vm308, %v535
      %568 = vst.msk [vmem:[%s175 + $0x90] sm:$0xff] %vm308, %v536
      %569 = vst.msk [vmem:[%s175 + $0x98] sm:$0xff] %vm308, %v537
      %570 = vst.msk [vmem:[%s175 + $0xa0] sm:$0xff] %vm308, %v538
      %571 = vst.msk [vmem:[%s175 + $0xa8] sm:$0xff] %vm308, %v539
      %572 = vst.msk [vmem:[%s175 + $0xb0] sm:$0xff] %vm308, %v540
      %573 = vst.msk [vmem:[%s175 + $0xb8] sm:$0xff] %vm308, %v541
      %574 = vst.msk [vmem:[%s175 + $0xc0] sm:$0xff] %vm308, %v542
      %575 = vst.msk [vmem:[%s175 + $0xc8] sm:$0xff] %vm308, %v543
      %576 = vst.msk [vmem:[%s175 + $0xd0] sm:$0xff] %vm308, %v544
      %577 = vst.msk [vmem:[%s175 + $0xd8] sm:$0xff] %vm308, %v545
      %578 = vst.msk [vmem:[%s175 + $0xe0] sm:$0xff] %vm308, %v546
      %579 = vst.msk [vmem:[%s175 + $0xe8] sm:$0xff] %vm308, %v547
      %580 = vst.msk [vmem:[%s175 + $0xf0] sm:$0xff] %vm308, %v548
      %581 = vst.msk [vmem:[%s175 + $0xf8] sm:$0xff] %vm308, %v549
      %s582 = smul.u32 32, %s14
      %p583 = scmp.lt.s32.totalorder %s582, 63
      %s584 = scalar_select %p583, %s582, 63
      %s585 = smul.addr %s584, 8
      %s586 = scalar_lea.vmem %s3, %s585
      // Predicated region
      $region33: #{cnn_head_forward.4} parent=31 // pred_check
        %p587 = pneg %p100
      $region34: #{cnn_head_forward.4} parent=31 // pred_check_branch
        %589 = sbr.rel (%p587) target = $region36
      $region35: #{cnn_head_forward.4} parent=31 // pred_region
        %s590 = smul.u32 32, %s14
      $region36: #{cnn_head_forward.4} parent=31 // pred_fallthru
        _
    $region32: #{cnn_head_forward.4} parent=5 // pred_fallthru
      _
    %p591 = scmp.le.s32.totalorder 2, %s9
    // Predicated region
    $region37: #{cnn_head_forward.4} parent=5 // pred_check
      %p592 = pneg %p591
    $region38: #{cnn_head_forward.4} parent=5 // pred_check_branch
      %594 = sbr.rel (%p592) target = $region40
    $region39: #{cnn_head_forward.4} parent=5 // pred_region
      %s595 = ssub.s32 %s9, 2
      // Predicated region
      $region41: #{cnn_head_forward.4} parent=39 // pred_check
        %p596 = pneg %p106
      $region42: #{cnn_head_forward.4} parent=39 // pred_check_branch
        %598 = sbr.rel (%p596) target = $region44
      $region43: #{cnn_head_forward.4} parent=39 // pred_region
        %s599 = smul.u32 32, %s15
        %p600 = scmp.lt.s32.totalorder %s599, 63
        %s601 = scalar_select %p600, %s599, 63
        %s602 = smul.addr %s601, 8
        %s603 = scalar_lea.vmem %s3, %s602
      $region44: #{cnn_head_forward.4} parent=39 // pred_fallthru
        _
    $region40: #{cnn_head_forward.4} parent=5 // pred_fallthru
      _
  $region6: #{cnn_head_forward.4} parent=0 // loop_footer
    %s13 = sadd.s32 1, %s9
  $region7: #{cnn_head_forward.4} parent=0 // loop_footer_branch
    %8 = sbr.rel target = $region3
  $region8: #{cnn_head_forward.4} parent=0 // loop_exit
    _

// kernel: cnn_head_forward.5
$region0: #{cnn_head_forward.5}
  #allocation0 [shape = 'u32[]', space=smem, size = 0x4, offset = 0x4, fixed_abs, tag = 'smem constant byte address 0x4 - core index']
  #allocation1 [shape = 'u32[144,128]{1,0:T(1,128)}', space=vmem, size = 0x12000, scoped, tag = 'internal scratch']
  %s0 = inlined_call_operand.vmem [shape: f32[2,5,1296], index: 0, kind: input, shape index: {}]
  %s1 = inlined_call_operand.vmem [shape: f32[1296,32], index: 1, kind: input, shape index: {}]
  %s2 = inlined_call_operand.vmem [shape: f32[5,32], index: 2, kind: input, shape index: {}]
  %s3 = inlined_call_operand.vmem [shape: f32[1,32], index: 3, kind: input, shape index: {}]
  %s4 = inlined_call_operand.vmem [shape: f32[1,32], index: 4, kind: input, shape index: {}]
  %s5 = inlined_call_operand.vmem [shape: f32[32,96], index: 5, kind: input, shape index: {}]
  %s6 = inlined_call_operand.vmem [shape: f32[1,96], index: 6, kind: input, shape index: {}]
  %s7 = inlined_call_operand.vmem [shape: f32[32,32], index: 7, kind: input, shape index: {}]
  %s8 = inlined_call_operand.vmem [shape: f32[1,32], index: 8, kind: input, shape index: {}]
  %s9 = inlined_call_operand.vmem [shape: f32[1,32], index: 9, kind: input, shape index: {}]
  %s10 = inlined_call_operand.vmem [shape: f32[1,32], index: 10, kind: input, shape index: {}]
  %s11 = inlined_call_operand.vmem [shape: f32[32,32], index: 11, kind: input, shape index: {}]
  %s12 = inlined_call_operand.vmem [shape: f32[1,32], index: 12, kind: input, shape index: {}]
  %s13 = inlined_call_operand.vmem [shape: f32[32,32], index: 13, kind: input, shape index: {}]
  %s14 = inlined_call_operand.vmem [shape: f32[1,32], index: 14, kind: input, shape index: {}]
  %s15 = inlined_call_operand.vmem [shape: f32[32,128], index: 15, kind: input, shape index: {}]
  %s16 = inlined_call_operand.vmem [shape: f32[1,128], index: 16, kind: input, shape index: {}]
  %s17 = inlined_call_operand.vmem [shape: f32[2,4,128], index: 17, kind: output, shape index: {}]
  %s18 = sld [smem:[#allocation0]]
  $region101: #{cnn_head_forward.5} parent=0
    _
  %s20 = ssub.s32 1, %s18
  %s21 = scalar_select 0, %s20, %s18
  loop: start=0, step=1, limit=4
  $region2: #{cnn_head_forward.5} parent=0 // loop_pre_header
    _
  $region3: #{cnn_head_forward.5} parent=0 // loop_header
    %s23 = sphi 0, %s27
    %p24 = scmp.ge.s32.totalorder %s23, 4
    %s33 = sphi 0, %s35
    %s36 = sphi 0, %s33
    %s37 = sphi 0, %s36
    %s53 = sphi 0, %s37
    %s57 = sphi 0, %s57
    %s59 = sphi 0, %s57
    %s60 = sphi 0, %s59
    %s74 = sphi 0, %s60
    %s78 = sphi 0, %s78
    %s80 = sphi 0, %s78
    %s81 = sphi 0, %s80
    %s95 = sphi 0, %s81
    %s99 = sphi 0, %s99
    %s101 = sphi 0, %s99
    %s102 = sphi 0, %s101
    %s116 = sphi 0, %s102
    %s120 = sphi 0, %s120
    %s122 = sphi 0, %s120
    %s123 = sphi 0, %s122
    %s137 = sphi 0, %s123
    %s141 = sphi 0, %s141
    %s143 = sphi 0, %s141
    %s144 = sphi 0, %s143
    %s158 = sphi 0, %s144
    %s162 = sphi 0, %s162
    %s164 = sphi 0, %s162
    %s165 = sphi 0, %s164
    %s179 = sphi 0, %s165
    %s183 = sphi 0, %s183
    %s185 = sphi 0, %s183
    %s186 = sphi 0, %s185
    %s200 = sphi 0, %s186
    %s204 = sphi 0, %s204
    %s206 = sphi 0, %s204
    %s207 = sphi 0, %s206
    %s221 = sphi 0, %s207
    %s225 = sphi 0, %s225
    %s227 = sphi 0, %s225
    %s228 = sphi 0, %s227
    %s242 = sphi 0, %s228
    %s246 = sphi 0, %s246
    %s248 = sphi 0, %s246
    %s249 = sphi 0, %s248
    %s263 = sphi 0, %s249
    %s267 = sphi 0, %s267
    %s269 = sphi 0, %s267
    %s270 = sphi 0, %s269
    %s284 = sphi 0, %s270
    %s288 = sphi 0, %s288
    %s290 = sphi 0, %s288
    %s291 = sphi 0, %s290
    %s305 = sphi 0, %s291
    %s309 = sphi 0, %s309
    %s311 = sphi 0, %s309
    %s312 = sphi 0, %s311
    %s326 = sphi 0, %s312
    %s330 = sphi 0, %s330
    %s332 = sphi 0, %s330
    %s333 = sphi 0, %s332
    %s347 = sphi 0, %s333
    %s351 = sphi 0, %s351
    %s353 = sphi 0, %s351
    %s354 = sphi 0, %s353
    %s368 = sphi 0, %s354
    %s372 = sphi 0, %s372
    %s374 = sphi 0, %s372
    %s375 = sphi 0, %s374
    %s389 = sphi 0, %s375
    %s395 = sphi 0, %s397
    %s398 = sphi 0, %s395
    %s399 = sphi 0, %s398
    %s415 = sphi 0, %s399
  $region4: #{cnn_head_forward.5} parent=0 // loop_header_branch
    %26 = sbr.rel (%p24) target = $region8
  $region5: #{cnn_head_forward.5} parent=0 // loop_body
    %s28 = ssub.s32 %s23, 1
    %s29 = ssub.s32 %s23, 2
    %s30 = sadd.s32 %s23, 1
    %s31 = ssub.s32 %s23, %s30
    %p32 = scmp.eq.s32.totalorder %s31, 0
    %s34 = sadd.s32 %s33, 1
    %s35 = scalar_select %p32, %s33, %s34
    %p38 = pneg %p32
    %p39 = scmp.eq.s32.totalorder %s23, 1
    %p40 = por %p38, %p39
    %p41 = scmp.ne.s32.totalorder %s33, %s36
    %p42 = scmp.eq.s32.totalorder %s23, 0
    %p43 = por %p41, %p42
    %p44 = scmp.ne.s32.totalorder %s33, %s36
    %p45 = scmp.eq.s32.totalorder %s28, 1
    %p46 = por %p44, %p45
    %p47 = scmp.ne.s32.totalorder %s36, %s37
    %p48 = scmp.eq.s32.totalorder %s28, 0
    %p49 = por %p47, %p48
    %p50 = scmp.ne.s32.totalorder %s36, %s37
    %p51 = scmp.eq.s32.totalorder %s29, 1
    %p52 = por %p50, %p51
    %p54 = scmp.ne.s32.totalorder %s37, %s53
    %p55 = scmp.eq.s32.totalorder %s29, 0
    %p56 = por %p54, %p55
    %s58 = sadd.s32 %s57, 1
    %p61 = scmp.eq.s32.totalorder %s23, 1
    %p62 = scmp.ne.s32.totalorder %s57, %s59
    %p63 = scmp.eq.s32.totalorder %s23, 0
    %p64 = por %p62, %p63
    %p65 = scmp.ne.s32.totalorder %s57, %s59
    %p66 = scmp.eq.s32.totalorder %s28, 1
    %p67 = por %p65, %p66
    %p68 = scmp.ne.s32.totalorder %s59, %s60
    %p69 = scmp.eq.s32.totalorder %s28, 0
    %p70 = por %p68, %p69
    %p71 = scmp.ne.s32.totalorder %s59, %s60
    %p72 = scmp.eq.s32.totalorder %s29, 1
    %p73 = por %p71, %p72
    %p75 = scmp.ne.s32.totalorder %s60, %s74
    %p76 = scmp.eq.s32.totalorder %s29, 0
    %p77 = por %p75, %p76
    %s79 = sadd.s32 %s78, 1
    %p82 = scmp.eq.s32.totalorder %s23, 1
    %p83 = scmp.ne.s32.totalorder %s78, %s80
    %p84 = scmp.eq.s32.totalorder %s23, 0
    %p85 = por %p83, %p84
    %p86 = scmp.ne.s32.totalorder %s78, %s80
    %p87 = scmp.eq.s32.totalorder %s28, 1
    %p88 = por %p86, %p87
    %p89 = scmp.ne.s32.totalorder %s80, %s81
    %p90 = scmp.eq.s32.totalorder %s28, 0
    %p91 = por %p89, %p90
    %p92 = scmp.ne.s32.totalorder %s80, %s81
    %p93 = scmp.eq.s32.totalorder %s29, 1
    %p94 = por %p92, %p93
    %p96 = scmp.ne.s32.totalorder %s81, %s95
    %p97 = scmp.eq.s32.totalorder %s29, 0
    %p98 = por %p96, %p97
    %s100 = sadd.s32 %s99, 1
    %p103 = scmp.eq.s32.totalorder %s23, 1
    %p104 = scmp.ne.s32.totalorder %s99, %s101
    %p105 = scmp.eq.s32.totalorder %s23, 0
    %p106 = por %p104, %p105
    %p107 = scmp.ne.s32.totalorder %s99, %s101
    %p108 = scmp.eq.s32.totalorder %s28, 1
    %p109 = por %p107, %p108
    %p110 = scmp.ne.s32.totalorder %s101, %s102
    %p111 = scmp.eq.s32.totalorder %s28, 0
    %p112 = por %p110, %p111
    %p113 = scmp.ne.s32.totalorder %s101, %s102
    %p114 = scmp.eq.s32.totalorder %s29, 1
    %p115 = por %p113, %p114
    %p117 = scmp.ne.s32.totalorder %s102, %s116
    %p118 = scmp.eq.s32.totalorder %s29, 0
    %p119 = por %p117, %p118
    %s121 = sadd.s32 %s120, 1
    %p124 = scmp.eq.s32.totalorder %s23, 1
    %p125 = scmp.ne.s32.totalorder %s120, %s122
    %p126 = scmp.eq.s32.totalorder %s23, 0
    %p127 = por %p125, %p126
    %p128 = scmp.ne.s32.totalorder %s120, %s122
    %p129 = scmp.eq.s32.totalorder %s28, 1
    %p130 = por %p128, %p129
    %p131 = scmp.ne.s32.totalorder %s122, %s123
    %p132 = scmp.eq.s32.totalorder %s28, 0
    %p133 = por %p131, %p132
    %p134 = scmp.ne.s32.totalorder %s122, %s123
    %p135 = scmp.eq.s32.totalorder %s29, 1
    %p136 = por %p134, %p135
    %p138 = scmp.ne.s32.totalorder %s123, %s137
    %p139 = scmp.eq.s32.totalorder %s29, 0
    %p140 = por %p138, %p139
    %s142 = sadd.s32 %s141, 1
    %p145 = scmp.eq.s32.totalorder %s23, 1
    %p146 = scmp.ne.s32.totalorder %s141, %s143
    %p147 = scmp.eq.s32.totalorder %s23, 0
    %p148 = por %p146, %p147
    %p149 = scmp.ne.s32.totalorder %s141, %s143
    %p150 = scmp.eq.s32.totalorder %s28, 1
    %p151 = por %p149, %p150
    %p152 = scmp.ne.s32.totalorder %s143, %s144
    %p153 = scmp.eq.s32.totalorder %s28, 0
    %p154 = por %p152, %p153
    %p155 = scmp.ne.s32.totalorder %s143, %s144
    %p156 = scmp.eq.s32.totalorder %s29, 1
    %p157 = por %p155, %p156
    %p159 = scmp.ne.s32.totalorder %s144, %s158
    %p160 = scmp.eq.s32.totalorder %s29, 0
    %p161 = por %p159, %p160
    %s163 = sadd.s32 %s162, 1
    %p166 = scmp.eq.s32.totalorder %s23, 1
    %p167 = scmp.ne.s32.totalorder %s162, %s164
    %p168 = scmp.eq.s32.totalorder %s23, 0
    %p169 = por %p167, %p168
    %p170 = scmp.ne.s32.totalorder %s162, %s164
    %p171 = scmp.eq.s32.totalorder %s28, 1
    %p172 = por %p170, %p171
    %p173 = scmp.ne.s32.totalorder %s164, %s165
    %p174 = scmp.eq.s32.totalorder %s28, 0
    %p175 = por %p173, %p174
    %p176 = scmp.ne.s32.totalorder %s164, %s165
    %p177 = scmp.eq.s32.totalorder %s29, 1
    %p178 = por %p176, %p177
    %p180 = scmp.ne.s32.totalorder %s165, %s179
    %p181 = scmp.eq.s32.totalorder %s29, 0
    %p182 = por %p180, %p181
    %s184 = sadd.s32 %s183, 1
    %p187 = scmp.eq.s32.totalorder %s23, 1
    %p188 = scmp.ne.s32.totalorder %s183, %s185
    %p189 = scmp.eq.s32.totalorder %s23, 0
    %p190 = por %p188, %p189
    %p191 = scmp.ne.s32.totalorder %s183, %s185
    %p192 = scmp.eq.s32.totalorder %s28, 1
    %p193 = por %p191, %p192
    %p194 = scmp.ne.s32.totalorder %s185, %s186
    %p195 = scmp.eq.s32.totalorder %s28, 0
    %p196 = por %p194, %p195
    %p197 = scmp.ne.s32.totalorder %s185, %s186
    %p198 = scmp.eq.s32.totalorder %s29, 1
    %p199 = por %p197, %p198
    %p201 = scmp.ne.s32.totalorder %s186, %s200
    %p202 = scmp.eq.s32.totalorder %s29, 0
    %p203 = por %p201, %p202
    %s205 = sadd.s32 %s204, 1
    %p208 = scmp.eq.s32.totalorder %s23, 1
    %p209 = scmp.ne.s32.totalorder %s204, %s206
    %p210 = scmp.eq.s32.totalorder %s23, 0
    %p211 = por %p209, %p210
    %p212 = scmp.ne.s32.totalorder %s204, %s206
    %p213 = scmp.eq.s32.totalorder %s28, 1
    %p214 = por %p212, %p213
    %p215 = scmp.ne.s32.totalorder %s206, %s207
    %p216 = scmp.eq.s32.totalorder %s28, 0
    %p217 = por %p215, %p216
    %p218 = scmp.ne.s32.totalorder %s206, %s207
    %p219 = scmp.eq.s32.totalorder %s29, 1
    %p220 = por %p218, %p219
    %p222 = scmp.ne.s32.totalorder %s207, %s221
    %p223 = scmp.eq.s32.totalorder %s29, 0
    %p224 = por %p222, %p223
    %s226 = sadd.s32 %s225, 1
    %p229 = scmp.eq.s32.totalorder %s23, 1
    %p230 = scmp.ne.s32.totalorder %s225, %s227
    %p231 = scmp.eq.s32.totalorder %s23, 0
    %p232 = por %p230, %p231
    %p233 = scmp.ne.s32.totalorder %s225, %s227
    %p234 = scmp.eq.s32.totalorder %s28, 1
    %p235 = por %p233, %p234
    %p236 = scmp.ne.s32.totalorder %s227, %s228
    %p237 = scmp.eq.s32.totalorder %s28, 0
    %p238 = por %p236, %p237
    %p239 = scmp.ne.s32.totalorder %s227, %s228
    %p240 = scmp.eq.s32.totalorder %s29, 1
    %p241 = por %p239, %p240
    %p243 = scmp.ne.s32.totalorder %s228, %s242
    %p244 = scmp.eq.s32.totalorder %s29, 0
    %p245 = por %p243, %p244
    %s247 = sadd.s32 %s246, 1
    %p250 = scmp.eq.s32.totalorder %s23, 1
    %p251 = scmp.ne.s32.totalorder %s246, %s248
    %p252 = scmp.eq.s32.totalorder %s23, 0
    %p253 = por %p251, %p252
    %p254 = scmp.ne.s32.totalorder %s246, %s248
    %p255 = scmp.eq.s32.totalorder %s28, 1
    %p256 = por %p254, %p255
    %p257 = scmp.ne.s32.totalorder %s248, %s249
    %p258 = scmp.eq.s32.totalorder %s28, 0
    %p259 = por %p257, %p258
    %p260 = scmp.ne.s32.totalorder %s248, %s249
    %p261 = scmp.eq.s32.totalorder %s29, 1
    %p262 = por %p260, %p261
    %p264 = scmp.ne.s32.totalorder %s249, %s263
    %p265 = scmp.eq.s32.totalorder %s29, 0
    %p266 = por %p264, %p265
    %s268 = sadd.s32 %s267, 1
    %p271 = scmp.eq.s32.totalorder %s23, 1
    %p272 = scmp.ne.s32.totalorder %s267, %s269
    %p273 = scmp.eq.s32.totalorder %s23, 0
    %p274 = por %p272, %p273
    %p275 = scmp.ne.s32.totalorder %s267, %s269
    %p276 = scmp.eq.s32.totalorder %s28, 1
    %p277 = por %p275, %p276
    %p278 = scmp.ne.s32.totalorder %s269, %s270
    %p279 = scmp.eq.s32.totalorder %s28, 0
    %p280 = por %p278, %p279
    %p281 = scmp.ne.s32.totalorder %s269, %s270
    %p282 = scmp.eq.s32.totalorder %s29, 1
    %p283 = por %p281, %p282
    %p285 = scmp.ne.s32.totalorder %s270, %s284
    %p286 = scmp.eq.s32.totalorder %s29, 0
    %p287 = por %p285, %p286
    %s289 = sadd.s32 %s288, 1
    %p292 = scmp.eq.s32.totalorder %s23, 1
    %p293 = scmp.ne.s32.totalorder %s288, %s290
    %p294 = scmp.eq.s32.totalorder %s23, 0
    %p295 = por %p293, %p294
    %p296 = scmp.ne.s32.totalorder %s288, %s290
    %p297 = scmp.eq.s32.totalorder %s28, 1
    %p298 = por %p296, %p297
    %p299 = scmp.ne.s32.totalorder %s290, %s291
    %p300 = scmp.eq.s32.totalorder %s28, 0
    %p301 = por %p299, %p300
    %p302 = scmp.ne.s32.totalorder %s290, %s291
    %p303 = scmp.eq.s32.totalorder %s29, 1
    %p304 = por %p302, %p303
    %p306 = scmp.ne.s32.totalorder %s291, %s305
    %p307 = scmp.eq.s32.totalorder %s29, 0
    %p308 = por %p306, %p307
    %s310 = sadd.s32 %s309, 1
    %p313 = scmp.eq.s32.totalorder %s23, 1
    %p314 = scmp.ne.s32.totalorder %s309, %s311
    %p315 = scmp.eq.s32.totalorder %s23, 0
    %p316 = por %p314, %p315
    %p317 = scmp.ne.s32.totalorder %s309, %s311
    %p318 = scmp.eq.s32.totalorder %s28, 1
    %p319 = por %p317, %p318
    %p320 = scmp.ne.s32.totalorder %s311, %s312
    %p321 = scmp.eq.s32.totalorder %s28, 0
    %p322 = por %p320, %p321
    %p323 = scmp.ne.s32.totalorder %s311, %s312
    %p324 = scmp.eq.s32.totalorder %s29, 1
    %p325 = por %p323, %p324
    %p327 = scmp.ne.s32.totalorder %s312, %s326
    %p328 = scmp.eq.s32.totalorder %s29, 0
    %p329 = por %p327, %p328
    %s331 = sadd.s32 %s330, 1
    %p334 = scmp.eq.s32.totalorder %s23, 1
    %p335 = scmp.ne.s32.totalorder %s330, %s332
    %p336 = scmp.eq.s32.totalorder %s23, 0
    %p337 = por %p335, %p336
    %p338 = scmp.ne.s32.totalorder %s330, %s332
    %p339 = scmp.eq.s32.totalorder %s28, 1
    %p340 = por %p338, %p339
    %p341 = scmp.ne.s32.totalorder %s332, %s333
    %p342 = scmp.eq.s32.totalorder %s28, 0
    %p343 = por %p341, %p342
    %p344 = scmp.ne.s32.totalorder %s332, %s333
    %p345 = scmp.eq.s32.totalorder %s29, 1
    %p346 = por %p344, %p345
    %p348 = scmp.ne.s32.totalorder %s333, %s347
    %p349 = scmp.eq.s32.totalorder %s29, 0
    %p350 = por %p348, %p349
    %s352 = sadd.s32 %s351, 1
    %p355 = scmp.eq.s32.totalorder %s23, 1
    %p356 = scmp.ne.s32.totalorder %s351, %s353
    %p357 = scmp.eq.s32.totalorder %s23, 0
    %p358 = por %p356, %p357
    %p359 = scmp.ne.s32.totalorder %s351, %s353
    %p360 = scmp.eq.s32.totalorder %s28, 1
    %p361 = por %p359, %p360
    %p362 = scmp.ne.s32.totalorder %s353, %s354
    %p363 = scmp.eq.s32.totalorder %s28, 0
    %p364 = por %p362, %p363
    %p365 = scmp.ne.s32.totalorder %s353, %s354
    %p366 = scmp.eq.s32.totalorder %s29, 1
    %p367 = por %p365, %p366
    %p369 = scmp.ne.s32.totalorder %s354, %s368
    %p370 = scmp.eq.s32.totalorder %s29, 0
    %p371 = por %p369, %p370
    %s373 = sadd.s32 %s372, 1
    %p376 = scmp.eq.s32.totalorder %s23, 1
    %p377 = scmp.ne.s32.totalorder %s372, %s374
    %p378 = scmp.eq.s32.totalorder %s23, 0
    %p379 = por %p377, %p378
    %p380 = scmp.ne.s32.totalorder %s372, %s374
    %p381 = scmp.eq.s32.totalorder %s28, 1
    %p382 = por %p380, %p381
    %p383 = scmp.ne.s32.totalorder %s374, %s375
    %p384 = scmp.eq.s32.totalorder %s28, 0
    %p385 = por %p383, %p384
    %p386 = scmp.ne.s32.totalorder %s374, %s375
    %p387 = scmp.eq.s32.totalorder %s29, 1
    %p388 = por %p386, %p387
    %p390 = scmp.ne.s32.totalorder %s375, %s389
    %p391 = scmp.eq.s32.totalorder %s29, 0
    %p392 = por %p390, %p391
    %s393 = ssub.s32 %s23, %s30
    %p394 = scmp.eq.s32.totalorder %s393, 0
    %s396 = sadd.s32 %s395, 1
    %s397 = scalar_select %p394, %s395, %s396
    %p400 = pneg %p394
    %p401 = scmp.eq.s32.totalorder %s23, 1
    %p402 = por %p400, %p401
    %p403 = scmp.ne.s32.totalorder %s395, %s398
    %p404 = scmp.eq.s32.totalorder %s23, 0
    %p405 = por %p403, %p404
    %p406 = scmp.ne.s32.totalorder %s395, %s398
    %p407 = scmp.eq.s32.totalorder %s28, 1
    %p408 = por %p406, %p407
    %p409 = scmp.ne.s32.totalorder %s398, %s399
    %p410 = scmp.eq.s32.totalorder %s28, 0
    %p411 = por %p409, %p410
    %p412 = scmp.ne.s32.totalorder %s398, %s399
    %p413 = scmp.eq.s32.totalorder %s29, 1
    %p414 = por %p412, %p413
    %p416 = scmp.ne.s32.totalorder %s399, %s415
    %p417 = scmp.eq.s32.totalorder %s29, 0
    %p418 = por %p416, %p417
    %p419 = scmp.le.s32.totalorder 1, %s23
    %p420 = scmp.lt.s32.totalorder %s23, 3
    %p421 = pnand %p419, %p420
    %p422 = pneg %p421
    // Predicated region
    $region9: #{cnn_head_forward.5} parent=5 // pred_check
      _
    $region10: #{cnn_head_forward.5} parent=5 // pred_check_branch
      %424 = sbr.rel (%p421) target = $region12
    $region11: #{cnn_head_forward.5} parent=5 // pred_region
      %s425 = ssub.s32 %s23, 1
      // Predicated region
      $region13: #{cnn_head_forward.5} parent=11 // pred_check
        %p426 = pneg %p70
      $region14: #{cnn_head_forward.5} parent=11 // pred_check_branch
        %428 = sbr.rel (%p426) target = $region16
      $region15: #{cnn_head_forward.5} parent=11 // pred_region
        _
      $region16: #{cnn_head_forward.5} parent=11 // pred_fallthru
        _
      // Predicated region
      $region17: #{cnn_head_forward.5} parent=11 // pred_check
        %p429 = pneg %p91
      $region18: #{cnn_head_forward.5} parent=11 // pred_check_branch
        %431 = sbr.rel (%p429) target = $region20
      $region19: #{cnn_head_forward.5} parent=11 // pred_region
        _
      $region20: #{cnn_head_forward.5} parent=11 // pred_fallthru
        _
      // Predicated region
      $region21: #{cnn_head_forward.5} parent=11 // pred_check
        %p432 = pneg %p112
      $region22: #{cnn_head_forward.5} parent=11 // pred_check_branch
        %434 = sbr.rel (%p432) target = $region24
      $region23: #{cnn_head_forward.5} parent=11 // pred_region
        _
      $region24: #{cnn_head_forward.5} parent=11 // pred_fallthru
        _
      // Predicated region
      $region25: #{cnn_head_forward.5} parent=11 // pred_check
        %p435 = pneg %p133
      $region26: #{cnn_head_forward.5} parent=11 // pred_check_branch
        %437 = sbr.rel (%p435) target = $region28
      $region27: #{cnn_head_forward.5} parent=11 // pred_region
        _
      $region28: #{cnn_head_forward.5} parent=11 // pred_fallthru
        _
      // Predicated region
      $region29: #{cnn_head_forward.5} parent=11 // pred_check
        %p438 = pneg %p154
      $region30: #{cnn_head_forward.5} parent=11 // pred_check_branch
        %440 = sbr.rel (%p438) target = $region32
      $region31: #{cnn_head_forward.5} parent=11 // pred_region
        _
      $region32: #{cnn_head_forward.5} parent=11 // pred_fallthru
        _
      // Predicated region
      $region33: #{cnn_head_forward.5} parent=11 // pred_check
        %p441 = pneg %p175
      $region34: #{cnn_head_forward.5} parent=11 // pred_check_branch
        %443 = sbr.rel (%p441) target = $region36
      $region35: #{cnn_head_forward.5} parent=11 // pred_region
        _
      $region36: #{cnn_head_forward.5} parent=11 // pred_fallthru
        _
      // Predicated region
      $region37: #{cnn_head_forward.5} parent=11 // pred_check
        %p444 = pneg %p196
      $region38: #{cnn_head_forward.5} parent=11 // pred_check_branch
        %446 = sbr.rel (%p444) target = $region40
      $region39: #{cnn_head_forward.5} parent=11 // pred_region
        _
      $region40: #{cnn_head_forward.5} parent=11 // pred_fallthru
        _
      // Predicated region
      $region41: #{cnn_head_forward.5} parent=11 // pred_check
        %p447 = pneg %p217
      $region42: #{cnn_head_forward.5} parent=11 // pred_check_branch
        %449 = sbr.rel (%p447) target = $region44
      $region43: #{cnn_head_forward.5} parent=11 // pred_region
        _
      $region44: #{cnn_head_forward.5} parent=11 // pred_fallthru
        _
      // Predicated region
      $region45: #{cnn_head_forward.5} parent=11 // pred_check
        %p450 = pneg %p238
      $region46: #{cnn_head_forward.5} parent=11 // pred_check_branch
        %452 = sbr.rel (%p450) target = $region48
      $region47: #{cnn_head_forward.5} parent=11 // pred_region
        _
      $region48: #{cnn_head_forward.5} parent=11 // pred_fallthru
        _
      // Predicated region
      $region49: #{cnn_head_forward.5} parent=11 // pred_check
        %p453 = pneg %p259
      $region50: #{cnn_head_forward.5} parent=11 // pred_check_branch
        %455 = sbr.rel (%p453) target = $region52
      $region51: #{cnn_head_forward.5} parent=11 // pred_region
        _
      $region52: #{cnn_head_forward.5} parent=11 // pred_fallthru
        _
      // Predicated region
      $region53: #{cnn_head_forward.5} parent=11 // pred_check
        %p456 = pneg %p280
      $region54: #{cnn_head_forward.5} parent=11 // pred_check_branch
        %458 = sbr.rel (%p456) target = $region56
      $region55: #{cnn_head_forward.5} parent=11 // pred_region
        _
      $region56: #{cnn_head_forward.5} parent=11 // pred_fallthru
        _
      // Predicated region
      $region57: #{cnn_head_forward.5} parent=11 // pred_check
        %p459 = pneg %p301
      $region58: #{cnn_head_forward.5} parent=11 // pred_check_branch
        %461 = sbr.rel (%p459) target = $region60
      $region59: #{cnn_head_forward.5} parent=11 // pred_region
        _
      $region60: #{cnn_head_forward.5} parent=11 // pred_fallthru
        _
      // Predicated region
      $region61: #{cnn_head_forward.5} parent=11 // pred_check
        %p462 = pneg %p322
      $region62: #{cnn_head_forward.5} parent=11 // pred_check_branch
        %464 = sbr.rel (%p462) target = $region64
      $region63: #{cnn_head_forward.5} parent=11 // pred_region
        _
      $region64: #{cnn_head_forward.5} parent=11 // pred_fallthru
        _
      // Predicated region
      $region65: #{cnn_head_forward.5} parent=11 // pred_check
        %p465 = pneg %p343
      $region66: #{cnn_head_forward.5} parent=11 // pred_check_branch
        %467 = sbr.rel (%p465) target = $region68
      $region67: #{cnn_head_forward.5} parent=11 // pred_region
        _
      $region68: #{cnn_head_forward.5} parent=11 // pred_fallthru
        _
      // Predicated region
      $region69: #{cnn_head_forward.5} parent=11 // pred_check
        %p468 = pneg %p364
      $region70: #{cnn_head_forward.5} parent=11 // pred_check_branch
        %470 = sbr.rel (%p468) target = $region72
      $region71: #{cnn_head_forward.5} parent=11 // pred_region
        _
      $region72: #{cnn_head_forward.5} parent=11 // pred_fallthru
        _
      // Predicated region
      $region73: #{cnn_head_forward.5} parent=11 // pred_check
        %p471 = pneg %p385
      $region74: #{cnn_head_forward.5} parent=11 // pred_check_branch
        %473 = sbr.rel (%p471) target = $region76
      $region75: #{cnn_head_forward.5} parent=11 // pred_region
        _
      $region76: #{cnn_head_forward.5} parent=11 // pred_fallthru
        _
    $region12: #{cnn_head_forward.5} parent=5 // pred_fallthru
      _
    %p474 = scmp.lt.s32.totalorder %s23, 2
    // Predicated region
    $region77: #{cnn_head_forward.5} parent=5 // pred_check
      %p475 = pneg %p474
    $region78: #{cnn_head_forward.5} parent=5 // pred_check_branch
      %477 = sbr.rel (%p475) target = $region80
    $region79: #{cnn_head_forward.5} parent=5 // pred_region
      // Predicated region
      $region81: #{cnn_head_forward.5} parent=79 // pred_check
        %p478 = pneg %p43
      $region82: #{cnn_head_forward.5} parent=79 // pred_check_branch
        %480 = sbr.rel (%p478) target = $region84
      $region83: #{cnn_head_forward.5} parent=79 // pred_region
        %p481 = scmp.lt.s32.totalorder %s23, 1
        %s482 = scalar_select %p481, %s23, 1
        %s483 = smul.addr %s482, 11
        %s484 = smul.addr %s483, 8
        %s485 = scalar_lea.vmem %s0, %s484
      $region84: #{cnn_head_forward.5} parent=79 // pred_fallthru
        _
    $region80: #{cnn_head_forward.5} parent=5 // pred_fallthru
      _
    %p486 = scmp.le.s32.totalorder 1, %s23
    %p487 = scmp.lt.s32.totalorder %s23, 3
    %p488 = pnand %p486, %p487
    %p489 = pneg %p488
    // Predicated region
    $region85: #{cnn_head_forward.5} parent=5 // pred_check
      _
    $region86: #{cnn_head_forward.5} parent=5 // pred_check_branch
      %491 = sbr.rel (%p488) target = $region88
    $region87: #{cnn_head_forward.5} parent=5 // pred_region
      %s492 = ssub.s32 %s23, 1
      %p493 = scmp.lt.s32.totalorder %s28, 1
      %s494 = scalar_select %p493, %s28, 1
      %s495 = smul.addr %s494, 11
      %s496 = smul.addr %s495, 8
      %s497 = scalar_lea.vmem %s0, %s496
      %p498 = pneg %p49
      %p499 = pneg %p46
      %p500 = pneg %p70
      %p501 = pneg %p67
      %p502 = pneg %p91
      %p503 = pneg %p88
      %p504 = pneg %p112
      %p505 = pneg %p109
      %p506 = pneg %p133
      %p507 = pneg %p130
      %p508 = pneg %p154
      %p509 = pneg %p151
      %p510 = pneg %p175
      %p511 = pneg %p172
      %p512 = pneg %p196
      %p513 = pneg %p193
      %p514 = pneg %p217
      %p515 = pneg %p214
      %p516 = pneg %p238
      %p517 = pneg %p235
      %p518 = pneg %p259
      %p519 = pneg %p256
      %p520 = pneg %p280
      %p521 = pneg %p277
      %p522 = pneg %p301
      %p523 = pneg %p298
      %p524 = pneg %p322
      %p525 = pneg %p319
      %p526 = pneg %p343
      %p527 = pneg %p340
      %p528 = pneg %p364
      %p529 = pneg %p361
      %p530 = pneg %p385
      %p531 = pneg %p382
      %p532 = pneg %p411
      %p533 = pneg %p408
      %p534 = scmp.lt.s32.totalorder %s28, 1
      %s535 = scalar_select %p534, %s28, 1
      %s536 = smul.addr %s535, 4
      %s537 = scalar_lea.vmem %s17, %s536
      %p538 = scmp.lt.s32.totalorder %s28, 1
      %s539 = scalar_select %p538, %s28, 1
      %s540 = smul.addr %s539, 11
      %s541 = smul.addr %s540, 8
      %s542 = scalar_lea.vmem %s0, %s541
      %p543 = scmp.lt.s32.totalorder %s28, 1
      %s544 = scalar_select %p543, %s28, 1
      %s545 = smul.addr %s544, 4
      %s546 = scalar_lea.vmem %s17, %s545
      %v548 = vld [vmem:[%s542] sm:$0x1f]
      %v549 = vld [vmem:[%s542 + $0x8] sm:$0x1f]
      %v550 = vld [vmem:[%s542 + $0x10] sm:$0x1f]
      %v551 = vld [vmem:[%s542 + $0x18] sm:$0x1f]
      %v552 = vld [vmem:[%s542 + $0x20] sm:$0x1f]
      %v553 = vld [vmem:[%s542 + $0x28] sm:$0x1f]
      %v554 = vld [vmem:[%s542 + $0x30] sm:$0x1f]
      %v555 = vld [vmem:[%s542 + $0x38] sm:$0x1f]
      %v556 = vld [vmem:[%s542 + $0x40] sm:$0x1f]
      %v557 = vld [vmem:[%s542 + $0x48] sm:$0x1f]
      %v558 = vld [vmem:[%s542 + $0x50] sm:$0x1f]
      %v559 = vpack.c.bf16 %v548, %v548
      %v560 = vpack.c.bf16 %v549, %v549
      %v561 = vpack.c.bf16 %v550, %v550
      %v562 = vpack.c.bf16 %v551, %v551
      %v563 = vpack.c.bf16 %v552, %v552
      %v564 = vpack.c.bf16 %v553, %v553
      %v565 = vpack.c.bf16 %v554, %v554
      %v566 = vpack.c.bf16 %v555, %v555
      %v567 = vpack.c.bf16 %v556, %v556
      %v568 = vpack.c.bf16 %v557, %v557
      %v569 = vpack.c.bf16 %v558, %v558
      %v570 = vld [vmem:[%s1] sm:$0xff]
      %v571 = vld [vmem:[%s1 + $0x8] sm:$0xff]
      %v572 = vld [vmem:[%s1 + $0x10] sm:$0xff]
      %v573 = vld [vmem:[%s1 + $0x18] sm:$0xff]
      %v574 = vld [vmem:[%s1 + $0x20] sm:$0xff]
      %v575 = vld [vmem:[%s1 + $0x28] sm:$0xff]
      %v576 = vld [vmem:[%s1 + $0x30] sm:$0xff]
      %v577 = vld [vmem:[%s1 + $0x38] sm:$0xff]
      %v578 = vld [vmem:[%s1 + $0x40] sm:$0xff]
      %v579 = vld [vmem:[%s1 + $0x48] sm:$0xff]
      %v580 = vld [vmem:[%s1 + $0x50] sm:$0xff]
      %v581 = vld [vmem:[%s1 + $0x58] sm:$0xff]
      %v582 = vld [vmem:[%s1 + $0x60] sm:$0xff]
      %v583 = vld [vmem:[%s1 + $0x68] sm:$0xff]
      %v584 = vld [vmem:[%s1 + $0x70] sm:$0xff]
      %v585 = vld [vmem:[%s1 + $0x78] sm:$0xff]
      %v586 = vld [vmem:[%s1 + $0x80] sm:$0xff]
      %v587 = vld [vmem:[%s1 + $0x88] sm:$0xff]
      %v588 = vld [vmem:[%s1 + $0x90] sm:$0xff]
      %v589 = vld [vmem:[%s1 + $0x98] sm:$0xff]
      %v590 = vld [vmem:[%s1 + $0xa0] sm:$0xff]
      %v591 = vld [vmem:[%s1 + $0xa8] sm:$0xff]
      %v592 = vld [vmem:[%s1 + $0xb0] sm:$0xff]
      %v593 = vld [vmem:[%s1 + $0xb8] sm:$0xff]
      %v594 = vld [vmem:[%s1 + $0xc0] sm:$0xff]
      %v595 = vld [vmem:[%s1 + $0xc8] sm:$0xff]
      %v596 = vld [vmem:[%s1 + $0xd0] sm:$0xff]
      %v597 = vld [vmem:[%s1 + $0xd8] sm:$0xff]
      %v598 = vld [vmem:[%s1 + $0xe0] sm:$0xff]
      %v599 = vld [vmem:[%s1 + $0xe8] sm:$0xff]
      %v600 = vld [vmem:[%s1 + $0xf0] sm:$0xff]
      %v601 = vld [vmem:[%s1 + $0xf8] sm:$0xff]
      %v602 = vld [vmem:[%s1 + $0x100] sm:$0xff]
      %v603 = vld [vmem:[%s1 + $0x108] sm:$0xff]
      %v604 = vld [vmem:[%s1 + $0x110] sm:$0xff]
      %v605 = vld [vmem:[%s1 + $0x118] sm:$0xff]
      %v606 = vld [vmem:[%s1 + $0x120] sm:$0xff]
      %v607 = vld [vmem:[%s1 + $0x128] sm:$0xff]
      %v608 = vld [vmem:[%s1 + $0x130] sm:$0xff]
      %v609 = vld [vmem:[%s1 + $0x138] sm:$0xff]
      %v610 = vld [vmem:[%s1 + $0x140] sm:$0xff]
      %v611 = vld [vmem:[%s1 + $0x148] sm:$0xff]
      %v612 = vld [vmem:[%s1 + $0x150] sm:$0xff]
      %v613 = vld [vmem:[%s1 + $0x158] sm:$0xff]
      %v614 = vld [vmem:[%s1 + $0x160] sm:$0xff]
      %v615 = vld [vmem:[%s1 + $0x168] sm:$0xff]
      %v616 = vld [vmem:[%s1 + $0x170] sm:$0xff]
      %v617 = vld [vmem:[%s1 + $0x178] sm:$0xff]
      %v618 = vld [vmem:[%s1 + $0x180] sm:$0xff]
      %v619 = vld [vmem:[%s1 + $0x188] sm:$0xff]
      %v620 = vld [vmem:[%s1 + $0x190] sm:$0xff]
      %v621 = vld [vmem:[%s1 + $0x198] sm:$0xff]
      %v622 = vld [vmem:[%s1 + $0x1a0] sm:$0xff]
      %v623 = vld [vmem:[%s1 + $0x1a8] sm:$0xff]
      %v624 = vld [vmem:[%s1 + $0x1b0] sm:$0xff]
      %v625 = vld [vmem:[%s1 + $0x1b8] sm:$0xff]
      %v626 = vld [vmem:[%s1 + $0x1c0] sm:$0xff]
      %v627 = vld [vmem:[%s1 + $0x1c8] sm:$0xff]
      %v628 = vld [vmem:[%s1 + $0x1d0] sm:$0xff]
      %v629 = vld [vmem:[%s1 + $0x1d8] sm:$0xff]
      %v630 = vld [vmem:[%s1 + $0x1e0] sm:$0xff]
      %v631 = vld [vmem:[%s1 + $0x1e8] sm:$0xff]
      %v632 = vld [vmem:[%s1 + $0x1f0] sm:$0xff]
      %v633 = vld [vmem:[%s1 + $0x1f8] sm:$0xff]
      %v634 = vld [vmem:[%s1 + $0x200] sm:$0xff]
      %v635 = vld [vmem:[%s1 + $0x208] sm:$0xff]
      %v636 = vld [vmem:[%s1 + $0x210] sm:$0xff]
      %v637 = vld [vmem:[%s1 + $0x218] sm:$0xff]
      %v638 = vld [vmem:[%s1 + $0x220] sm:$0xff]
      %v639 = vld [vmem:[%s1 + $0x228] sm:$0xff]
      %v640 = vld [vmem:[%s1 + $0x230] sm:$0xff]
      %v641 = vld [vmem:[%s1 + $0x238] sm:$0xff]
      %v642 = vld [vmem:[%s1 + $0x240] sm:$0xff]
      %v643 = vld [vmem:[%s1 + $0x248] sm:$0xff]
      %v644 = vld [vmem:[%s1 + $0x250] sm:$0xff]
      %v645 = vld [vmem:[%s1 + $0x258] sm:$0xff]
      %v646 = vld [vmem:[%s1 + $0x260] sm:$0xff]
      %v647 = vld [vmem:[%s1 + $0x268] sm:$0xff]
      %v648 = vld [vmem:[%s1 + $0x270] sm:$0xff]
      %v649 = vld [vmem:[%s1 + $0x278] sm:$0xff]
      %v650 = vld [vmem:[%s1 + $0x280] sm:$0xff]
      %v651 = vld [vmem:[%s1 + $0x288] sm:$0xff]
      %v652 = vld [vmem:[%s1 + $0x290] sm:$0xff]
      %v653 = vld [vmem:[%s1 + $0x298] sm:$0xff]
      %v654 = vld [vmem:[%s1 + $0x2a0] sm:$0xff]
      %v655 = vld [vmem:[%s1 + $0x2a8] sm:$0xff]
      %v656 = vld [vmem:[%s1 + $0x2b0] sm:$0xff]
      %v657 = vld [vmem:[%s1 + $0x2b8] sm:$0xff]
      %v658 = vld [vmem:[%s1 + $0x2c0] sm:$0xff]
      %v659 = vld [vmem:[%s1 + $0x2c8] sm:$0xff]
      %v660 = vld [vmem:[%s1 + $0x2d0] sm:$0xff]
      %v661 = vld [vmem:[%s1 + $0x2d8] sm:$0xff]
      %v662 = vld [vmem:[%s1 + $0x2e0] sm:$0xff]
      %v663 = vld [vmem:[%s1 + $0x2e8] sm:$0xff]
      %v664 = vld [vmem:[%s1 + $0x2f0] sm:$0xff]
      %v665 = vld [vmem:[%s1 + $0x2f8] sm:$0xff]
      %v666 = vld [vmem:[%s1 + $0x300] sm:$0xff]
      %v667 = vld [vmem:[%s1 + $0x308] sm:$0xff]
      %v668 = vld [vmem:[%s1 + $0x310] sm:$0xff]
      %v669 = vld [vmem:[%s1 + $0x318] sm:$0xff]
      %v670 = vld [vmem:[%s1 + $0x320] sm:$0xff]
      %v671 = vld [vmem:[%s1 + $0x328] sm:$0xff]
      %v672 = vld [vmem:[%s1 + $0x330] sm:$0xff]
      %v673 = vld [vmem:[%s1 + $0x338] sm:$0xff]
      %v674 = vld [vmem:[%s1 + $0x340] sm:$0xff]
      %v675 = vld [vmem:[%s1 + $0x348] sm:$0xff]
      %v676 = vld [vmem:[%s1 + $0x350] sm:$0xff]
      %v677 = vld [vmem:[%s1 + $0x358] sm:$0xff]
      %v678 = vld [vmem:[%s1 + $0x360] sm:$0xff]
      %v679 = vld [vmem:[%s1 + $0x368] sm:$0xff]
      %v680 = vld [vmem:[%s1 + $0x370] sm:$0xff]
      %v681 = vld [vmem:[%s1 + $0x378] sm:$0xff]
      %v682 = vld [vmem:[%s1 + $0x380] sm:$0xff]
      %v683 = vld [vmem:[%s1 + $0x388] sm:$0xff]
      %v684 = vld [vmem:[%s1 + $0x390] sm:$0xff]
      %v685 = vld [vmem:[%s1 + $0x398] sm:$0xff]
      %v686 = vld [vmem:[%s1 + $0x3a0] sm:$0xff]
      %v687 = vld [vmem:[%s1 + $0x3a8] sm:$0xff]
      %v688 = vld [vmem:[%s1 + $0x3b0] sm:$0xff]
      %v689 = vld [vmem:[%s1 + $0x3b8] sm:$0xff]
      %v690 = vld [vmem:[%s1 + $0x3c0] sm:$0xff]
      %v691 = vld [vmem:[%s1 + $0x3c8] sm:$0xff]
      %v692 = vld [vmem:[%s1 + $0x3d0] sm:$0xff]
      %v693 = vld [vmem:[%s1 + $0x3d8] sm:$0xff]
      %v694 = vld [vmem:[%s1 + $0x3e0] sm:$0xff]
      %v695 = vld [vmem:[%s1 + $0x3e8] sm:$0xff]
      %v696 = vld [vmem:[%s1 + $0x3f0] sm:$0xff]
      %v697 = vld [vmem:[%s1 + $0x3f8] sm:$0xff]
      %v698 = vld [vmem:[%s1 + $0x400] sm:$0xff]
      %v699 = vld [vmem:[%s1 + $0x408] sm:$0xff]
      %v700 = vld [vmem:[%s1 + $0x410] sm:$0xff]
      %v701 = vld [vmem:[%s1 + $0x418] sm:$0xff]
      %v702 = vld [vmem:[%s1 + $0x420] sm:$0xff]
      %v703 = vld [vmem:[%s1 + $0x428] sm:$0xff]
      %v704 = vld [vmem:[%s1 + $0x430] sm:$0xff]
      %v705 = vld [vmem:[%s1 + $0x438] sm:$0xff]
      %v706 = vld [vmem:[%s1 + $0x440] sm:$0xff]
      %v707 = vld [vmem:[%s1 + $0x448] sm:$0xff]
      %v708 = vld [vmem:[%s1 + $0x450] sm:$0xff]
      %v709 = vld [vmem:[%s1 + $0x458] sm:$0xff]
      %v710 = vld [vmem:[%s1 + $0x460] sm:$0xff]
      %v711 = vld [vmem:[%s1 + $0x468] sm:$0xff]
      %v712 = vld [vmem:[%s1 + $0x470] sm:$0xff]
      %v713 = vld [vmem:[%s1 + $0x478] sm:$0xff]
      %v714 = vld [vmem:[%s1 + $0x480] sm:$0xff]
      %v715 = vld [vmem:[%s1 + $0x488] sm:$0xff]
      %v716 = vld [vmem:[%s1 + $0x490] sm:$0xff]
      %v717 = vld [vmem:[%s1 + $0x498] sm:$0xff]
      %v718 = vld [vmem:[%s1 + $0x4a0] sm:$0xff]
      %v719 = vld [vmem:[%s1 + $0x4a8] sm:$0xff]
      %v720 = vld [vmem:[%s1 + $0x4b0] sm:$0xff]
      %v721 = vld [vmem:[%s1 + $0x4b8] sm:$0xff]
      %v722 = vld [vmem:[%s1 + $0x4c0] sm:$0xff]
      %v723 = vld [vmem:[%s1 + $0x4c8] sm:$0xff]
      %v724 = vld [vmem:[%s1 + $0x4d0] sm:$0xff]
      %v725 = vld [vmem:[%s1 + $0x4d8] sm:$0xff]
      %v726 = vld [vmem:[%s1 + $0x4e0] sm:$0xff]
      %v727 = vld [vmem:[%s1 + $0x4e8] sm:$0xff]
      %v728 = vld [vmem:[%s1 + $0x4f0] sm:$0xff]
      %v729 = vld [vmem:[%s1 + $0x4f8] sm:$0xff]
      %v730 = vld [vmem:[%s1 + $0x500] sm:$0xff]
      %v731 = vld [vmem:[%s1 + $0x508] sm:$0xff]
      %v732 = vpack.c.bf16 %v571, %v570
      %v733 = vpack.c.bf16 %v573, %v572
      %v734 = vpack.c.bf16 %v575, %v574
      %v735 = vpack.c.bf16 %v577, %v576
      %v736 = vpack.c.bf16 %v579, %v578
      %v737 = vpack.c.bf16 %v581, %v580
      %v738 = vpack.c.bf16 %v583, %v582
      %v739 = vpack.c.bf16 %v585, %v584
      %v740 = vpack.c.bf16 %v587, %v586
      %v741 = vpack.c.bf16 %v589, %v588
      %v742 = vpack.c.bf16 %v591, %v590
      %v743 = vpack.c.bf16 %v593, %v592
      %v744 = vpack.c.bf16 %v595, %v594
      %v745 = vpack.c.bf16 %v597, %v596
      %v746 = vpack.c.bf16 %v599, %v598
      %v747 = vpack.c.bf16 %v601, %v600
      %v748 = vpack.c.bf16 %v603, %v602
      %v749 = vpack.c.bf16 %v605, %v604
      %v750 = vpack.c.bf16 %v607, %v606
      %v751 = vpack.c.bf16 %v609, %v608
      %v752 = vpack.c.bf16 %v611, %v610
      %v753 = vpack.c.bf16 %v613, %v612
      %v754 = vpack.c.bf16 %v615, %v614
      %v755 = vpack.c.bf16 %v617, %v616
      %v756 = vpack.c.bf16 %v619, %v618
      %v757 = vpack.c.bf16 %v621, %v620
      %v758 = vpack.c.bf16 %v623, %v622
      %v759 = vpack.c.bf16 %v625, %v624
      %v760 = vpack.c.bf16 %v627, %v626
      %v761 = vpack.c.bf16 %v629, %v628
      %v762 = vpack.c.bf16 %v631, %v630
      %v763 = vpack.c.bf16 %v633, %v632
      %v764 = vpack.c.bf16 %v635, %v634
      %v765 = vpack.c.bf16 %v637, %v636
      %v766 = vpack.c.bf16 %v639, %v638
      %v767 = vpack.c.bf16 %v641, %v640
      %v768 = vpack.c.bf16 %v643, %v642
      %v769 = vpack.c.bf16 %v645, %v644
      %v770 = vpack.c.bf16 %v647, %v646
      %v771 = vpack.c.bf16 %v649, %v648
      %v772 = vpack.c.bf16 %v651, %v650
      %v773 = vpack.c.bf16 %v653, %v652
      %v774 = vpack.c.bf16 %v655, %v654
      %v775 = vpack.c.bf16 %v657, %v656
      %v776 = vpack.c.bf16 %v659, %v658
      %v777 = vpack.c.bf16 %v661, %v660
      %v778 = vpack.c.bf16 %v663, %v662
      %v779 = vpack.c.bf16 %v665, %v664
      %v780 = vpack.c.bf16 %v667, %v666
      %v781 = vpack.c.bf16 %v669, %v668
      %v782 = vpack.c.bf16 %v671, %v670
      %v783 = vpack.c.bf16 %v673, %v672
      %v784 = vpack.c.bf16 %v675, %v674
      %v785 = vpack.c.bf16 %v677, %v676
      %v786 = vpack.c.bf16 %v679, %v678
      %v787 = vpack.c.bf16 %v681, %v680
      %v788 = vpack.c.bf16 %v683, %v682
      %v789 = vpack.c.bf16 %v685, %v684
      %v790 = vpack.c.bf16 %v687, %v686
      %v791 = vpack.c.bf16 %v689, %v688
      %v792 = vpack.c.bf16 %v691, %v690
      %v793 = vpack.c.bf16 %v693, %v692
      %v794 = vpack.c.bf16 %v695, %v694
      %v795 = vpack.c.bf16 %v697, %v696
      %v796 = vpack.c.bf16 %v699, %v698
      %v797 = vpack.c.bf16 %v701, %v700
      %v798 = vpack.c.bf16 %v703, %v702
      %v799 = vpack.c.bf16 %v705, %v704
      %v800 = vpack.c.bf16 %v707, %v706
      %v801 = vpack.c.bf16 %v709, %v708
      %v802 = vpack.c.bf16 %v711, %v710
      %v803 = vpack.c.bf16 %v713, %v712
      %v804 = vpack.c.bf16 %v715, %v714
      %v805 = vpack.c.bf16 %v717, %v716
      %v806 = vpack.c.bf16 %v719, %v718
      %v807 = vpack.c.bf16 %v721, %v720
      %v808 = vpack.c.bf16 %v723, %v722
      %v809 = vpack.c.bf16 %v725, %v724
      %v810 = vpack.c.bf16 %v727, %v726
      %v811 = vpack.c.bf16 %v729, %v728
      %v812 = vpack.c.bf16 %v731, %v730
      %v813 = vld [vmem:[%s2] sm:$0x1f]
      %vm814 = vcmask 130048
      %v816 = vsel %vm814, %v569, 0
      %818 = vmatprep.subr.bf16.mxu0 0
      %819 = vmatpush1.bf16.msra.mxu0 %v732
      %820 = vmatprep.subr.bf16.mxu0 0
      %821 = vmatpush1.bf16.msra.mxu0 %v733
      %822 = vmatprep.subr.bf16.mxu0 0
      %823 = vmatpush1.bf16.msra.mxu0 %v734
      %824 = vmatprep.subr.bf16.mxu0 0
      %825 = vmatpush1.bf16.msra.mxu0 %v735
      %826 = vmatprep.subr.bf16.mxu0 0
      %827 = vmatpush1.bf16.msra.mxu0 %v736
      %828 = vmatprep.subr.bf16.mxu0 0
      %829 = vmatpush1.bf16.msra.mxu0 %v737
      %830 = vmatprep.subr.bf16.mxu0 0
      %831 = vmatpush1.bf16.msra.mxu0 %v738
      %832 = vmatprep.subr.bf16.mxu0 0
      %833 = vmatpush1.bf16.msra.mxu0 %v739
      %834 = vmatprep.subr.bf16.mxu0 0
      %835 = vmatpush1.bf16.msra.mxu0 %v740
      %836 = vmatprep.subr.bf16.mxu0 0
      %837 = vmatpush1.bf16.msra.mxu0 %v741
      %838 = vmatprep.subr.bf16.mxu0 0
      %839 = vmatpush1.bf16.msra.mxu0 %v742
      %840 = vmatprep.subr.bf16.mxu0 0
      %841 = vmatpush1.bf16.msra.mxu0 %v743
      %842 = vmatprep.subr.bf16.mxu0 0
      %843 = vmatpush1.bf16.msra.mxu0 %v744
      %844 = vmatprep.subr.bf16.mxu0 0
      %845 = vmatpush1.bf16.msra.mxu0 %v745
      %846 = vmatprep.subr.bf16.mxu0 0
      %847 = vmatpush1.bf16.msra.mxu0 %v746
      %848 = vmatprep.subr.bf16.mxu0 0
      %849 = vmatpush1.bf16.msra.mxu0 %v747
      %850 = vmatprep.mubr.bf16.mxu0 %v560
      %851 = vmatmul.mubr.bf16.gmra.mrb[0].mxu0 %v559
      %v852 = vpop.f32.mrb[0].mxu0
      %v853 = vadd.f32 %v813, %v852
      %v854 = vpop.f32.mrb[0].mxu0
      %v855 = vpop.f32.mrb[0].mxu0
      %v856 = vpop.f32.mrb[0].mxu0
      %857 = vdwg.mxu0
      %858 = vmatprep.subr.bf16.mxu0 0
      %859 = vmatpush1.bf16.msra.mxu0 %v748
      %860 = vmatprep.subr.bf16.mxu0 0
      %861 = vmatpush1.bf16.msra.mxu0 %v749
      %862 = vmatprep.subr.bf16.mxu0 0
      %863 = vmatpush1.bf16.msra.mxu0 %v750
      %864 = vmatprep.subr.bf16.mxu0 0
      %865 = vmatpush1.bf16.msra.mxu0 %v751
      %866 = vmatprep.subr.bf16.mxu0 0
      %867 = vmatpush1.bf16.msra.mxu0 %v752
      %868 = vmatprep.subr.bf16.mxu0 0
      %869 = vmatpush1.bf16.msra.mxu0 %v753
      %870 = vmatprep.subr.bf16.mxu0 0
      %871 = vmatpush1.bf16.msra.mxu0 %v754
      %872 = vmatprep.subr.bf16.mxu0 0
      %873 = vmatpush1.bf16.msra.mxu0 %v755
      %874 = vmatprep.subr.bf16.mxu0 0
      %875 = vmatpush1.bf16.msra.mxu0 %v756
      %876 = vmatprep.subr.bf16.mxu0 0
      %877 = vmatpush1.bf16.msra.mxu0 %v757
      %878 = vmatprep.subr.bf16.mxu0 0
      %879 = vmatpush1.bf16.msra.mxu0 %v758
      %880 = vmatprep.subr.bf16.mxu0 0
      %881 = vmatpush1.bf16.msra.mxu0 %v759
      %882 = vmatprep.subr.bf16.mxu0 0
      %883 = vmatpush1.bf16.msra.mxu0 %v760
      %884 = vmatprep.subr.bf16.mxu0 0
      %885 = vmatpush1.bf16.msra.mxu0 %v761
      %886 = vmatprep.subr.bf16.mxu0 0
      %887 = vmatpush1.bf16.msra.mxu0 %v762
      %888 = vmatprep.subr.bf16.mxu0 0
      %889 = vmatpush1.bf16.msra.mxu0 %v763
      %890 = vmatprep.mubr.bf16.mxu0 %v562
      %891 = vmatmul.mubr.bf16.gmra.mrb[0].mxu0 %v561
      %v892 = vpop.f32.mrb[0].mxu0
      %v893 = vadd.f32 %v853, %v892
      %v894 = vpop.f32.mrb[0].mxu0
      %v895 = vpop.f32.mrb[0].mxu0
      %v896 = vpop.f32.mrb[0].mxu0
      %897 = vdwg.mxu0
      %898 = vmatprep.subr.bf16.mxu0 0
      %899 = vmatpush1.bf16.msra.mxu0 %v764
      %900 = vmatprep.subr.bf16.mxu0 0
      %901 = vmatpush1.bf16.msra.mxu0 %v765
      %902 = vmatprep.subr.bf16.mxu0 0
      %903 = vmatpush1.bf16.msra.mxu0 %v766
      %904 = vmatprep.subr.bf16.mxu0 0
      %905 = vmatpush1.bf16.msra.mxu0 %v767
      %906 = vmatprep.subr.bf16.mxu0 0
      %907 = vmatpush1.bf16.msra.mxu0 %v768
      %908 = vmatprep.subr.bf16.mxu0 0
      %909 = vmatpush1.bf16.msra.mxu0 %v769
      %910 = vmatprep.subr.bf16.mxu0 0
      %911 = vmatpush1.bf16.msra.mxu0 %v770
      %912 = vmatprep.subr.bf16.mxu0 0
      %913 = vmatpush1.bf16.msra.mxu0 %v771
      %914 = vmatprep.subr.bf16.mxu0 0
      %915 = vmatpush1.bf16.msra.mxu0 %v772
      %916 = vmatprep.subr.bf16.mxu0 0
      %917 = vmatpush1.bf16.msra.mxu0 %v773
      %918 = vmatprep.subr.bf16.mxu0 0
      %919 = vmatpush1.bf16.msra.mxu0 %v774
      %920 = vmatprep.subr.bf16.mxu0 0
      %921 = vmatpush1.bf16.msra.mxu0 %v775
      %922 = vmatprep.subr.bf16.mxu0 0
      %923 = vmatpush1.bf16.msra.mxu0 %v776
      %924 = vmatprep.subr.bf16.mxu0 0
      %925 = vmatpush1.bf16.msra.mxu0 %v777
      %926 = vmatprep.subr.bf16.mxu0 0
      %927 = vmatpush1.bf16.msra.mxu0 %v778
      %928 = vmatprep.subr.bf16.mxu0 0
      %929 = vmatpush1.bf16.msra.mxu0 %v779
      %930 = vmatprep.mubr.bf16.mxu0 %v564
      %931 = vmatmul.mubr.bf16.gmra.mrb[0].mxu0 %v563
      %v932 = vpop.f32.mrb[0].mxu0
      %v933 = vadd.f32 %v893, %v932
      %v934 = vpop.f32.mrb[0].mxu0
      %v935 = vpop.f32.mrb[0].mxu0
      %v936 = vpop.f32.mrb[0].mxu0
      %937 = vdwg.mxu0
      %938 = vmatprep.subr.bf16.mxu0 0
      %939 = vmatpush1.bf16.msra.mxu0 %v780
      %940 = vmatprep.subr.bf16.mxu0 0
      %941 = vmatpush1.bf16.msra.mxu0 %v781
      %942 = vmatprep.subr.bf16.mxu0 0
      %943 = vmatpush1.bf16.msra.mxu0 %v782
      %944 = vmatprep.subr.bf16.mxu0 0
      %945 = vmatpush1.bf16.msra.mxu0 %v783
      %946 = vmatprep.subr.bf16.mxu0 0
      %947 = vmatpush1.bf16.msra.mxu0 %v784
      %948 = vmatprep.subr.bf16.mxu0 0
      %949 = vmatpush1.bf16.msra.mxu0 %v785
      %950 = vmatprep.subr.bf16.mxu0 0
      %951 = vmatpush1.bf16.msra.mxu0 %v786
      %952 = vmatprep.subr.bf16.mxu0 0
      %953 = vmatpush1.bf16.msra.mxu0 %v787
      %954 = vmatprep.subr.bf16.mxu0 0
      %955 = vmatpush1.bf16.msra.mxu0 %v788
      %956 = vmatprep.subr.bf16.mxu0 0
      %957 = vmatpush1.bf16.msra.mxu0 %v789
      %958 = vmatprep.subr.bf16.mxu0 0
      %959 = vmatpush1.bf16.msra.mxu0 %v790
      %960 = vmatprep.subr.bf16.mxu0 0
      %961 = vmatpush1.bf16.msra.mxu0 %v791
      %962 = vmatprep.subr.bf16.mxu0 0
      %963 = vmatpush1.bf16.msra.mxu0 %v792
      %964 = vmatprep.subr.bf16.mxu0 0
      %965 = vmatpush1.bf16.msra.mxu0 %v793
      %966 = vmatprep.subr.bf16.mxu0 0
      %967 = vmatpush1.bf16.msra.mxu0 %v794
      %968 = vmatprep.subr.bf16.mxu0 0
      %969 = vmatpush1.bf16.msra.mxu0 %v795
      %970 = vmatprep.mubr.bf16.mxu0 %v566
      %971 = vmatmul.mubr.bf16.gmra.mrb[0].mxu0 %v565
      %v972 = vpop.f32.mrb[0].mxu0
      %v973 = vadd.f32 %v933, %v972
      %v974 = vpop.f32.mrb[0].mxu0
      %v975 = vpop.f32.mrb[0].mxu0
      %v976 = vpop.f32.mrb[0].mxu0
      %977 = vdwg.mxu0
      %978 = vmatprep.subr.bf16.mxu0 0
      %979 = vmatpush1.bf16.msra.mxu0 %v796
      %980 = vmatprep.subr.bf16.mxu0 0
      %981 = vmatpush1.bf16.msra.mxu0 %v797
      %982 = vmatprep.subr.bf16.mxu0 0
      %983 = vmatpush1.bf16.msra.mxu0 %v798
      %984 = vmatprep.subr.bf16.mxu0 0
      %985 = vmatpush1.bf16.msra.mxu0 %v799
      %986 = vmatprep.subr.bf16.mxu0 0
      %987 = vmatpush1.bf16.msra.mxu0 %v800
      %988 = vmatprep.subr.bf16.mxu0 0
      %989 = vmatpush1.bf16.msra.mxu0 %v801
      %990 = vmatprep.subr.bf16.mxu0 0
      %991 = vmatpush1.bf16.msra.mxu0 %v802
      %992 = vmatprep.subr.bf16.mxu0 0
      %993 = vmatpush1.bf16.msra.mxu0 %v803
      %994 = vmatprep.subr.bf16.mxu0 0
      %995 = vmatpush1.bf16.msra.mxu0 %v804
      %996 = vmatprep.subr.bf16.mxu0 0
      %997 = vmatpush1.bf16.msra.mxu0 %v805
      %998 = vmatprep.subr.bf16.mxu0 0
      %999 = vmatpush1.bf16.msra.mxu0 %v806
      %1000 = vmatprep.subr.bf16.mxu0 0
      %1001 = vmatpush1.bf16.msra.mxu0 %v807
      %1002 = vmatprep.subr.bf16.mxu0 0
      %1003 = vmatpush1.bf16.msra.mxu0 %v808
      %1004 = vmatprep.subr.bf16.mxu0 0
      %1005 = vmatpush1.bf16.msra.mxu0 %v809
      %1006 = vmatprep.subr.bf16.mxu0 0
      %1007 = vmatpush1.bf16.msra.mxu0 %v810
      %1008 = vmatprep.subr.bf16.mxu0 0
      %1009 = vmatpush1.bf16.msra.mxu0 %v811
      %1010 = vmatprep.mubr.bf16.mxu0 %v568
      %1011 = vmatmul.mubr.bf16.gmra.mrb[0].mxu0 %v567
      %v1012 = vpop.f32.mrb[0].mxu0
      %v1013 = vadd.f32 %v973, %v1012
      %v1014 = vpop.f32.mrb[0].mxu0
      %v1015 = vpop.f32.mrb[0].mxu0
      %v1016 = vpop.f32.mrb[0].mxu0
      %1017 = vdwg.mxu0
      %1018 = vmatprep.subr.bf16.mxu0 0
      %1019 = vmatpush1.bf16.msra.mxu0 %v812
      %1020 = vmatprep.subr.bf16.mxu0 0
      %1021 = vmatpush1.bf16.msra.mxu0 0
      %1022 = vmatprep.subr.bf16.mxu0 0
      %1023 = vmatpush1.bf16.msra.mxu0 0
      %1024 = vmatprep.subr.bf16.mxu0 0
      %1025 = vmatpush1.bf16.msra.mxu0 0
      %1026 = vmatprep.subr.bf16.mxu0 0
      %1027 = vmatpush1.bf16.msra.mxu0 0
      %1028 = vmatprep.subr.bf16.mxu0 0
      %1029 = vmatpush1.bf16.msra.mxu0 0
      %1030 = vmatprep.subr.bf16.mxu0 0
      %1031 = vmatpush1.bf16.msra.mxu0 0
      %1032 = vmatprep.subr.bf16.mxu0 0
      %1033 = vmatpush1.bf16.msra.mxu0 0
      %1034 = vmatprep.subr.bf16.mxu0 0
      %1035 = vmatpush1.bf16.msra.mxu0 0
      %1036 = vmatprep.subr.bf16.mxu0 0
      %1037 = vmatpush1.bf16.msra.mxu0 0
      %1038 = vmatprep.subr.bf16.mxu0 0
      %1039 = vmatpush1.bf16.msra.mxu0 0
      %1040 = vmatprep.subr.bf16.mxu0 0
      %1041 = vmatpush1.bf16.msra.mxu0 0
      %1042 = vmatprep.subr.bf16.mxu0 0
      %1043 = vmatpush1.bf16.msra.mxu0 0
      %1044 = vmatprep.subr.bf16.mxu0 0
      %1045 = vmatpush1.bf16.msra.mxu0 0
      %1046 = vmatprep.subr.bf16.mxu0 0
      %1047 = vmatpush1.bf16.msra.mxu0 0
      %1048 = vmatprep.subr.bf16.mxu0 0
      %1049 = vmatpush1.bf16.msra.mxu0 0
      %1050 = vmatprep.mubr.bf16.mxu0 0
      %1051 = vmatmul.mubr.bf16.gmra.mrb[0].mxu0 %v816
      %v1052 = vpop.f32.mrb[0].mxu0
      %v1053 = vadd.f32 %v1013, %v1052
      %v1054 = vpop.f32.mrb[0].mxu0
      %v1055 = vpop.f32.mrb[0].mxu0
      %v1056 = vpop.f32.mrb[0].mxu0
      %1057 = vdwg.mxu0
      %v1058 = vld [vmem:[%s3] sm:$0x1]
      %v1059 = vld [vmem:[%s4] sm:$0x1]
      %vm1060 = vcmask 258048
      %v1061 = vsel %vm1060, %v1053, 0.0
      %1062 = vadd.xlane.f32.xlu0 %v1061
      %v1063 = vpop.xlane.xlu0 %1062
      %v1064 = vrcp.pop 32.0
      %v1065 = vmul.f32 %v1063, %v1064
      %v1066 = vsub.f32 %v1053, %v1065
      %v1067 = vmul.f32 %v1066, %v1066
      %v1068 = vsel %vm1060, %v1067, 0.0
      %1069 = vadd.xlane.f32.xlu0 %v1068
      %v1070 = vpop.xlane.xlu0 %1069
      %v1071 = vmul.f32 %v1070, %v1064
      %v1072 = vadd.f32 %v1071, 1e-05
      %v1073 = vrsqrt.pop %v1072
      %v1074 = vmul.f32 %v1066, %v1073
      %v1076 = vlaneseq
      %v1077 = vshrl.u32 %v1076, 7
      %v1078 = vsub.s32 0, %v1077
      %v1079 = vrot.slane %v1058, %v1078
      %v1081 = vmul.f32 %v1074, %v1079
      %v1083 = vlaneseq
      %v1084 = vshrl.u32 %v1083, 7
      %v1085 = vsub.s32 0, %v1084
      %v1086 = vrot.slane %v1059, %v1085
      %v1088 = vadd.f32 %v1081, %v1086
      %v1089 = vpack.c.bf16 %v1088, %v1088
      %v1090 = vld [vmem:[%s5] sm:$0xff]
      %v1091 = vld [vmem:[%s5 + $0x8] sm:$0xff]
      %v1092 = vld [vmem:[%s5 + $0x10] sm:$0xff]
      %v1093 = vld [vmem:[%s5 + $0x18] sm:$0xff]
      %v1094 = vpack.c.bf16 %v1091, %v1090
      %v1095 = vpack.c.bf16 %v1093, %v1092
      %v1096 = vld [vmem:[%s6] sm:$0x1]
      %v1098 = vlaneseq
      %v1099 = vshrl.u32 %v1098, 7
      %v1100 = vsub.s32 0, %v1099
      %v1101 = vrot.slane %v1096, %v1100
      %vm1103 = vcmask 261120
      %v1105 = vsel %vm1103, %v1089, 0
      %1107 = vmatprep.subr.bf16.mxu0 0
      %1108 = vmatpush1.bf16.msra.mxu0 %v1094
      %1109 = vmatprep.subr.bf16.mxu0 0
      %1110 = vmatpush1.bf16.msra.mxu0 %v1095
      %1111 = vmatprep.subr.bf16.mxu0 0
      %1112 = vmatpush1.bf16.msra.mxu0 0
      %1113 = vmatprep.subr.bf16.mxu0 0
      %1114 = vmatpush1.bf16.msra.mxu0 0
      %1115 = vmatprep.subr.bf16.mxu0 0
      %1116 = vmatpush1.bf16.msra.mxu0 0
      %1117 = vmatprep.subr.bf16.mxu0 0
      %1118 = vmatpush1.bf16.msra.mxu0 0
      %1119 = vmatprep.subr.bf16.mxu0 0
      %1120 = vmatpush1.bf16.msra.mxu0 0
      %1121 = vmatprep.subr.bf16.mxu0 0
      %1122 = vmatpush1.bf16.msra.mxu0 0
      %1123 = vmatprep.subr.bf16.mxu0 0
      %1124 = vmatpush1.bf16.msra.mxu0 0
      %1125 = vmatprep.subr.bf16.mxu0 0
      %1126 = vmatpush1.bf16.msra.mxu0 0
      %1127 = vmatprep.subr.bf16.mxu0 0
      %1128 = vmatpush1.bf16.msra.mxu0 0
      %1129 = vmatprep.subr.bf16.mxu0 0
      %1130 = vmatpush1.bf16.msra.mxu0 0
      %1131 = vmatprep.subr.bf16.mxu0 0
      %1132 = vmatpush1.bf16.msra.mxu0 0
      %1133 = vmatprep.subr.bf16.mxu0 0
      %1134 = vmatpush1.bf16.msra.mxu0 0
      %1135 = vmatprep.subr.bf16.mxu0 0
      %1136 = vmatpush1.bf16.msra.mxu0 0
      %1137 = vmatprep.subr.bf16.mxu0 0
      %1138 = vmatpush1.bf16.msra.mxu0 0
      %1139 = vmatprep.mubr.bf16.mxu0 0
      %1140 = vmatmul.mubr.bf16.gmra.mrb[0].mxu0 %v1105
      %v1141 = vpop.f32.mrb[0].mxu0
      %v1142 = vadd.f32 %v1101, %v1141
      %v1143 = vpop.f32.mrb[0].mxu0
      %v1144 = vpop.f32.mrb[0].mxu0
      %v1145 = vpop.f32.mrb[0].mxu0
      %1146 = vdwg.mxu0
      %v1147 = vlaneseq
      %v1148 = vshrl.u32 %v1147, 7
      %v1149 = vlaneseq
      %v1150 = vand.u32 %v1149, 127
      %vm1151 = vcmp.le.s32.totalorder %v1150, %v1148
      %v1152 = vld [vmem:[%s7] sm:$0xff]
      %v1153 = vld [vmem:[%s7 + $0x8] sm:$0xff]
      %v1154 = vld [vmem:[%s7 + $0x10] sm:$0xff]
      %v1155 = vld [vmem:[%s7 + $0x18] sm:$0xff]
      %v1156 = vpack.c.bf16 %v1142, %v1142
      %1158 = vrot.lane.b32.xlu0 %v1156, 96
      %v1159 = vpop.permute.xlu0 %1158
      %vm1160 = vcmask 64512
      %v1162 = vsel %vm1160, %v1156, 0
      %v1165 = vsel %vm1160, %v1159, 0
      %1167 = vmatprep.subr.bf16.mxu0 0
      %1168 = vmatpush1.bf16.xpose.msra.mxu0 %v1165
      %1169 = vmatprep.subr.bf16.mxu0 0
      %1170 = vmatpush1.bf16.xpose.msra.mxu0 0
      %1171 = vmatprep.subr.bf16.mxu0 0
      %1172 = vmatpush1.bf16.xpose.msra.mxu0 0
      %1173 = vmatprep.subr.bf16.mxu0 0
      %1174 = vmatpush1.bf16.xpose.msra.mxu0 0
      %1175 = vmatprep.subr.bf16.mxu0 0
      %1176 = vmatpush1.bf16.xpose.msra.mxu0 0
      %1177 = vmatprep.subr.bf16.mxu0 0
      %1178 = vmatpush1.bf16.xpose.msra.mxu0 0
      %1179 = vmatprep.subr.bf16.mxu0 0
      %1180 = vmatpush1.bf16.xpose.msra.mxu0 0
      %1181 = vmatprep.subr.bf16.mxu0 0
      %1182 = vmatpush1.bf16.xpose.msra.mxu0 0
      %1183 = vmatprep.subr.bf16.mxu0 0
      %1184 = vmatpush1.bf16.xpose.msra.mxu0 0
      %1185 = vmatprep.subr.bf16.mxu0 0
      %1186 = vmatpush1.bf16.xpose.msra.mxu0 0
      %1187 = vmatprep.subr.bf16.mxu0 0
      %1188 = vmatpush1.bf16.xpose.msra.mxu0 0
      %1189 = vmatprep.subr.bf16.mxu0 0
      %1190 = vmatpush1.bf16.xpose.msra.mxu0 0
      %1191 = vmatprep.subr.bf16.mxu0 0
      %1192 = vmatpush1.bf16.xpose.msra.mxu0 0
      %1193 = vmatprep.subr.bf16.mxu0 0
      %1194 = vmatpush1.bf16.xpose.msra.mxu0 0
      %1195 = vmatprep.subr.bf16.mxu0 0
      %1196 = vmatpush1.bf16.xpose.msra.mxu0 0
      %1197 = vmatprep.subr.bf16.mxu0 0
      %1198 = vmatpush1.bf16.xpose.msra.mxu0 0
      %1199 = vmatprep.mubr.bf16.mxu0 0
      %1200 = vmatmul.mubr.bf16.gmra.mrb[0].mxu0 %v1162
      %v1201 = vpop.f32.mrb[0].mxu0
      %v1202 = vadd.f32 0.0, %v1201
      %v1203 = vpop.f32.mrb[0].mxu0
      %v1204 = vpop.f32.mrb[0].mxu0
      %v1205 = vpop.f32.mrb[0].mxu0
      %1206 = vdwg.mxu0
      %v1207 = vmul.f32 %v1202, 0.35355338
      %v1208 = vsel %vm1151, %v1207, -1e+30
      %vm1209 = vcmask 36864
      %v1210 = vsel %vm1209, %v1208, -inf
      %1211 = vmax.xlane.f32.xlu0 %v1210
      %v1212 = vpop.xlane.xlu0 %1211
      %v1213 = vsub.f32 %v1208, %v1212
      %v1214 = vmul.f32 %v1213, 1.442695
      %v1215 = vpow.pop %v1214
      %v1216 = vsel %vm1209, %v1215, 0.0
      %1217 = vadd.xlane.f32.xlu0 %v1216
      %v1218 = vpop.xlane.xlu0 %1217
      %v1219 = vrcp.pop %v1218
      %v1220 = vmul.f32 %v1215, %v1219
      %v1221 = vpack.c.bf16 %v1220, %v1220
      %1222 = vrot.lane.b32.xlu0 %v1156, 64
      %v1223 = vpop.permute.xlu0 %1222
      %vm1224 = vcmask 39936
      %v1226 = vsel %vm1224, %v1221, 0
      %vm1228 = vcmask 1041408
      %vm1229 = vcmask 1042432
      %v1230 = vsel %vm1228, 4294967295, 65535
      %v1231 = vsel %vm1229, %v1230, 0
      %v1233 = vand.u32 %v1223, %v1231
      %1235 = vmatprep.subr.bf16.mxu0 0
      %1236 = vmatpush1.bf16.msra.mxu0 %v1233
      %1237 = vmatprep.subr.bf16.mxu0 0
      %1238 = vmatpush1.bf16.msra.mxu0 0
      %1239 = vmatprep.subr.bf16.mxu0 0
      %1240 = vmatpush1.bf16.msra.mxu0 0
      %1241 = vmatprep.subr.bf16.mxu0 0
      %1242 = vmatpush1.bf16.msra.mxu0 0
      %1243 = vmatprep.subr.bf16.mxu0 0
      %1244 = vmatpush1.bf16.msra.mxu0 0
      %1245 = vmatprep.subr.bf16.mxu0 0
      %1246 = vmatpush1.bf16.msra.mxu0 0
      %1247 = vmatprep.subr.bf16.mxu0 0
      %1248 = vmatpush1.bf16.msra.mxu0 0
      %1249 = vmatprep.subr.bf16.mxu0 0
      %1250 = vmatpush1.bf16.msra.mxu0 0
      %1251 = vmatprep.subr.bf16.mxu0 0
      %1252 = vmatpush1.bf16.msra.mxu0 0
      %1253 = vmatprep.subr.bf16.mxu0 0
      %1254 = vmatpush1.bf16.msra.mxu0 0
      %1255 = vmatprep.subr.bf16.mxu0 0
      %1256 = vmatpush1.bf16.msra.mxu0 0
      %1257 = vmatprep.subr.bf16.mxu0 0
      %1258 = vmatpush1.bf16.msra.mxu0 0
      %1259 = vmatprep.subr.bf16.mxu0 0
      %1260 = vmatpush1.bf16.msra.mxu0 0
      %1261 = vmatprep.subr.bf16.mxu0 0
      %1262 = vmatpush1.bf16.msra.mxu0 0
      %1263 = vmatprep.subr.bf16.mxu0 0
      %1264 = vmatpush1.bf16.msra.mxu0 0
      %1265 = vmatprep.subr.bf16.mxu0 0
      %1266 = vmatpush1.bf16.msra.mxu0 0
      %1267 = vmatprep.mubr.bf16.mxu0 0
      %1268 = vmatmul.mubr.bf16.gmra.mrb[0].mxu0 %v1226
      %v1269 = vpop.f32.mrb[0].mxu0
      %v1270 = vadd.f32 0.0, %v1269
      %v1271 = vpop.f32.mrb[0].mxu0
      %v1272 = vpop.f32.mrb[0].mxu0
      %v1273 = vpop.f32.mrb[0].mxu0
      %1274 = vdwg.mxu0
      %v1275 = vpack.c.bf16 %v1270, %v1270
      %v1276 = vpack.c.bf16 %v1152, %v1152
      %1277 = vrot.lane.b32.xlu0 %v1156, 120
      %v1278 = vpop.permute.xlu0 %1277
      %1279 = vrot.lane.b32.xlu0 %v1156, 88
      %v1280 = vpop.permute.xlu0 %1279
      %v1282 = vsel %vm1160, %v1278, 0
      %v1285 = vsel %vm1160, %v1280, 0
      %1287 = vmatprep.subr.bf16.mxu0 0
      %1288 = vmatpush1.bf16.xpose.msra.mxu0 %v1285
      %1289 = vmatprep.subr.bf16.mxu0 0
      %1290 = vmatpush1.bf16.xpose.msra.mxu0 0
      %1291 = vmatprep.subr.bf16.mxu0 0
      %1292 = vmatpush1.bf16.xpose.msra.mxu0 0
      %1293 = vmatprep.subr.bf16.mxu0 0
      %1294 = vmatpush1.bf16.xpose.msra.mxu0 0
      %1295 = vmatprep.subr.bf16.mxu0 0
      %1296 = vmatpush1.bf16.xpose.msra.mxu0 0
      %1297 = vmatprep.subr.bf16.mxu0 0
      %1298 = vmatpush1.bf16.xpose.msra.mxu0 0
      %1299 = vmatprep.subr.bf16.mxu0 0
      %1300 = vmatpush1.bf16.xpose.msra.mxu0 0
      %1301 = vmatprep.subr.bf16.mxu0 0
      %1302 = vmatpush1.bf16.xpose.msra.mxu0 0
      %1303 = vmatprep.subr.bf16.mxu0 0
      %1304 = vmatpush1.bf16.xpose.msra.mxu0 0
      %1305 = vmatprep.subr.bf16.mxu0 0
      %1306 = vmatpush1.bf16.xpose.msra.mxu0 0
      %1307 = vmatprep.subr.bf16.mxu0 0
      %1308 = vmatpush1.bf16.xpose.msra.mxu0 0
      %1309 = vmatprep.subr.bf16.mxu0 0
      %1310 = vmatpush1.bf16.xpose.msra.mxu0 0
      %1311 = vmatprep.subr.bf16.mxu0 0
      %1312 = vmatpush1.bf16.xpose.msra.mxu0 0
      %1313 = vmatprep.subr.bf16.mxu0 0
      %1314 = vmatpush1.bf16.xpose.msra.mxu0 0
      %1315 = vmatprep.subr.bf16.mxu0 0
      %1316 = vmatpush1.bf16.xpose.msra.mxu0 0
      %1317 = vmatprep.subr.bf16.mxu0 0
      %1318 = vmatpush1.bf16.xpose.msra.mxu0 0
      %1319 = vmatprep.mubr.bf16.mxu0 0
      %1320 = vmatmul.mubr.bf16.gmra.mrb[0].mxu0 %v1282
      %v1321 = vpop.f32.mrb[0].mxu0
      %v1322 = vadd.f32 0.0, %v1321
      %v1323 = vpop.f32.mrb[0].mxu0
      %v1324 = vpop.f32.mrb[0].mxu0
      %v1325 = vpop.f32.mrb[0].mxu0
      %1326 = vdwg.mxu0
      %v1327 = vmul.f32 %v1322, 0.35355338
      %v1328 = vsel %vm1151, %v1327, -1e+30
      %v1329 = vsel %vm1209, %v1328, -inf
      %1330 = vmax.xlane.f32.xlu0 %v1329
      %v1331 = vpop.xlane.xlu0 %1330
      %v1332 = vsub.f32 %v1328, %v1331
      %v1333 = vmul.f32 %v1332, 1.442695
      %v1334 = vpow.pop %v1333
      %v1335 = vsel %vm1209, %v1334, 0.0
      %1336 = vadd.xlane.f32.xlu0 %v1335
      %v1337 = vpop.xlane.xlu0 %1336
      %v1338 = vrcp.pop %v1337
      %v1339 = vmul.f32 %v1334, %v1338
      %v1340 = vpack.c.bf16 %v1339, %v1339
      %1341 = vrot.lane.b32.xlu0 %v1156, 56
      %v1342 = vpop.permute.xlu0 %1341
      %v1344 = vsel %vm1224, %v1340, 0
      %v1347 = vand.u32 %v1342, %v1231
      %1349 = vmatprep.subr.bf16.mxu0 0
      %1350 = vmatpush1.bf16.msra.mxu0 %v1347
      %1351 = vmatprep.subr.bf16.mxu0 0
      %1352 = vmatpush1.bf16.msra.mxu0 0
      %1353 = vmatprep.subr.bf16.mxu0 0
      %1354 = vmatpush1.bf16.msra.mxu0 0
      %1355 = vmatprep.subr.bf16.mxu0 0
      %1356 = vmatpush1.bf16.msra.mxu0 0
      %1357 = vmatprep.subr.bf16.mxu0 0
      %1358 = vmatpush1.bf16.msra.mxu0 0
      %1359 = vmatprep.subr.bf16.mxu0 0
      %1360 = vmatpush1.bf16.msra.mxu0 0
      %1361 = vmatprep.subr.bf16.mxu0 0
      %1362 = vmatpush1.bf16.msra.mxu0 0
      %1363 = vmatprep.subr.bf16.mxu0 0
      %1364 = vmatpush1.bf16.msra.mxu0 0
      %1365 = vmatprep.subr.bf16.mxu0 0
      %1366 = vmatpush1.bf16.msra.mxu0 0
      %1367 = vmatprep.subr.bf16.mxu0 0
      %1368 = vmatpush1.bf16.msra.mxu0 0
      %1369 = vmatprep.subr.bf16.mxu0 0
      %1370 = vmatpush1.bf16.msra.mxu0 0
      %1371 = vmatprep.subr.bf16.mxu0 0
      %1372 = vmatpush1.bf16.msra.mxu0 0
      %1373 = vmatprep.subr.bf16.mxu0 0
      %1374 = vmatpush1.bf16.msra.mxu0 0
      %1375 = vmatprep.subr.bf16.mxu0 0
      %1376 = vmatpush1.bf16.msra.mxu0 0
      %1377 = vmatprep.subr.bf16.mxu0 0
      %1378 = vmatpush1.bf16.msra.mxu0 0
      %1379 = vmatprep.subr.bf16.mxu0 0
      %1380 = vmatpush1.bf16.msra.mxu0 0
      %1381 = vmatprep.mubr.bf16.mxu0 0
      %1382 = vmatmul.mubr.bf16.gmra.mrb[0].mxu0 %v1344
      %v1383 = vpop.f32.mrb[0].mxu0
      %v1384 = vadd.f32 0.0, %v1383
      %v1385 = vpop.f32.mrb[0].mxu0
      %v1386 = vpop.f32.mrb[0].mxu0
      %v1387 = vpop.f32.mrb[0].mxu0
      %1388 = vdwg.mxu0
      %v1389 = vpack.c.bf16 %v1384, %v1384
      %v1390 = vpack.c.bf16 %v1153, %v1153
      %v1392 = vsel %vm1160, %v1389, 0
      %vm1394 = vcmask 1043456
      %v1396 = vsel %vm1394, %v1390, 0
      %1398 = vmatprep.subr.bf16.mxu0 0
      %1399 = vmatpush1.bf16.msra.mxu0 %v1396
      %1400 = vmatprep.subr.bf16.mxu0 0
      %1401 = vmatpush1.bf16.msra.mxu0 0
      %1402 = vmatprep.subr.bf16.mxu0 0
      %1403 = vmatpush1.bf16.msra.mxu0 0
      %1404 = vmatprep.subr.bf16.mxu0 0
      %1405 = vmatpush1.bf16.msra.mxu0 0
      %1406 = vmatprep.subr.bf16.mxu0 0
      %1407 = vmatpush1.bf16.msra.mxu0 0
      %1408 = vmatprep.subr.bf16.mxu0 0
      %1409 = vmatpush1.bf16.msra.mxu0 0
      %1410 = vmatprep.subr.bf16.mxu0 0
      %1411 = vmatpush1.bf16.msra.mxu0 0
      %1412 = vmatprep.subr.bf16.mxu0 0
      %1413 = vmatpush1.bf16.msra.mxu0 0
      %1414 = vmatprep.subr.bf16.mxu0 0
      %1415 = vmatpush1.bf16.msra.mxu0 0
      %1416 = vmatprep.subr.bf16.mxu0 0
      %1417 = vmatpush1.bf16.msra.mxu0 0
      %1418 = vmatprep.subr.bf16.mxu0 0
      %1419 = vmatpush1.bf16.msra.mxu0 0
      %1420 = vmatprep.subr.bf16.mxu0 0
      %1421 = vmatpush1.bf16.msra.mxu0 0
      %1422 = vmatprep.subr.bf16.mxu0 0
      %1423 = vmatpush1.bf16.msra.mxu0 0
      %1424 = vmatprep.subr.bf16.mxu0 0
      %1425 = vmatpush1.bf16.msra.mxu0 0
      %1426 = vmatprep.subr.bf16.mxu0 0
      %1427 = vmatpush1.bf16.msra.mxu0 0
      %1428 = vmatprep.subr.bf16.mxu0 0
      %1429 = vmatpush1.bf16.msra.mxu0 0
      %1430 = vmatprep.mubr.bf16.mxu0 0
      %1431 = vmatmul.mubr.bf16.gmra.mrb[0].mxu0 %v1392
      %v1432 = vpop.f32.mrb[0].mxu0
      %v1433 = vadd.f32 0.0, %v1432
      %v1434 = vpop.f32.mrb[0].mxu0
      %v1435 = vpop.f32.mrb[0].mxu0
      %v1436 = vpop.f32.mrb[0].mxu0
      %1437 = vdwg.mxu0
      %v1439 = vsel %vm1160, %v1275, 0
      %v1442 = vsel %vm1394, %v1276, 0
      %1444 = vmatprep.subr.bf16.mxu0 0
      %1445 = vmatpush1.bf16.msra.mxu0 %v1442
      %1446 = vmatprep.subr.bf16.mxu0 0
      %1447 = vmatpush1.bf16.msra.mxu0 0
      %1448 = vmatprep.subr.bf16.mxu0 0
      %1449 = vmatpush1.bf16.msra.mxu0 0
      %1450 = vmatprep.subr.bf16.mxu0 0
      %1451 = vmatpush1.bf16.msra.mxu0 0
      %1452 = vmatprep.subr.bf16.mxu0 0
      %1453 = vmatpush1.bf16.msra.mxu0 0
      %1454 = vmatprep.subr.bf16.mxu0 0
      %1455 = vmatpush1.bf16.msra.mxu0 0
      %1456 = vmatprep.subr.bf16.mxu0 0
      %1457 = vmatpush1.bf16.msra.mxu0 0
      %1458 = vmatprep.subr.bf16.mxu0 0
      %1459 = vmatpush1.bf16.msra.mxu0 0
      %1460 = vmatprep.subr.bf16.mxu0 0
      %1461 = vmatpush1.bf16.msra.mxu0 0
      %1462 = vmatprep.subr.bf16.mxu0 0
      %1463 = vmatpush1.bf16.msra.mxu0 0
      %1464 = vmatprep.subr.bf16.mxu0 0
      %1465 = vmatpush1.bf16.msra.mxu0 0
      %1466 = vmatprep.subr.bf16.mxu0 0
      %1467 = vmatpush1.bf16.msra.mxu0 0
      %1468 = vmatprep.subr.bf16.mxu0 0
      %1469 = vmatpush1.bf16.msra.mxu0 0
      %1470 = vmatprep.subr.bf16.mxu0 0
      %1471 = vmatpush1.bf16.msra.mxu0 0
      %1472 = vmatprep.subr.bf16.mxu0 0
      %1473 = vmatpush1.bf16.msra.mxu0 0
      %1474 = vmatprep.subr.bf16.mxu0 0
      %1475 = vmatpush1.bf16.msra.mxu0 0
      %1476 = vmatprep.mubr.bf16.mxu0 0
      %1477 = vmatmul.mubr.bf16.gmra.mrb[0].mxu0 %v1439
      %v1478 = vpop.f32.mrb[0].mxu0
      %v1479 = vadd.f32 %v1433, %v1478
      %v1480 = vpop.f32.mrb[0].mxu0
      %v1481 = vpop.f32.mrb[0].mxu0
      %v1482 = vpop.f32.mrb[0].mxu0
      %1483 = vdwg.mxu0
      %1484 = vrot.lane.b32.xlu0 %v1156, 112
      %v1485 = vpop.permute.xlu0 %1484
      %1486 = vrot.lane.b32.xlu0 %v1156, 80
      %v1487 = vpop.permute.xlu0 %1486
      %v1489 = vsel %vm1160, %v1485, 0
      %v1492 = vsel %vm1160, %v1487, 0
      %1494 = vmatprep.subr.bf16.mxu0 0
      %1495 = vmatpush1.bf16.xpose.msra.mxu0 %v1492
      %1496 = vmatprep.subr.bf16.mxu0 0
      %1497 = vmatpush1.bf16.xpose.msra.mxu0 0
      %1498 = vmatprep.subr.bf16.mxu0 0
      %1499 = vmatpush1.bf16.xpose.msra.mxu0 0
      %1500 = vmatprep.subr.bf16.mxu0 0
      %1501 = vmatpush1.bf16.xpose.msra.mxu0 0
      %1502 = vmatprep.subr.bf16.mxu0 0
      %1503 = vmatpush1.bf16.xpose.msra.mxu0 0
      %1504 = vmatprep.subr.bf16.mxu0 0
      %1505 = vmatpush1.bf16.xpose.msra.mxu0 0
      %1506 = vmatprep.subr.bf16.mxu0 0
      %1507 = vmatpush1.bf16.xpose.msra.mxu0 0
      %1508 = vmatprep.subr.bf16.mxu0 0
      %1509 = vmatpush1.bf16.xpose.msra.mxu0 0
      %1510 = vmatprep.subr.bf16.mxu0 0
      %1511 = vmatpush1.bf16.xpose.msra.mxu0 0
      %1512 = vmatprep.subr.bf16.mxu0 0
      %1513 = vmatpush1.bf16.xpose.msra.mxu0 0
      %1514 = vmatprep.subr.bf16.mxu0 0
      %1515 = vmatpush1.bf16.xpose.msra.mxu0 0
      %1516 = vmatprep.subr.bf16.mxu0 0
      %1517 = vmatpush1.bf16.xpose.msra.mxu0 0
      %1518 = vmatprep.subr.bf16.mxu0 0
      %1519 = vmatpush1.bf16.xpose.msra.mxu0 0
      %1520 = vmatprep.subr.bf16.mxu0 0
      %1521 = vmatpush1.bf16.xpose.msra.mxu0 0
      %1522 = vmatprep.subr.bf16.mxu0 0
      %1523 = vmatpush1.bf16.xpose.msra.mxu0 0
      %1524 = vmatprep.subr.bf16.mxu0 0
      %1525 = vmatpush1.bf16.xpose.msra.mxu0 0
      %1526 = vmatprep.mubr.bf16.mxu0 0
      %1527 = vmatmul.mubr.bf16.gmra.mrb[0].mxu0 %v1489
      %v1528 = vpop.f32.mrb[0].mxu0
      %v1529 = vadd.f32 0.0, %v1528
      %v1530 = vpop.f32.mrb[0].mxu0
      %v1531 = vpop.f32.mrb[0].mxu0
      %v1532 = vpop.f32.mrb[0].mxu0
      %1533 = vdwg.mxu0
      %v1534 = vmul.f32 %v1529, 0.35355338
      %v1535 = vsel %vm1151, %v1534, -1e+30
      %v1536 = vsel %vm1209, %v1535, -inf
      %1537 = vmax.xlane.f32.xlu0 %v1536
      %v1538 = vpop.xlane.xlu0 %1537
      %v1539 = vsub.f32 %v1535, %v1538
      %v1540 = vmul.f32 %v1539, 1.442695
      %v1541 = vpow.pop %v1540
      %v1542 = vsel %vm1209, %v1541, 0.0
      %1543 = vadd.xlane.f32.xlu0 %v1542
      %v1544 = vpop.xlane.xlu0 %1543
      %v1545 = vrcp.pop %v1544
      %v1546 = vmul.f32 %v1541, %v1545
      %v1547 = vpack.c.bf16 %v1546, %v1546
      %1548 = vrot.lane.b32.xlu0 %v1156, 48
      %v1549 = vpop.permute.xlu0 %1548
      %v1551 = vsel %vm1224, %v1547, 0
      %v1554 = vand.u32 %v1549, %v1231
      %1556 = vmatprep.subr.bf16.mxu0 0
      %1557 = vmatpush1.bf16.msra.mxu0 %v1554
      %1558 = vmatprep.subr.bf16.mxu0 0
      %1559 = vmatpush1.bf16.msra.mxu0 0
      %1560 = vmatprep.subr.bf16.mxu0 0
      %1561 = vmatpush1.bf16.msra.mxu0 0
      %1562 = vmatprep.subr.bf16.mxu0 0
      %1563 = vmatpush1.bf16.msra.mxu0 0
      %1564 = vmatprep.subr.bf16.mxu0 0
      %1565 = vmatpush1.bf16.msra.mxu0 0
      %1566 = vmatprep.subr.bf16.mxu0 0
      %1567 = vmatpush1.bf16.msra.mxu0 0
      %1568 = vmatprep.subr.bf16.mxu0 0
      %1569 = vmatpush1.bf16.msra.mxu0 0
      %1570 = vmatprep.subr.bf16.mxu0 0
      %1571 = vmatpush1.bf16.msra.mxu0 0
      %1572 = vmatprep.subr.bf16.mxu0 0
      %1573 = vmatpush1.bf16.msra.mxu0 0
      %1574 = vmatprep.subr.bf16.mxu0 0
      %1575 = vmatpush1.bf16.msra.mxu0 0
      %1576 = vmatprep.subr.bf16.mxu0 0
      %1577 = vmatpush1.bf16.msra.mxu0 0
      %1578 = vmatprep.subr.bf16.mxu0 0
      %1579 = vmatpush1.bf16.msra.mxu0 0
      %1580 = vmatprep.subr.bf16.mxu0 0
      %1581 = vmatpush1.bf16.msra.mxu0 0
      %1582 = vmatprep.subr.bf16.mxu0 0
      %1583 = vmatpush1.bf16.msra.mxu0 0
      %1584 = vmatprep.subr.bf16.mxu0 0
      %1585 = vmatpush1.bf16.msra.mxu0 0
      %1586 = vmatprep.subr.bf16.mxu0 0
      %1587 = vmatpush1.bf16.msra.mxu0 0
      %1588 = vmatprep.mubr.bf16.mxu0 0
      %1589 = vmatmul.mubr.bf16.gmra.mrb[0].mxu0 %v1551
      %v1590 = vpop.f32.mrb[0].mxu0
      %v1591 = vadd.f32 0.0, %v1590
      %v1592 = vpop.f32.mrb[0].mxu0
      %v1593 = vpop.f32.mrb[0].mxu0
      %v1594 = vpop.f32.mrb[0].mxu0
      %1595 = vdwg.mxu0
      %v1596 = vpack.c.bf16 %v1591, %v1591
      %v1597 = vpack.c.bf16 %v1154, %v1154
      %v1599 = vsel %vm1160, %v1596, 0
      %v1602 = vsel %vm1394, %v1597, 0
      %1604 = vmatprep.subr.bf16.mxu0 0
      %1605 = vmatpush1.bf16.msra.mxu0 %v1602
      %1606 = vmatprep.subr.bf16.mxu0 0
      %1607 = vmatpush1.bf16.msra.mxu0 0
      %1608 = vmatprep.subr.bf16.mxu0 0
      %1609 = vmatpush1.bf16.msra.mxu0 0
      %1610 = vmatprep.subr.bf16.mxu0 0
      %1611 = vmatpush1.bf16.msra.mxu0 0
      %1612 = vmatprep.subr.bf16.mxu0 0
      %1613 = vmatpush1.bf16.msra.mxu0 0
      %1614 = vmatprep.subr.bf16.mxu0 0
      %1615 = vmatpush1.bf16.msra.mxu0 0
      %1616 = vmatprep.subr.bf16.mxu0 0
      %1617 = vmatpush1.bf16.msra.mxu0 0
      %1618 = vmatprep.subr.bf16.mxu0 0
      %1619 = vmatpush1.bf16.msra.mxu0 0
      %1620 = vmatprep.subr.bf16.mxu0 0
      %1621 = vmatpush1.bf16.msra.mxu0 0
      %1622 = vmatprep.subr.bf16.mxu0 0
      %1623 = vmatpush1.bf16.msra.mxu0 0
      %1624 = vmatprep.subr.bf16.mxu0 0
      %1625 = vmatpush1.bf16.msra.mxu0 0
      %1626 = vmatprep.subr.bf16.mxu0 0
      %1627 = vmatpush1.bf16.msra.mxu0 0
      %1628 = vmatprep.subr.bf16.mxu0 0
      %1629 = vmatpush1.bf16.msra.mxu0 0
      %1630 = vmatprep.subr.bf16.mxu0 0
      %1631 = vmatpush1.bf16.msra.mxu0 0
      %1632 = vmatprep.subr.bf16.mxu0 0
      %1633 = vmatpush1.bf16.msra.mxu0 0
      %1634 = vmatprep.subr.bf16.mxu0 0
      %1635 = vmatpush1.bf16.msra.mxu0 0
      %1636 = vmatprep.mubr.bf16.mxu0 0
      %1637 = vmatmul.mubr.bf16.gmra.mrb[0].mxu0 %v1599
      %v1638 = vpop.f32.mrb[0].mxu0
      %v1639 = vadd.f32 0.0, %v1638
      %v1640 = vpop.f32.mrb[0].mxu0
      %v1641 = vpop.f32.mrb[0].mxu0
      %v1642 = vpop.f32.mrb[0].mxu0
      %1643 = vdwg.mxu0
      %v1644 = vadd.f32 %v1479, %v1639
      %1645 = vrot.lane.b32.xlu0 %v1156, 104
      %v1646 = vpop.permute.xlu0 %1645
      %1647 = vrot.lane.b32.xlu0 %v1156, 72
      %v1648 = vpop.permute.xlu0 %1647
      %v1650 = vsel %vm1160, %v1646, 0
      %v1653 = vsel %vm1160, %v1648, 0
      %1655 = vmatprep.subr.bf16.mxu0 0
      %1656 = vmatpush1.bf16.xpose.msra.mxu0 %v1653
      %1657 = vmatprep.subr.bf16.mxu0 0
      %1658 = vmatpush1.bf16.xpose.msra.mxu0 0
      %1659 = vmatprep.subr.bf16.mxu0 0
      %1660 = vmatpush1.bf16.xpose.msra.mxu0 0
      %1661 = vmatprep.subr.bf16.mxu0 0
      %1662 = vmatpush1.bf16.xpose.msra.mxu0 0
      %1663 = vmatprep.subr.bf16.mxu0 0
      %1664 = vmatpush1.bf16.xpose.msra.mxu0 0
      %1665 = vmatprep.subr.bf16.mxu0 0
      %1666 = vmatpush1.bf16.xpose.msra.mxu0 0
      %1667 = vmatprep.subr.bf16.mxu0 0
      %1668 = vmatpush1.bf16.xpose.msra.mxu0 0
      %1669 = vmatprep.subr.bf16.mxu0 0
      %1670 = vmatpush1.bf16.xpose.msra.mxu0 0
      %1671 = vmatprep.subr.bf16.mxu0 0
      %1672 = vmatpush1.bf16.xpose.msra.mxu0 0
      %1673 = vmatprep.subr.bf16.mxu0 0
      %1674 = vmatpush1.bf16.xpose.msra.mxu0 0
      %1675 = vmatprep.subr.bf16.mxu0 0
      %1676 = vmatpush1.bf16.xpose.msra.mxu0 0
      %1677 = vmatprep.subr.bf16.mxu0 0
      %1678 = vmatpush1.bf16.xpose.msra.mxu0 0
      %1679 = vmatprep.subr.bf16.mxu0 0
      %1680 = vmatpush1.bf16.xpose.msra.mxu0 0
      %1681 = vmatprep.subr.bf16.mxu0 0
      %1682 = vmatpush1.bf16.xpose.msra.mxu0 0
      %1683 = vmatprep.subr.bf16.mxu0 0
      %1684 = vmatpush1.bf16.xpose.msra.mxu0 0
      %1685 = vmatprep.subr.bf16.mxu0 0
      %1686 = vmatpush1.bf16.xpose.msra.mxu0 0
      %1687 = vmatprep.mubr.bf16.mxu0 0
      %1688 = vmatmul.mubr.bf16.gmra.mrb[0].mxu0 %v1650
      %v1689 = vpop.f32.mrb[0].mxu0
      %v1690 = vadd.f32 0.0, %v1689
      %v1691 = vpop.f32.mrb[0].mxu0
      %v1692 = vpop.f32.mrb[0].mxu0
      %v1693 = vpop.f32.mrb[0].mxu0
      %1694 = vdwg.mxu0
      %v1695 = vmul.f32 %v1690, 0.35355338
      %v1696 = vsel %vm1151, %v1695, -1e+30
      %v1697 = vsel %vm1209, %v1696, -inf
      %1698 = vmax.xlane.f32.xlu0 %v1697
      %v1699 = vpop.xlane.xlu0 %1698
      %v1700 = vsub.f32 %v1696, %v1699
      %v1701 = vmul.f32 %v1700, 1.442695
      %v1702 = vpow.pop %v1701
      %v1703 = vsel %vm1209, %v1702, 0.0
      %1704 = vadd.xlane.f32.xlu0 %v1703
      %v1705 = vpop.xlane.xlu0 %1704
      %v1706 = vrcp.pop %v1705
      %v1707 = vmul.f32 %v1702, %v1706
      %v1708 = vpack.c.bf16 %v1707, %v1707
      %1709 = vrot.lane.b32.xlu0 %v1156, 40
      %v1710 = vpop.permute.xlu0 %1709
      %v1712 = vsel %vm1224, %v1708, 0
      %v1715 = vand.u32 %v1710, %v1231
      %1717 = vmatprep.subr.bf16.mxu0 0
      %1718 = vmatpush1.bf16.msra.mxu0 %v1715
      %1719 = vmatprep.subr.bf16.mxu0 0
      %1720 = vmatpush1.bf16.msra.mxu0 0
      %1721 = vmatprep.subr.bf16.mxu0 0
      %1722 = vmatpush1.bf16.msra.mxu0 0
      %1723 = vmatprep.subr.bf16.mxu0 0
      %1724 = vmatpush1.bf16.msra.mxu0 0
      %1725 = vmatprep.subr.bf16.mxu0 0
      %1726 = vmatpush1.bf16.msra.mxu0 0
      %1727 = vmatprep.subr.bf16.mxu0 0
      %1728 = vmatpush1.bf16.msra.mxu0 0
      %1729 = vmatprep.subr.bf16.mxu0 0
      %1730 = vmatpush1.bf16.msra.mxu0 0
      %1731 = vmatprep.subr.bf16.mxu0 0
      %1732 = vmatpush1.bf16.msra.mxu0 0
      %1733 = vmatprep.subr.bf16.mxu0 0
      %1734 = vmatpush1.bf16.msra.mxu0 0
      %1735 = vmatprep.subr.bf16.mxu0 0
      %1736 = vmatpush1.bf16.msra.mxu0 0
      %1737 = vmatprep.subr.bf16.mxu0 0
      %1738 = vmatpush1.bf16.msra.mxu0 0
      %1739 = vmatprep.subr.bf16.mxu0 0
      %1740 = vmatpush1.bf16.msra.mxu0 0
      %1741 = vmatprep.subr.bf16.mxu0 0
      %1742 = vmatpush1.bf16.msra.mxu0 0
      %1743 = vmatprep.subr.bf16.mxu0 0
      %1744 = vmatpush1.bf16.msra.mxu0 0
      %1745 = vmatprep.subr.bf16.mxu0 0
      %1746 = vmatpush1.bf16.msra.mxu0 0
      %1747 = vmatprep.subr.bf16.mxu0 0
      %1748 = vmatpush1.bf16.msra.mxu0 0
      %1749 = vmatprep.mubr.bf16.mxu0 0
      %1750 = vmatmul.mubr.bf16.gmra.mrb[0].mxu0 %v1712
      %v1751 = vpop.f32.mrb[0].mxu0
      %v1752 = vadd.f32 0.0, %v1751
      %v1753 = vpop.f32.mrb[0].mxu0
      %v1754 = vpop.f32.mrb[0].mxu0
      %v1755 = vpop.f32.mrb[0].mxu0
      %1756 = vdwg.mxu0
      %v1757 = vpack.c.bf16 %v1752, %v1752
      %v1758 = vpack.c.bf16 %v1155, %v1155
      %v1760 = vsel %vm1160, %v1757, 0
      %v1763 = vsel %vm1394, %v1758, 0
      %1765 = vmatprep.subr.bf16.mxu0 0
      %1766 = vmatpush1.bf16.msra.mxu0 %v1763
      %1767 = vmatprep.subr.bf16.mxu0 0
      %1768 = vmatpush1.bf16.msra.mxu0 0
      %1769 = vmatprep.subr.bf16.mxu0 0
      %1770 = vmatpush1.bf16.msra.mxu0 0
      %1771 = vmatprep.subr.bf16.mxu0 0
      %1772 = vmatpush1.bf16.msra.mxu0 0
      %1773 = vmatprep.subr.bf16.mxu0 0
      %1774 = vmatpush1.bf16.msra.mxu0 0
      %1775 = vmatprep.subr.bf16.mxu0 0
      %1776 = vmatpush1.bf16.msra.mxu0 0
      %1777 = vmatprep.subr.bf16.mxu0 0
      %1778 = vmatpush1.bf16.msra.mxu0 0
      %1779 = vmatprep.subr.bf16.mxu0 0
      %1780 = vmatpush1.bf16.msra.mxu0 0
      %1781 = vmatprep.subr.bf16.mxu0 0
      %1782 = vmatpush1.bf16.msra.mxu0 0
      %1783 = vmatprep.subr.bf16.mxu0 0
      %1784 = vmatpush1.bf16.msra.mxu0 0
      %1785 = vmatprep.subr.bf16.mxu0 0
      %1786 = vmatpush1.bf16.msra.mxu0 0
      %1787 = vmatprep.subr.bf16.mxu0 0
      %1788 = vmatpush1.bf16.msra.mxu0 0
      %1789 = vmatprep.subr.bf16.mxu0 0
      %1790 = vmatpush1.bf16.msra.mxu0 0
      %1791 = vmatprep.subr.bf16.mxu0 0
      %1792 = vmatpush1.bf16.msra.mxu0 0
      %1793 = vmatprep.subr.bf16.mxu0 0
      %1794 = vmatpush1.bf16.msra.mxu0 0
      %1795 = vmatprep.subr.bf16.mxu0 0
      %1796 = vmatpush1.bf16.msra.mxu0 0
      %1797 = vmatprep.mubr.bf16.mxu0 0
      %1798 = vmatmul.mubr.bf16.gmra.mrb[0].mxu0 %v1760
      %v1799 = vpop.f32.mrb[0].mxu0
      %v1800 = vadd.f32 0.0, %v1799
      %v1801 = vpop.f32.mrb[0].mxu0
      %v1802 = vpop.f32.mrb[0].mxu0
      %v1803 = vpop.f32.mrb[0].mxu0
      %1804 = vdwg.mxu0
      %v1805 = vadd.f32 %v1644, %v1800
      %v1806 = vadd.f32 %v1053, %v1805
      %v1807 = vld [vmem:[%s8] sm:$0x1]
      %v1809 = vlaneseq
      %v1810 = vshrl.u32 %v1809, 7
      %v1811 = vsub.s32 0, %v1810
      %v1812 = vrot.slane %v1807, %v1811
      %v1814 = vadd.f32 %v1806, %v1812
      %v1815 = vld [vmem:[%s9] sm:$0x1]
      %v1816 = vld [vmem:[%s10] sm:$0x1]
      %v1817 = vsel %vm1060, %v1814, 0.0
      %1818 = vadd.xlane.f32.xlu0 %v1817
      %v1819 = vpop.xlane.xlu0 %1818
      %v1820 = vmul.f32 %v1819, %v1064
      %v1821 = vsub.f32 %v1814, %v1820
      %v1822 = vmul.f32 %v1821, %v1821
      %v1823 = vsel %vm1060, %v1822, 0.0
      %1824 = vadd.xlane.f32.xlu0 %v1823
      %v1825 = vpop.xlane.xlu0 %1824
      %v1826 = vmul.f32 %v1825, %v1064
      %v1827 = vadd.f32 %v1826, 1e-05
      %v1828 = vrsqrt.pop %v1827
      %v1829 = vmul.f32 %v1821, %v1828
      %v1831 = vlaneseq
      %v1832 = vshrl.u32 %v1831, 7
      %v1833 = vsub.s32 0, %v1832
      %v1834 = vrot.slane %v1815, %v1833
      %v1836 = vmul.f32 %v1829, %v1834
      %v1838 = vlaneseq
      %v1839 = vshrl.u32 %v1838, 7
      %v1840 = vsub.s32 0, %v1839
      %v1841 = vrot.slane %v1816, %v1840
      %v1843 = vadd.f32 %v1836, %v1841
      %v1844 = vpack.c.bf16 %v1843, %v1843
      %v1845 = vld [vmem:[%s11] sm:$0xff]
      %v1846 = vld [vmem:[%s11 + $0x8] sm:$0xff]
      %v1847 = vld [vmem:[%s11 + $0x10] sm:$0xff]
      %v1848 = vld [vmem:[%s11 + $0x18] sm:$0xff]
      %v1849 = vpack.c.bf16 %v1846, %v1845
      %v1850 = vpack.c.bf16 %v1848, %v1847
      %v1851 = vld [vmem:[%s12] sm:$0x1]
      %v1853 = vlaneseq
      %v1854 = vshrl.u32 %v1853, 7
      %v1855 = vsub.s32 0, %v1854
      %v1856 = vrot.slane %v1851, %v1855
      %v1859 = vsel %vm1103, %v1844, 0
      %1861 = vmatprep.subr.bf16.mxu0 0
      %1862 = vmatpush1.bf16.msra.mxu0 %v1849
      %1863 = vmatprep.subr.bf16.mxu0 0
      %1864 = vmatpush1.bf16.msra.mxu0 %v1850
      %1865 = vmatprep.subr.bf16.mxu0 0
      %1866 = vmatpush1.bf16.msra.mxu0 0
      %1867 = vmatprep.subr.bf16.mxu0 0
      %1868 = vmatpush1.bf16.msra.mxu0 0
      %1869 = vmatprep.subr.bf16.mxu0 0
      %1870 = vmatpush1.bf16.msra.mxu0 0
      %1871 = vmatprep.subr.bf16.mxu0 0
      %1872 = vmatpush1.bf16.msra.mxu0 0
      %1873 = vmatprep.subr.bf16.mxu0 0
      %1874 = vmatpush1.bf16.msra.mxu0 0
      %1875 = vmatprep.subr.bf16.mxu0 0
      %1876 = vmatpush1.bf16.msra.mxu0 0
      %1877 = vmatprep.subr.bf16.mxu0 0
      %1878 = vmatpush1.bf16.msra.mxu0 0
      %1879 = vmatprep.subr.bf16.mxu0 0
      %1880 = vmatpush1.bf16.msra.mxu0 0
      %1881 = vmatprep.subr.bf16.mxu0 0
      %1882 = vmatpush1.bf16.msra.mxu0 0
      %1883 = vmatprep.subr.bf16.mxu0 0
      %1884 = vmatpush1.bf16.msra.mxu0 0
      %1885 = vmatprep.subr.bf16.mxu0 0
      %1886 = vmatpush1.bf16.msra.mxu0 0
      %1887 = vmatprep.subr.bf16.mxu0 0
      %1888 = vmatpush1.bf16.msra.mxu0 0
      %1889 = vmatprep.subr.bf16.mxu0 0
      %1890 = vmatpush1.bf16.msra.mxu0 0
      %1891 = vmatprep.subr.bf16.mxu0 0
      %1892 = vmatpush1.bf16.msra.mxu0 0
      %1893 = vmatprep.mubr.bf16.mxu0 0
      %1894 = vmatmul.mubr.bf16.gmra.mrb[0].mxu0 %v1859
      %v1895 = vpop.f32.mrb[0].mxu0
      %v1896 = vadd.f32 %v1856, %v1895
      %v1897 = vpop.f32.mrb[0].mxu0
      %v1898 = vpop.f32.mrb[0].mxu0
      %v1899 = vpop.f32.mrb[0].mxu0
      %1900 = vdwg.mxu0
      %v1901 = vmul.f32 %v1896, %v1896
      %v1902 = vmul.f32 %v1896, %v1901
      %v1903 = vmul.f32 %v1902, 0.044715
      %v1904 = vadd.f32 %v1896, %v1903
      %v1905 = vmul.f32 %v1904, 0.7978846
      %v1906 = vtanh.pop %v1905
      %v1907 = vadd.f32 %v1906, 1.0
      %v1908 = vmul.f32 %v1907, 0.5
      %v1909 = vmul.f32 %v1896, %v1908
      %v1910 = vpack.c.bf16 %v1909, %v1909
      %v1911 = vld [vmem:[%s13] sm:$0xff]
      %v1912 = vld [vmem:[%s13 + $0x8] sm:$0xff]
      %v1913 = vld [vmem:[%s13 + $0x10] sm:$0xff]
      %v1914 = vld [vmem:[%s13 + $0x18] sm:$0xff]
      %v1915 = vpack.c.bf16 %v1912, %v1911
      %v1916 = vpack.c.bf16 %v1914, %v1913
      %v1918 = vsel %vm1103, %v1910, 0
      %1920 = vmatprep.subr.bf16.mxu0 0
      %1921 = vmatpush1.bf16.msra.mxu0 %v1915
      %1922 = vmatprep.subr.bf16.mxu0 0
      %1923 = vmatpush1.bf16.msra.mxu0 %v1916
      %1924 = vmatprep.subr.bf16.mxu0 0
      %1925 = vmatpush1.bf16.msra.mxu0 0
      %1926 = vmatprep.subr.bf16.mxu0 0
      %1927 = vmatpush1.bf16.msra.mxu0 0
      %1928 = vmatprep.subr.bf16.mxu0 0
      %1929 = vmatpush1.bf16.msra.mxu0 0
      %1930 = vmatprep.subr.bf16.mxu0 0
      %1931 = vmatpush1.bf16.msra.mxu0 0
      %1932 = vmatprep.subr.bf16.mxu0 0
      %1933 = vmatpush1.bf16.msra.mxu0 0
      %1934 = vmatprep.subr.bf16.mxu0 0
      %1935 = vmatpush1.bf16.msra.mxu0 0
      %1936 = vmatprep.subr.bf16.mxu0 0
      %1937 = vmatpush1.bf16.msra.mxu0 0
      %1938 = vmatprep.subr.bf16.mxu0 0
      %1939 = vmatpush1.bf16.msra.mxu0 0
      %1940 = vmatprep.subr.bf16.mxu0 0
      %1941 = vmatpush1.bf16.msra.mxu0 0
      %1942 = vmatprep.subr.bf16.mxu0 0
      %1943 = vmatpush1.bf16.msra.mxu0 0
      %1944 = vmatprep.subr.bf16.mxu0 0
      %1945 = vmatpush1.bf16.msra.mxu0 0
      %1946 = vmatprep.subr.bf16.mxu0 0
      %1947 = vmatpush1.bf16.msra.mxu0 0
      %1948 = vmatprep.subr.bf16.mxu0 0
      %1949 = vmatpush1.bf16.msra.mxu0 0
      %1950 = vmatprep.subr.bf16.mxu0 0
      %1951 = vmatpush1.bf16.msra.mxu0 0
      %1952 = vmatprep.mubr.bf16.mxu0 0
      %1953 = vmatmul.mubr.bf16.gmra.mrb[0].mxu0 %v1918
      %v1954 = vpop.f32.mrb[0].mxu0
      %v1955 = vadd.f32 0.0, %v1954
      %v1956 = vpop.f32.mrb[0].mxu0
      %v1957 = vpop.f32.mrb[0].mxu0
      %v1958 = vpop.f32.mrb[0].mxu0
      %1959 = vdwg.mxu0
      %v1960 = vadd.f32 %v1814, %v1955
      %v1961 = vld [vmem:[%s14] sm:$0x1]
      %v1963 = vlaneseq
      %v1964 = vshrl.u32 %v1963, 7
      %v1965 = vsub.s32 0, %v1964
      %v1966 = vrot.slane %v1961, %v1965
      %v1968 = vadd.f32 %v1960, %v1966
      %v1969 = vpack.c.bf16 %v1968, %v1968
      %v1970 = vld [vmem:[%s15] sm:$0xff]
      %v1971 = vld [vmem:[%s15 + $0x8] sm:$0xff]
      %v1972 = vld [vmem:[%s15 + $0x10] sm:$0xff]
      %v1973 = vld [vmem:[%s15 + $0x18] sm:$0xff]
      %v1974 = vpack.c.bf16 %v1971, %v1970
      %v1975 = vpack.c.bf16 %v1973, %v1972
      %v1976 = vld [vmem:[%s16] sm:$0x1]
      %v1978 = vlaneseq
      %v1979 = vshrl.u32 %v1978, 7
      %v1980 = vsub.s32 0, %v1979
      %v1981 = vrot.slane %v1976, %v1980
      %v1984 = vshrl.u32 %v1969, 16
      %v1986 = vshll.u32 %v1969, 16
      %v1988 = vrot.slane %v1986, 1
      %v1989 = vor.u32 %v1984, %v1988
      %v1991 = vsel %vm1103, %v1989, 0
      %1993 = vmatprep.subr.bf16.mxu0 0
      %1994 = vmatpush1.bf16.msra.mxu0 %v1974
      %1995 = vmatprep.subr.bf16.mxu0 0
      %1996 = vmatpush1.bf16.msra.mxu0 %v1975
      %1997 = vmatprep.subr.bf16.mxu0 0
      %1998 = vmatpush1.bf16.msra.mxu0 0
      %1999 = vmatprep.subr.bf16.mxu0 0
      %2000 = vmatpush1.bf16.msra.mxu0 0
      %2001 = vmatprep.subr.bf16.mxu0 0
      %2002 = vmatpush1.bf16.msra.mxu0 0
      %2003 = vmatprep.subr.bf16.mxu0 0
      %2004 = vmatpush1.bf16.msra.mxu0 0
      %2005 = vmatprep.subr.bf16.mxu0 0
      %2006 = vmatpush1.bf16.msra.mxu0 0
      %2007 = vmatprep.subr.bf16.mxu0 0
      %2008 = vmatpush1.bf16.msra.mxu0 0
      %2009 = vmatprep.subr.bf16.mxu0 0
      %2010 = vmatpush1.bf16.msra.mxu0 0
      %2011 = vmatprep.subr.bf16.mxu0 0
      %2012 = vmatpush1.bf16.msra.mxu0 0
      %2013 = vmatprep.subr.bf16.mxu0 0
      %2014 = vmatpush1.bf16.msra.mxu0 0
      %2015 = vmatprep.subr.bf16.mxu0 0
      %2016 = vmatpush1.bf16.msra.mxu0 0
      %2017 = vmatprep.subr.bf16.mxu0 0
      %2018 = vmatpush1.bf16.msra.mxu0 0
      %2019 = vmatprep.subr.bf16.mxu0 0
      %2020 = vmatpush1.bf16.msra.mxu0 0
      %2021 = vmatprep.subr.bf16.mxu0 0
      %2022 = vmatpush1.bf16.msra.mxu0 0
      %2023 = vmatprep.subr.bf16.mxu0 0
      %2024 = vmatpush1.bf16.msra.mxu0 0
      %2025 = vmatprep.mubr.bf16.mxu0 0
      %2026 = vmatmul.mubr.bf16.gmra.mrb[0].mxu0 %v1991
      %v2027 = vpop.f32.mrb[0].mxu0
      %v2028 = vadd.f32 %v1981, %v2027
      %v2029 = vpop.f32.mrb[0].mxu0
      %v2030 = vpop.f32.mrb[0].mxu0
      %v2031 = vpop.f32.mrb[0].mxu0
      %2032 = vdwg.mxu0
      %2033 = vst [vmem:[%s546] sm:$0xf] %v2028
      %v2034 = vxor.u32 %v2028, 2147483648
      %v2035 = vmul.f32 %v2034, 1.442695
      %v2036 = vpow.pop %v2035
      %v2037 = vadd.f32 %v2036, 1.0
      %v2038 = vrcp.pop %v2037
      %v2039 = vmul.f32 1.0, %v2038
      %vm2040 = vcmask 175272
      %2041 = vst.msk [vmem:[%s546] sm:$0xf] %vm2040, %v2039
      %p2042 = scmp.lt.s32.totalorder %s28, 1
      %s2043 = scalar_select %p2042, %s28, 1
      %s2044 = smul.addr %s2043, 4
      %s2045 = scalar_lea.vmem %s17, %s2044
      // Predicated region
      $region89: #{cnn_head_forward.5} parent=87 // pred_check
        %p2046 = pneg %p408
      $region90: #{cnn_head_forward.5} parent=87 // pred_check_branch
        %2048 = sbr.rel (%p2046) target = $region92
      $region91: #{cnn_head_forward.5} parent=87 // pred_region
        _
      $region92: #{cnn_head_forward.5} parent=87 // pred_fallthru
        _
    $region88: #{cnn_head_forward.5} parent=5 // pred_fallthru
      _
    %p2049 = scmp.le.s32.totalorder 2, %s23
    // Predicated region
    $region93: #{cnn_head_forward.5} parent=5 // pred_check
      %p2050 = pneg %p2049
    $region94: #{cnn_head_forward.5} parent=5 // pred_check_branch
      %2052 = sbr.rel (%p2050) target = $region96
    $region95: #{cnn_head_forward.5} parent=5 // pred_region
      %s2053 = ssub.s32 %s23, 2
      // Predicated region
      $region97: #{cnn_head_forward.5} parent=95 // pred_check
        %p2054 = pneg %p414
      $region98: #{cnn_head_forward.5} parent=95 // pred_check_branch
        %2056 = sbr.rel (%p2054) target = $region100
      $region99: #{cnn_head_forward.5} parent=95 // pred_region
        %p2057 = scmp.lt.s32.totalorder %s29, 1
        %s2058 = scalar_select %p2057, %s29, 1
        %s2059 = smul.addr %s2058, 4
        %s2060 = scalar_lea.vmem %s17, %s2059
      $region100: #{cnn_head_forward.5} parent=95 // pred_fallthru
        _
    $region96: #{cnn_head_forward.5} parent=5 // pred_fallthru
      _
  $region6: #{cnn_head_forward.5} parent=0 // loop_footer
    %s27 = sadd.s32 1, %s23
  $region7: #{cnn_head_forward.5} parent=0 // loop_footer_branch
    %22 = sbr.rel target = $region3
  $region8: #{cnn_head_forward.5} parent=0 // loop_exit
    _

</llo_original>
